<compile_context>
chip_gen: v7x
topology: tpu7x:2x2x1
jax: 0.10.0
libtpu: 0.0.40
codegen_flags: <defaults>
</compile_context>

<pallas_src>
import jax
import jax.numpy as jnp
from jax.experimental import pallas as pl
from jax.experimental.pallas import tpu as pltpu

A_ACT = 1.716
S_ACT = 2.0 / 3.0

EDGE = 28          # input edge
K = 5              # conv kernel size
PAD = 2            # conv padding
STRIDE = 2         # conv stride
C1 = 12            # conv1 out channels
C2 = 12            # conv2 out channels
NH = 30            # lin1 width
NC = 10            # n_classes


def calc_conv_output_dim(input_dim, kernel_size, padding, stride):
    return int((input_dim - kernel_size + 2 * padding) / stride + 1)


PADDED = EDGE + 2 * PAD                              # 32
H1 = calc_conv_output_dim(EDGE, K, PAD, STRIDE)      # 14
H2 = calc_conv_output_dim(H1, K, PAD, STRIDE)        # 7
LIN1_IN = C2 * H2 * H2                               # 588


# ----------------------------- Pallas kernel ---------------------------------
def _fused_forward_kernel(xt_ref, s1_ref, g1_ref, b1_ref, s2_ref, g2_ref,
                          b2_ref, wl1_ref, bl1_ref, wl2_ref, bl2_ref, o_ref):
    """One batch element per grid step: conv1/conv2/lin1/lin2 (+ scaled tanh)."""

    def act(v):
        return A_ACT * jnp.tanh(S_ACT * v)

    xt = xt_ref[0]                                                # (32, 32)  padded image, transposed

    # conv1 + scaled tanh:  y1[ow, oc*H1 + oh]  -> (14, 168), lane-dense
    y1 = jnp.zeros((s1_ref.shape[1], g1_ref.shape[2]), jnp.float32)
    for j in range(s1_ref.shape[0]):
        t = jnp.dot(s1_ref[j], xt, preferred_element_type=jnp.float32)        # (14, 32)
        y1 = y1 + jnp.dot(t, g1_ref[j], preferred_element_type=jnp.float32)   # (14, 168)
    y1 = act(y1 + b1_ref[...])

    # conv2 + scaled tanh:  y2[ow2, od*H2 + oh2]  -> (7, 84)
    y2 = jnp.zeros((s2_ref.shape[1], g2_ref.shape[2]), jnp.float32)
    for j in range(s2_ref.shape[0]):
        t = jnp.dot(s2_ref[j], y1, preferred_element_type=jnp.float32)        # (7, 168)
        y2 = y2 + jnp.dot(t, g2_ref[j], preferred_element_type=jnp.float32)   # (7, 84)
    y2 = act(y2 + b2_ref[...])

    # lin1 + scaled tanh: contraction over both dims of y2 as 7 row matmuls
    h = jnp.zeros((1, wl1_ref.shape[2]), jnp.float32)
    for q in range(wl1_ref.shape[0]):
        h = h + jnp.dot(y2[q:q + 1, :], wl1_ref[q],
                        preferred_element_type=jnp.float32)                   # (1, 30)
    h = act(h + bl1_ref[...])

    # lin2 + scaled tanh
    o = jnp.dot(h, wl2_ref[...], preferred_element_type=jnp.float32)          # (1, 10)
    o_ref[0] = act(o + bl2_ref[...])


# ----------------------------- wrapper ---------------------------------------
@jax.jit
def model_forward(params, x):
    """x: (B, H, W) float32 -> logits (B, n_classes); mirrors Model.forward."""
    B = x.shape[0]
    f32 = jnp.float32

    # --- only per-activation XLA work: pad + transpose the tiny input image ---
    xt = jnp.pad(x, ((0, 0), (PAD, PAD), (PAD, PAD)))            # (B, 32, 32)
    xt = jnp.swapaxes(xt, 1, 2)                                  # x^T per batch element

    # --- weight-only preparation (tiny einsums/reshapes, no activation glue) ---
    j_idx = jnp.arange(K)[:, None, None]
    # S1[j, q, w] = 1 iff w == 2*q + j        (conv1 stride-2 unfold selector)
    S1 = (jnp.arange(PADDED)[None, None, :]
          == 2 * jnp.arange(H1)[None, :, None] + j_idx).astype(f32)            # (5, 14, 32)
    # S2[j, q, w] = 1 iff w == 2*q + j - PAD  (conv2 selector, implicit zero pad)
    S2 = (jnp.arange(H1)[None, None, :]
          == 2 * jnp.arange(H2)[None, :, None] + j_idx - PAD).astype(f32)      # (5, 7, 14)

    w1r = params["w_c1"].reshape(K, K, C1).astype(f32)            # (i, j, oc)  torch Unfold row order
    w2r = params["w_c2"].reshape(C1, K, K, C2).astype(f32)        # (ic, i, j, od)
    # G1[j, h, oc*H1+oh] = sum_i w1[i,j,oc] * [h == 2*oh + i]
    G1 = jnp.einsum("ijo,iph->jhop", w1r, S1).reshape(K, PADDED, C1 * H1)      # (5, 32, 168)
    # G2[j, ic*H1+h, od*H2+p] = sum_i w2[ic,i,j,od] * [h == 2*p + i - PAD]
    G2 = jnp.einsum("cijd,iph->jchdp", w2r, S2).reshape(K, C1 * H1, C2 * H2)   # (5, 168, 84)

    b1 = jnp.repeat(params["b_c1"].astype(f32), H1).reshape(1, C1 * H1)        # (1, 168)
    b2 = jnp.repeat(params["b_c2"].astype(f32), H2).reshape(1, C2 * H2)        # (1, 84)
    # lin1 weight repacked so row q of y2 contracts against wl1[q]  (PyTorch
    # flatten order 'b c h w -> b (c h w)').
    wl1 = (params["w_l1"].astype(f32)
           .reshape(C2, H2, H2, NH).transpose(2, 0, 1, 3).reshape(H2, C2 * H2, NH))  # (7, 84, 30)
    bl1 = params["b_l1"].astype(f32).reshape(1, NH)
    wl2 = params["w_l2"].astype(f32)                                            # (30, 10)
    bl2 = params["b_l2"].astype(f32).reshape(1, NC)

    def full(*shape):
        return pl.BlockSpec(shape, lambda b, _s=shape: (0,) * len(_s))

    out = pl.pallas_call(
        _fused_forward_kernel,
        out_shape=jax.ShapeDtypeStruct((B, 1, NC), f32),
        grid=(B,),
        in_specs=[
            pl.BlockSpec((1, PADDED, PADDED), lambda b: (b, 0, 0)),   # x^T (per batch elem)
            full(K, H1, PADDED),            # S1
            full(K, PADDED, C1 * H1),       # G1
            full(1, C1 * H1),               # conv1 bias (broadcast row)
            full(K, H2, H1),                # S2
            full(K, C1 * H1, C2 * H2),      # G2
            full(1, C2 * H2),               # conv2 bias
            full(H2, C2 * H2, NH),          # lin1 weight (repacked)
            full(1, NH),                    # lin1 bias
            full(NH, NC),                   # lin2 weight
            full(1, NC),                    # lin2 bias
        ],
        out_specs=pl.BlockSpec((1, 1, NC), lambda b: (b, 0, 0)),
        compiler_params=pltpu.CompilerParams(
            dimension_semantics=("parallel",)),
    )(xt, S1, G1, b1, S2, G2, b2, wl1, bl1, wl2, bl2)
    return out[:, 0, :]


# ----------------------------- params / reference ----------------------------
def init_params(key, edge=28, n_classes=10):
    e1 = edge // 2
    e2 = e1 // 2
    lin1_in = e2 * e2 * 12
    ks = jax.random.split(key, 8)

    s1 = 2.4 / (1 * 5 * 5)
    w_c1 = jax.random.uniform(ks[0], (1 * 5 * 5, 12), jnp.float32, -s1, s1)
    b_c1 = jax.random.uniform(ks[1], (12,), jnp.float32, -s1, s1)

    s2 = 2.4 / (12 * 5 * 5)
    w_c2 = jax.random.uniform(ks[2], (12 * 5 * 5, 12), jnp.float32, -s2, s2)
    b_c2 = jax.random.uniform(ks[3], (12,), jnp.float32, -s2, s2)

    s3 = 2.4 / 30  # lecun: 2.4 / lin1.weight.shape[0] (= out_features in torch layout)
    w_l1 = jax.random.uniform(ks[4], (lin1_in, 30), jnp.float32, -s3, s3)
    bl1 = 1.0 / jnp.sqrt(lin1_in)
    b_l1 = jax.random.uniform(ks[5], (30,), jnp.float32, -bl1, bl1)

    s4 = 2.4 / n_classes
    w_l2 = jax.random.uniform(ks[6], (30, n_classes), jnp.float32, -s4, s4)
    bl2 = 1.0 / jnp.sqrt(30)
    b_l2 = jax.random.uniform(ks[7], (30, n_classes)[:1] + (n_classes,), jnp.float32, -bl2, bl2)[0] \
        if False else jax.random.uniform(ks[7], (n_classes,), jnp.float32, -bl2, bl2)

    return dict(w_c1=w_c1, b_c1=b_c1, w_c2=w_c2, b_c2=b_c2,
                w_l1=w_l1, b_l1=b_l1, w_l2=w_l2, b_l2=b_l2)


def _reference_forward(params, x):
    """Pure-XLA reference (same math as the PyTorch module) for a sanity check."""
    act = lambda v: A_ACT * jnp.tanh(S_ACT * v)

    def conv(y, w, b, c_in, c_out):
        wk = w.reshape(c_in, K, K, c_out).transpose(3, 0, 1, 2)   # OIHW, torch Unfold row order
        out = jax.lax.conv_general_dilated(y, wk, (STRIDE, STRIDE),
                                           ((PAD, PAD), (PAD, PAD)))
        return out + b[None, :, None, None]

    y = x[:, None, :, :]
    y = act(conv(y, params["w_c1"], params["b_c1"], 1, C1))
    y = act(conv(y, params["w_c2"], params["b_c2"], C1, C2))
    y = y.reshape(x.shape[0], -1)
    y = act(y @ params["w_l1"] + params["b_l1"])
    y = act(y @ params["w_l2"] + params["b_l2"])
    return y


if __name__ == "__main__":
    key = jax.random.PRNGKey(0)
    k_x, k_p = jax.random.split(key)
    B, edge = 2, 28
    x = jax.random.normal(k_x, (B, edge, edge), dtype=jnp.float32)
    params = init_params(k_p, edge=edge, n_classes=NC)

    out = model_forward(params, x)
    jax.block_until_ready(out)
    assert out.shape == (B, NC), out.shape

    ref = _reference_forward(params, x)
    # loose tolerance: default-precision f32 matmuls on TPU use bf16 MXU passes
    assert jnp.allclose(out, ref, atol=3e-2, rtol=0.0), \
        float(jnp.max(jnp.abs(out - ref)))

    print("KERNEL_OK")
</pallas_src>

<mosaic_0001>
module attributes {stable_mosaic.version = 11 : i64} {
  func.func @_fused_forward_kernel(%arg0: i32, %arg1: memref<1x32x32xf32, #tpu.memory_space<vmem>>, %arg2: memref<5x14x32xf32, #tpu.memory_space<vmem>>, %arg3: memref<5x32x168xf32, #tpu.memory_space<vmem>>, %arg4: memref<1x168xf32, #tpu.memory_space<vmem>>, %arg5: memref<5x7x14xf32, #tpu.memory_space<vmem>>, %arg6: memref<5x168x84xf32, #tpu.memory_space<vmem>>, %arg7: memref<1x84xf32, #tpu.memory_space<vmem>>, %arg8: memref<7x84x30xf32, #tpu.memory_space<vmem>>, %arg9: memref<1x30xf32, #tpu.memory_space<vmem>>, %arg10: memref<30x10xf32, #tpu.memory_space<vmem>>, %arg11: memref<1x10xf32, #tpu.memory_space<vmem>>, %arg12: memref<1x1x10xf32, #tpu.memory_space<vmem>>) attributes {dimension_semantics = [#tpu.dimension_semantics<parallel>], iteration_bounds = array<i64: 2>, scalar_prefetch = 0 : i64, scratch_operands = 0 : i64, tpu.core_type = #tpu.core_type<tc>, window_params = [{transform_indices = @transform_0, window_bounds = array<i64: 1, 32, 32>}, {pipeline_mode = #tpu.pipeline_mode<synchronous>, transform_indices = @transform_1, window_bounds = array<i64: 5, 14, 32>}, {pipeline_mode = #tpu.pipeline_mode<synchronous>, transform_indices = @transform_2, window_bounds = array<i64: 5, 32, 168>}, {pipeline_mode = #tpu.pipeline_mode<synchronous>, transform_indices = @transform_3, window_bounds = array<i64: 1, 168>}, {pipeline_mode = #tpu.pipeline_mode<synchronous>, transform_indices = @transform_4, window_bounds = array<i64: 5, 7, 14>}, {pipeline_mode = #tpu.pipeline_mode<synchronous>, transform_indices = @transform_5, window_bounds = array<i64: 5, 168, 84>}, {pipeline_mode = #tpu.pipeline_mode<synchronous>, transform_indices = @transform_6, window_bounds = array<i64: 1, 84>}, {pipeline_mode = #tpu.pipeline_mode<synchronous>, transform_indices = @transform_7, window_bounds = array<i64: 7, 84, 30>}, {pipeline_mode = #tpu.pipeline_mode<synchronous>, transform_indices = @transform_8, window_bounds = array<i64: 1, 30>}, {pipeline_mode = #tpu.pipeline_mode<synchronous>, transform_indices = @transform_9, window_bounds = array<i64: 30, 10>}, {pipeline_mode = #tpu.pipeline_mode<synchronous>, transform_indices = @transform_10, window_bounds = array<i64: 1, 10>}, {transform_indices = @transform_11, window_bounds = array<i64: 1, 1, 10>}]} {
    %c0 = arith.constant 0 : index
    %c0_0 = arith.constant 0 : index
    %c0_1 = arith.constant 0 : index
    %0 = vector.load %arg1[%c0, %c0_0, %c0_1] : memref<1x32x32xf32, #tpu.memory_space<vmem>>, vector<1x32x32xf32>
    %1 = vector.shape_cast %0 : vector<1x32x32xf32> to vector<32x32xf32>
    %cst = arith.constant 0.000000e+00 : f32
    %2 = vector.broadcast %cst : f32 to vector<14x168xf32>
    %c0_2 = arith.constant 0 : index
    %c0_3 = arith.constant 0 : index
    %c0_4 = arith.constant 0 : index
    %3 = vector.load %arg2[%c0_2, %c0_3, %c0_4] : memref<5x14x32xf32, #tpu.memory_space<vmem>>, vector<1x14x32xf32>
    %4 = vector.shape_cast %3 : vector<1x14x32xf32> to vector<14x32xf32>
    %cst_5 = arith.constant dense<0.000000e+00> : vector<14x32xf32>
    %5 = tpu.matmul %4, %1, %cst_5 {dimension_numbers = #tpu.dot_dimension_numbers<[1], [0], [0], [1], [0, 0, 1, 1], [], []>} : vector<14x32xf32>, vector<32x32xf32>, vector<14x32xf32> -> vector<14x32xf32>
    %c0_6 = arith.constant 0 : index
    %c0_7 = arith.constant 0 : index
    %c0_8 = arith.constant 0 : index
    %6 = vector.load %arg3[%c0_6, %c0_7, %c0_8] : memref<5x32x168xf32, #tpu.memory_space<vmem>>, vector<1x32x168xf32>
    %7 = vector.shape_cast %6 : vector<1x32x168xf32> to vector<32x168xf32>
    %cst_9 = arith.constant dense<0.000000e+00> : vector<14x168xf32>
    %8 = tpu.matmul %5, %7, %cst_9 {dimension_numbers = #tpu.dot_dimension_numbers<[1], [0], [0], [1], [0, 0, 1, 1], [], []>} : vector<14x32xf32>, vector<32x168xf32>, vector<14x168xf32> -> vector<14x168xf32>
    %9 = arith.addf %2, %8 : vector<14x168xf32>
    %c1 = arith.constant 1 : index
    %c0_10 = arith.constant 0 : index
    %c0_11 = arith.constant 0 : index
    %10 = vector.load %arg2[%c1, %c0_10, %c0_11] : memref<5x14x32xf32, #tpu.memory_space<vmem>>, vector<1x14x32xf32>
    %11 = vector.shape_cast %10 : vector<1x14x32xf32> to vector<14x32xf32>
    %cst_12 = arith.constant dense<0.000000e+00> : vector<14x32xf32>
    %12 = tpu.matmul %11, %1, %cst_12 {dimension_numbers = #tpu.dot_dimension_numbers<[1], [0], [0], [1], [0, 0, 1, 1], [], []>} : vector<14x32xf32>, vector<32x32xf32>, vector<14x32xf32> -> vector<14x32xf32>
    %c1_13 = arith.constant 1 : index
    %c0_14 = arith.constant 0 : index
    %c0_15 = arith.constant 0 : index
    %13 = vector.load %arg3[%c1_13, %c0_14, %c0_15] : memref<5x32x168xf32, #tpu.memory_space<vmem>>, vector<1x32x168xf32>
    %14 = vector.shape_cast %13 : vector<1x32x168xf32> to vector<32x168xf32>
    %cst_16 = arith.constant dense<0.000000e+00> : vector<14x168xf32>
    %15 = tpu.matmul %12, %14, %cst_16 {dimension_numbers = #tpu.dot_dimension_numbers<[1], [0], [0], [1], [0, 0, 1, 1], [], []>} : vector<14x32xf32>, vector<32x168xf32>, vector<14x168xf32> -> vector<14x168xf32>
    %16 = arith.addf %9, %15 : vector<14x168xf32>
    %c2 = arith.constant 2 : index
    %c0_17 = arith.constant 0 : index
    %c0_18 = arith.constant 0 : index
    %17 = vector.load %arg2[%c2, %c0_17, %c0_18] : memref<5x14x32xf32, #tpu.memory_space<vmem>>, vector<1x14x32xf32>
    %18 = vector.shape_cast %17 : vector<1x14x32xf32> to vector<14x32xf32>
    %cst_19 = arith.constant dense<0.000000e+00> : vector<14x32xf32>
    %19 = tpu.matmul %18, %1, %cst_19 {dimension_numbers = #tpu.dot_dimension_numbers<[1], [0], [0], [1], [0, 0, 1, 1], [], []>} : vector<14x32xf32>, vector<32x32xf32>, vector<14x32xf32> -> vector<14x32xf32>
    %c2_20 = arith.constant 2 : index
    %c0_21 = arith.constant 0 : index
    %c0_22 = arith.constant 0 : index
    %20 = vector.load %arg3[%c2_20, %c0_21, %c0_22] : memref<5x32x168xf32, #tpu.memory_space<vmem>>, vector<1x32x168xf32>
    %21 = vector.shape_cast %20 : vector<1x32x168xf32> to vector<32x168xf32>
    %cst_23 = arith.constant dense<0.000000e+00> : vector<14x168xf32>
    %22 = tpu.matmul %19, %21, %cst_23 {dimension_numbers = #tpu.dot_dimension_numbers<[1], [0], [0], [1], [0, 0, 1, 1], [], []>} : vector<14x32xf32>, vector<32x168xf32>, vector<14x168xf32> -> vector<14x168xf32>
    %23 = arith.addf %16, %22 : vector<14x168xf32>
    %c3 = arith.constant 3 : index
    %c0_24 = arith.constant 0 : index
    %c0_25 = arith.constant 0 : index
    %24 = vector.load %arg2[%c3, %c0_24, %c0_25] : memref<5x14x32xf32, #tpu.memory_space<vmem>>, vector<1x14x32xf32>
    %25 = vector.shape_cast %24 : vector<1x14x32xf32> to vector<14x32xf32>
    %cst_26 = arith.constant dense<0.000000e+00> : vector<14x32xf32>
    %26 = tpu.matmul %25, %1, %cst_26 {dimension_numbers = #tpu.dot_dimension_numbers<[1], [0], [0], [1], [0, 0, 1, 1], [], []>} : vector<14x32xf32>, vector<32x32xf32>, vector<14x32xf32> -> vector<14x32xf32>
    %c3_27 = arith.constant 3 : index
    %c0_28 = arith.constant 0 : index
    %c0_29 = arith.constant 0 : index
    %27 = vector.load %arg3[%c3_27, %c0_28, %c0_29] : memref<5x32x168xf32, #tpu.memory_space<vmem>>, vector<1x32x168xf32>
    %28 = vector.shape_cast %27 : vector<1x32x168xf32> to vector<32x168xf32>
    %cst_30 = arith.constant dense<0.000000e+00> : vector<14x168xf32>
    %29 = tpu.matmul %26, %28, %cst_30 {dimension_numbers = #tpu.dot_dimension_numbers<[1], [0], [0], [1], [0, 0, 1, 1], [], []>} : vector<14x32xf32>, vector<32x168xf32>, vector<14x168xf32> -> vector<14x168xf32>
    %30 = arith.addf %23, %29 : vector<14x168xf32>
    %c4 = arith.constant 4 : index
    %c0_31 = arith.constant 0 : index
    %c0_32 = arith.constant 0 : index
    %31 = vector.load %arg2[%c4, %c0_31, %c0_32] : memref<5x14x32xf32, #tpu.memory_space<vmem>>, vector<1x14x32xf32>
    %32 = vector.shape_cast %31 : vector<1x14x32xf32> to vector<14x32xf32>
    %cst_33 = arith.constant dense<0.000000e+00> : vector<14x32xf32>
    %33 = tpu.matmul %32, %1, %cst_33 {dimension_numbers = #tpu.dot_dimension_numbers<[1], [0], [0], [1], [0, 0, 1, 1], [], []>} : vector<14x32xf32>, vector<32x32xf32>, vector<14x32xf32> -> vector<14x32xf32>
    %c4_34 = arith.constant 4 : index
    %c0_35 = arith.constant 0 : index
    %c0_36 = arith.constant 0 : index
    %34 = vector.load %arg3[%c4_34, %c0_35, %c0_36] : memref<5x32x168xf32, #tpu.memory_space<vmem>>, vector<1x32x168xf32>
    %35 = vector.shape_cast %34 : vector<1x32x168xf32> to vector<32x168xf32>
    %cst_37 = arith.constant dense<0.000000e+00> : vector<14x168xf32>
    %36 = tpu.matmul %33, %35, %cst_37 {dimension_numbers = #tpu.dot_dimension_numbers<[1], [0], [0], [1], [0, 0, 1, 1], [], []>} : vector<14x32xf32>, vector<32x168xf32>, vector<14x168xf32> -> vector<14x168xf32>
    %37 = arith.addf %30, %36 : vector<14x168xf32>
    %c0_38 = arith.constant 0 : index
    %c0_39 = arith.constant 0 : index
    %38 = vector.load %arg4[%c0_38, %c0_39] : memref<1x168xf32, #tpu.memory_space<vmem>>, vector<1x168xf32>
    %39 = vector.broadcast %38 : vector<1x168xf32> to vector<14x168xf32>
    %40 = arith.addf %37, %39 : vector<14x168xf32>
    %cst_40 = arith.constant 0.666666686 : f32
    %41 = vector.broadcast %cst_40 : f32 to vector<14x168xf32>
    %42 = arith.mulf %41, %40 : vector<14x168xf32>
    %43 = math.tanh %42 : vector<14x168xf32>
    %cst_41 = arith.constant 1.716000e+00 : f32
    %44 = vector.broadcast %cst_41 : f32 to vector<14x168xf32>
    %45 = arith.mulf %44, %43 : vector<14x168xf32>
    %cst_42 = arith.constant 0.000000e+00 : f32
    %46 = vector.broadcast %cst_42 : f32 to vector<7x84xf32>
    %c0_43 = arith.constant 0 : index
    %c0_44 = arith.constant 0 : index
    %c0_45 = arith.constant 0 : index
    %47 = vector.load %arg5[%c0_43, %c0_44, %c0_45] : memref<5x7x14xf32, #tpu.memory_space<vmem>>, vector<1x7x14xf32>
    %48 = vector.shape_cast %47 : vector<1x7x14xf32> to vector<7x14xf32>
    %cst_46 = arith.constant dense<0.000000e+00> : vector<7x168xf32>
    %49 = tpu.matmul %48, %45, %cst_46 {dimension_numbers = #tpu.dot_dimension_numbers<[1], [0], [0], [1], [0, 0, 1, 1], [], []>} : vector<7x14xf32>, vector<14x168xf32>, vector<7x168xf32> -> vector<7x168xf32>
    %c0_47 = arith.constant 0 : index
    %c0_48 = arith.constant 0 : index
    %c0_49 = arith.constant 0 : index
    %50 = vector.load %arg6[%c0_47, %c0_48, %c0_49] : memref<5x168x84xf32, #tpu.memory_space<vmem>>, vector<1x168x84xf32>
    %51 = vector.shape_cast %50 : vector<1x168x84xf32> to vector<168x84xf32>
    %cst_50 = arith.constant dense<0.000000e+00> : vector<7x84xf32>
    %52 = tpu.matmul %49, %51, %cst_50 {dimension_numbers = #tpu.dot_dimension_numbers<[1], [0], [0], [1], [0, 0, 1, 1], [], []>} : vector<7x168xf32>, vector<168x84xf32>, vector<7x84xf32> -> vector<7x84xf32>
    %53 = arith.addf %46, %52 : vector<7x84xf32>
    %c1_51 = arith.constant 1 : index
    %c0_52 = arith.constant 0 : index
    %c0_53 = arith.constant 0 : index
    %54 = vector.load %arg5[%c1_51, %c0_52, %c0_53] : memref<5x7x14xf32, #tpu.memory_space<vmem>>, vector<1x7x14xf32>
    %55 = vector.shape_cast %54 : vector<1x7x14xf32> to vector<7x14xf32>
    %cst_54 = arith.constant dense<0.000000e+00> : vector<7x168xf32>
    %56 = tpu.matmul %55, %45, %cst_54 {dimension_numbers = #tpu.dot_dimension_numbers<[1], [0], [0], [1], [0, 0, 1, 1], [], []>} : vector<7x14xf32>, vector<14x168xf32>, vector<7x168xf32> -> vector<7x168xf32>
    %c1_55 = arith.constant 1 : index
    %c0_56 = arith.constant 0 : index
    %c0_57 = arith.constant 0 : index
    %57 = vector.load %arg6[%c1_55, %c0_56, %c0_57] : memref<5x168x84xf32, #tpu.memory_space<vmem>>, vector<1x168x84xf32>
    %58 = vector.shape_cast %57 : vector<1x168x84xf32> to vector<168x84xf32>
    %cst_58 = arith.constant dense<0.000000e+00> : vector<7x84xf32>
    %59 = tpu.matmul %56, %58, %cst_58 {dimension_numbers = #tpu.dot_dimension_numbers<[1], [0], [0], [1], [0, 0, 1, 1], [], []>} : vector<7x168xf32>, vector<168x84xf32>, vector<7x84xf32> -> vector<7x84xf32>
    %60 = arith.addf %53, %59 : vector<7x84xf32>
    %c2_59 = arith.constant 2 : index
    %c0_60 = arith.constant 0 : index
    %c0_61 = arith.constant 0 : index
    %61 = vector.load %arg5[%c2_59, %c0_60, %c0_61] : memref<5x7x14xf32, #tpu.memory_space<vmem>>, vector<1x7x14xf32>
    %62 = vector.shape_cast %61 : vector<1x7x14xf32> to vector<7x14xf32>
    %cst_62 = arith.constant dense<0.000000e+00> : vector<7x168xf32>
    %63 = tpu.matmul %62, %45, %cst_62 {dimension_numbers = #tpu.dot_dimension_numbers<[1], [0], [0], [1], [0, 0, 1, 1], [], []>} : vector<7x14xf32>, vector<14x168xf32>, vector<7x168xf32> -> vector<7x168xf32>
    %c2_63 = arith.constant 2 : index
    %c0_64 = arith.constant 0 : index
    %c0_65 = arith.constant 0 : index
    %64 = vector.load %arg6[%c2_63, %c0_64, %c0_65] : memref<5x168x84xf32, #tpu.memory_space<vmem>>, vector<1x168x84xf32>
    %65 = vector.shape_cast %64 : vector<1x168x84xf32> to vector<168x84xf32>
    %cst_66 = arith.constant dense<0.000000e+00> : vector<7x84xf32>
    %66 = tpu.matmul %63, %65, %cst_66 {dimension_numbers = #tpu.dot_dimension_numbers<[1], [0], [0], [1], [0, 0, 1, 1], [], []>} : vector<7x168xf32>, vector<168x84xf32>, vector<7x84xf32> -> vector<7x84xf32>
    %67 = arith.addf %60, %66 : vector<7x84xf32>
    %c3_67 = arith.constant 3 : index
    %c0_68 = arith.constant 0 : index
    %c0_69 = arith.constant 0 : index
    %68 = vector.load %arg5[%c3_67, %c0_68, %c0_69] : memref<5x7x14xf32, #tpu.memory_space<vmem>>, vector<1x7x14xf32>
    %69 = vector.shape_cast %68 : vector<1x7x14xf32> to vector<7x14xf32>
    %cst_70 = arith.constant dense<0.000000e+00> : vector<7x168xf32>
    %70 = tpu.matmul %69, %45, %cst_70 {dimension_numbers = #tpu.dot_dimension_numbers<[1], [0], [0], [1], [0, 0, 1, 1], [], []>} : vector<7x14xf32>, vector<14x168xf32>, vector<7x168xf32> -> vector<7x168xf32>
    %c3_71 = arith.constant 3 : index
    %c0_72 = arith.constant 0 : index
    %c0_73 = arith.constant 0 : index
    %71 = vector.load %arg6[%c3_71, %c0_72, %c0_73] : memref<5x168x84xf32, #tpu.memory_space<vmem>>, vector<1x168x84xf32>
    %72 = vector.shape_cast %71 : vector<1x168x84xf32> to vector<168x84xf32>
    %cst_74 = arith.constant dense<0.000000e+00> : vector<7x84xf32>
    %73 = tpu.matmul %70, %72, %cst_74 {dimension_numbers = #tpu.dot_dimension_numbers<[1], [0], [0], [1], [0, 0, 1, 1], [], []>} : vector<7x168xf32>, vector<168x84xf32>, vector<7x84xf32> -> vector<7x84xf32>
    %74 = arith.addf %67, %73 : vector<7x84xf32>
    %c4_75 = arith.constant 4 : index
    %c0_76 = arith.constant 0 : index
    %c0_77 = arith.constant 0 : index
    %75 = vector.load %arg5[%c4_75, %c0_76, %c0_77] : memref<5x7x14xf32, #tpu.memory_space<vmem>>, vector<1x7x14xf32>
    %76 = vector.shape_cast %75 : vector<1x7x14xf32> to vector<7x14xf32>
    %cst_78 = arith.constant dense<0.000000e+00> : vector<7x168xf32>
    %77 = tpu.matmul %76, %45, %cst_78 {dimension_numbers = #tpu.dot_dimension_numbers<[1], [0], [0], [1], [0, 0, 1, 1], [], []>} : vector<7x14xf32>, vector<14x168xf32>, vector<7x168xf32> -> vector<7x168xf32>
    %c4_79 = arith.constant 4 : index
    %c0_80 = arith.constant 0 : index
    %c0_81 = arith.constant 0 : index
    %78 = vector.load %arg6[%c4_79, %c0_80, %c0_81] : memref<5x168x84xf32, #tpu.memory_space<vmem>>, vector<1x168x84xf32>
    %79 = vector.shape_cast %78 : vector<1x168x84xf32> to vector<168x84xf32>
    %cst_82 = arith.constant dense<0.000000e+00> : vector<7x84xf32>
    %80 = tpu.matmul %77, %79, %cst_82 {dimension_numbers = #tpu.dot_dimension_numbers<[1], [0], [0], [1], [0, 0, 1, 1], [], []>} : vector<7x168xf32>, vector<168x84xf32>, vector<7x84xf32> -> vector<7x84xf32>
    %81 = arith.addf %74, %80 : vector<7x84xf32>
    %c0_83 = arith.constant 0 : index
    %c0_84 = arith.constant 0 : index
    %82 = vector.load %arg7[%c0_83, %c0_84] : memref<1x84xf32, #tpu.memory_space<vmem>>, vector<1x84xf32>
    %83 = vector.broadcast %82 : vector<1x84xf32> to vector<7x84xf32>
    %84 = arith.addf %81, %83 : vector<7x84xf32>
    %cst_85 = arith.constant 0.666666686 : f32
    %85 = vector.broadcast %cst_85 : f32 to vector<7x84xf32>
    %86 = arith.mulf %85, %84 : vector<7x84xf32>
    %87 = math.tanh %86 : vector<7x84xf32>
    %cst_86 = arith.constant 1.716000e+00 : f32
    %88 = vector.broadcast %cst_86 : f32 to vector<7x84xf32>
    %89 = arith.mulf %88, %87 : vector<7x84xf32>
    %cst_87 = arith.constant 0.000000e+00 : f32
    %90 = vector.broadcast %cst_87 : f32 to vector<1x30xf32>
    %91 = vector.extract_strided_slice %89 {offsets = [0, 0], sizes = [1, 84], strides = [1, 1]} : vector<7x84xf32> to vector<1x84xf32>
    %c0_88 = arith.constant 0 : index
    %c0_89 = arith.constant 0 : index
    %c0_90 = arith.constant 0 : index
    %92 = vector.load %arg8[%c0_88, %c0_89, %c0_90] : memref<7x84x30xf32, #tpu.memory_space<vmem>>, vector<1x84x30xf32>
    %93 = vector.shape_cast %92 : vector<1x84x30xf32> to vector<84x30xf32>
    %cst_91 = arith.constant dense<0.000000e+00> : vector<1x30xf32>
    %94 = tpu.matmul %91, %93, %cst_91 {dimension_numbers = #tpu.dot_dimension_numbers<[1], [0], [0], [1], [0, 0, 1, 1], [], []>} : vector<1x84xf32>, vector<84x30xf32>, vector<1x30xf32> -> vector<1x30xf32>
    %95 = arith.addf %90, %94 : vector<1x30xf32>
    %96 = vector.extract_strided_slice %89 {offsets = [1, 0], sizes = [1, 84], strides = [1, 1]} : vector<7x84xf32> to vector<1x84xf32>
    %c1_92 = arith.constant 1 : index
    %c0_93 = arith.constant 0 : index
    %c0_94 = arith.constant 0 : index
    %97 = vector.load %arg8[%c1_92, %c0_93, %c0_94] : memref<7x84x30xf32, #tpu.memory_space<vmem>>, vector<1x84x30xf32>
    %98 = vector.shape_cast %97 : vector<1x84x30xf32> to vector<84x30xf32>
    %cst_95 = arith.constant dense<0.000000e+00> : vector<1x30xf32>
    %99 = tpu.matmul %96, %98, %cst_95 {dimension_numbers = #tpu.dot_dimension_numbers<[1], [0], [0], [1], [0, 0, 1, 1], [], []>} : vector<1x84xf32>, vector<84x30xf32>, vector<1x30xf32> -> vector<1x30xf32>
    %100 = arith.addf %95, %99 : vector<1x30xf32>
    %101 = vector.extract_strided_slice %89 {offsets = [2, 0], sizes = [1, 84], strides = [1, 1]} : vector<7x84xf32> to vector<1x84xf32>
    %c2_96 = arith.constant 2 : index
    %c0_97 = arith.constant 0 : index
    %c0_98 = arith.constant 0 : index
    %102 = vector.load %arg8[%c2_96, %c0_97, %c0_98] : memref<7x84x30xf32, #tpu.memory_space<vmem>>, vector<1x84x30xf32>
    %103 = vector.shape_cast %102 : vector<1x84x30xf32> to vector<84x30xf32>
    %cst_99 = arith.constant dense<0.000000e+00> : vector<1x30xf32>
    %104 = tpu.matmul %101, %103, %cst_99 {dimension_numbers = #tpu.dot_dimension_numbers<[1], [0], [0], [1], [0, 0, 1, 1], [], []>} : vector<1x84xf32>, vector<84x30xf32>, vector<1x30xf32> -> vector<1x30xf32>
    %105 = arith.addf %100, %104 : vector<1x30xf32>
    %106 = vector.extract_strided_slice %89 {offsets = [3, 0], sizes = [1, 84], strides = [1, 1]} : vector<7x84xf32> to vector<1x84xf32>
    %c3_100 = arith.constant 3 : index
    %c0_101 = arith.constant 0 : index
    %c0_102 = arith.constant 0 : index
    %107 = vector.load %arg8[%c3_100, %c0_101, %c0_102] : memref<7x84x30xf32, #tpu.memory_space<vmem>>, vector<1x84x30xf32>
    %108 = vector.shape_cast %107 : vector<1x84x30xf32> to vector<84x30xf32>
    %cst_103 = arith.constant dense<0.000000e+00> : vector<1x30xf32>
    %109 = tpu.matmul %106, %108, %cst_103 {dimension_numbers = #tpu.dot_dimension_numbers<[1], [0], [0], [1], [0, 0, 1, 1], [], []>} : vector<1x84xf32>, vector<84x30xf32>, vector<1x30xf32> -> vector<1x30xf32>
    %110 = arith.addf %105, %109 : vector<1x30xf32>
    %111 = vector.extract_strided_slice %89 {offsets = [4, 0], sizes = [1, 84], strides = [1, 1]} : vector<7x84xf32> to vector<1x84xf32>
    %c4_104 = arith.constant 4 : index
    %c0_105 = arith.constant 0 : index
    %c0_106 = arith.constant 0 : index
    %112 = vector.load %arg8[%c4_104, %c0_105, %c0_106] : memref<7x84x30xf32, #tpu.memory_space<vmem>>, vector<1x84x30xf32>
    %113 = vector.shape_cast %112 : vector<1x84x30xf32> to vector<84x30xf32>
    %cst_107 = arith.constant dense<0.000000e+00> : vector<1x30xf32>
    %114 = tpu.matmul %111, %113, %cst_107 {dimension_numbers = #tpu.dot_dimension_numbers<[1], [0], [0], [1], [0, 0, 1, 1], [], []>} : vector<1x84xf32>, vector<84x30xf32>, vector<1x30xf32> -> vector<1x30xf32>
    %115 = arith.addf %110, %114 : vector<1x30xf32>
    %116 = vector.extract_strided_slice %89 {offsets = [5, 0], sizes = [1, 84], strides = [1, 1]} : vector<7x84xf32> to vector<1x84xf32>
    %c5 = arith.constant 5 : index
    %c0_108 = arith.constant 0 : index
    %c0_109 = arith.constant 0 : index
    %117 = vector.load %arg8[%c5, %c0_108, %c0_109] : memref<7x84x30xf32, #tpu.memory_space<vmem>>, vector<1x84x30xf32>
    %118 = vector.shape_cast %117 : vector<1x84x30xf32> to vector<84x30xf32>
    %cst_110 = arith.constant dense<0.000000e+00> : vector<1x30xf32>
    %119 = tpu.matmul %116, %118, %cst_110 {dimension_numbers = #tpu.dot_dimension_numbers<[1], [0], [0], [1], [0, 0, 1, 1], [], []>} : vector<1x84xf32>, vector<84x30xf32>, vector<1x30xf32> -> vector<1x30xf32>
    %120 = arith.addf %115, %119 : vector<1x30xf32>
    %121 = vector.extract_strided_slice %89 {offsets = [6, 0], sizes = [1, 84], strides = [1, 1]} : vector<7x84xf32> to vector<1x84xf32>
    %c6 = arith.constant 6 : index
    %c0_111 = arith.constant 0 : index
    %c0_112 = arith.constant 0 : index
    %122 = vector.load %arg8[%c6, %c0_111, %c0_112] : memref<7x84x30xf32, #tpu.memory_space<vmem>>, vector<1x84x30xf32>
    %123 = vector.shape_cast %122 : vector<1x84x30xf32> to vector<84x30xf32>
    %cst_113 = arith.constant dense<0.000000e+00> : vector<1x30xf32>
    %124 = tpu.matmul %121, %123, %cst_113 {dimension_numbers = #tpu.dot_dimension_numbers<[1], [0], [0], [1], [0, 0, 1, 1], [], []>} : vector<1x84xf32>, vector<84x30xf32>, vector<1x30xf32> -> vector<1x30xf32>
    %125 = arith.addf %120, %124 : vector<1x30xf32>
    %c0_114 = arith.constant 0 : index
    %c0_115 = arith.constant 0 : index
    %126 = vector.load %arg9[%c0_114, %c0_115] : memref<1x30xf32, #tpu.memory_space<vmem>>, vector<1x30xf32>
    %127 = arith.addf %125, %126 : vector<1x30xf32>
    %cst_116 = arith.constant 0.666666686 : f32
    %128 = vector.broadcast %cst_116 : f32 to vector<1x30xf32>
    %129 = arith.mulf %128, %127 : vector<1x30xf32>
    %130 = math.tanh %129 : vector<1x30xf32>
    %cst_117 = arith.constant 1.716000e+00 : f32
    %131 = vector.broadcast %cst_117 : f32 to vector<1x30xf32>
    %132 = arith.mulf %131, %130 : vector<1x30xf32>
    %c0_118 = arith.constant 0 : index
    %c0_119 = arith.constant 0 : index
    %133 = vector.load %arg10[%c0_118, %c0_119] : memref<30x10xf32, #tpu.memory_space<vmem>>, vector<30x10xf32>
    %cst_120 = arith.constant dense<0.000000e+00> : vector<1x10xf32>
    %134 = tpu.matmul %132, %133, %cst_120 {dimension_numbers = #tpu.dot_dimension_numbers<[1], [0], [0], [1], [0, 0, 1, 1], [], []>} : vector<1x30xf32>, vector<30x10xf32>, vector<1x10xf32> -> vector<1x10xf32>
    %c0_121 = arith.constant 0 : index
    %c0_122 = arith.constant 0 : index
    %135 = vector.load %arg11[%c0_121, %c0_122] : memref<1x10xf32, #tpu.memory_space<vmem>>, vector<1x10xf32>
    %136 = arith.addf %134, %135 : vector<1x10xf32>
    %cst_123 = arith.constant 0.666666686 : f32
    %137 = vector.broadcast %cst_123 : f32 to vector<1x10xf32>
    %138 = arith.mulf %137, %136 : vector<1x10xf32>
    %139 = math.tanh %138 : vector<1x10xf32>
    %cst_124 = arith.constant 1.716000e+00 : f32
    %140 = vector.broadcast %cst_124 : f32 to vector<1x10xf32>
    %141 = arith.mulf %140, %139 : vector<1x10xf32>
    %c0_125 = arith.constant 0 : index
    %c0_126 = arith.constant 0 : index
    %c0_127 = arith.constant 0 : index
    %142 = vector.load %arg12[%c0_125, %c0_126, %c0_127] : memref<1x1x10xf32, #tpu.memory_space<vmem>>, vector<1x1x10xf32>
    %143 = vector.shape_cast %142 : vector<1x1x10xf32> to vector<1x10xf32>
    %144 = vector.shape_cast %141 : vector<1x10xf32> to vector<1x1x10xf32>
    tpu.vector_store %arg12[%c0_125, %c0_126, %c0_127], %144 {strides = array<i32>} : memref<1x1x10xf32, #tpu.memory_space<vmem>>, vector<1x1x10xf32>,
    return
  }
  func.func @transform_0(%arg0: i32) -> (i32, i32, i32) {
    %c0_i32 = arith.constant 0 : i32
    %c0_i32_0 = arith.constant 0 : i32
    %c0_i32_1 = arith.constant 0 : i32
    return %arg0, %c0_i32, %c0_i32_0 : i32, i32, i32
  }
  func.func @transform_1(%arg0: i32) -> (i32, i32, i32) {
    %c0_i32 = arith.constant 0 : i32
    %c0_i32_0 = arith.constant 0 : i32
    %c0_i32_1 = arith.constant 0 : i32
    %c0_i32_2 = arith.constant 0 : i32
    return %c0_i32, %c0_i32_0, %c0_i32_1 : i32, i32, i32
  }
  func.func @transform_2(%arg0: i32) -> (i32, i32, i32) {
    %c0_i32 = arith.constant 0 : i32
    %c0_i32_0 = arith.constant 0 : i32
    %c0_i32_1 = arith.constant 0 : i32
    %c0_i32_2 = arith.constant 0 : i32
    return %c0_i32, %c0_i32_0, %c0_i32_1 : i32, i32, i32
  }
  func.func @transform_3(%arg0: i32) -> (i32, i32) {
    %c0_i32 = arith.constant 0 : i32
    %c0_i32_0 = arith.constant 0 : i32
    %c0_i32_1 = arith.constant 0 : i32
    return %c0_i32, %c0_i32_0 : i32, i32
  }
  func.func @transform_4(%arg0: i32) -> (i32, i32, i32) {
    %c0_i32 = arith.constant 0 : i32
    %c0_i32_0 = arith.constant 0 : i32
    %c0_i32_1 = arith.constant 0 : i32
    %c0_i32_2 = arith.constant 0 : i32
    return %c0_i32, %c0_i32_0, %c0_i32_1 : i32, i32, i32
  }
  func.func @transform_5(%arg0: i32) -> (i32, i32, i32) {
    %c0_i32 = arith.constant 0 : i32
    %c0_i32_0 = arith.constant 0 : i32
    %c0_i32_1 = arith.constant 0 : i32
    %c0_i32_2 = arith.constant 0 : i32
    return %c0_i32, %c0_i32_0, %c0_i32_1 : i32, i32, i32
  }
  func.func @transform_6(%arg0: i32) -> (i32, i32) {
    %c0_i32 = arith.constant 0 : i32
    %c0_i32_0 = arith.constant 0 : i32
    %c0_i32_1 = arith.constant 0 : i32
    return %c0_i32, %c0_i32_0 : i32, i32
  }
  func.func @transform_7(%arg0: i32) -> (i32, i32, i32) {
    %c0_i32 = arith.constant 0 : i32
    %c0_i32_0 = arith.constant 0 : i32
    %c0_i32_1 = arith.constant 0 : i32
    %c0_i32_2 = arith.constant 0 : i32
    return %c0_i32, %c0_i32_0, %c0_i32_1 : i32, i32, i32
  }
  func.func @transform_8(%arg0: i32) -> (i32, i32) {
    %c0_i32 = arith.constant 0 : i32
    %c0_i32_0 = arith.constant 0 : i32
    %c0_i32_1 = arith.constant 0 : i32
    return %c0_i32, %c0_i32_0 : i32, i32
  }
  func.func @transform_9(%arg0: i32) -> (i32, i32) {
    %c0_i32 = arith.constant 0 : i32
    %c0_i32_0 = arith.constant 0 : i32
    %c0_i32_1 = arith.constant 0 : i32
    return %c0_i32, %c0_i32_0 : i32, i32
  }
  func.func @transform_10(%arg0: i32) -> (i32, i32) {
    %c0_i32 = arith.constant 0 : i32
    %c0_i32_0 = arith.constant 0 : i32
    %c0_i32_1 = arith.constant 0 : i32
    return %c0_i32, %c0_i32_0 : i32, i32
  }
  func.func @transform_11(%arg0: i32) -> (i32, i32, i32) {
    %c0_i32 = arith.constant 0 : i32
    %c0_i32_0 = arith.constant 0 : i32
    %c0_i32_1 = arith.constant 0 : i32
    return %arg0, %c0_i32, %c0_i32_0 : i32, i32, i32
  }
}

</mosaic_0001>

<llo_original>
// kernel: model_forward.1
$region0: #{model_forward.1}
  #allocation0 [shape = 'u32[]', space=smem, size = 0x4, offset = 0x4, fixed_abs, tag = 'smem constant byte address 0x4 - core index']
  #allocation1 [shape = 'u32[144,128]{1,0:T(1,128)}', space=vmem, size = 0x12000, scoped, tag = 'internal scratch']
  %s0 = inlined_call_operand.vmem [shape: f32[2,32,32], index: 0, kind: input, shape index: {}]
  %s1 = inlined_call_operand.vmem [shape: f32[5,14,32], index: 1, kind: input, shape index: {}]
  %s2 = inlined_call_operand.vmem [shape: f32[5,32,168], index: 2, kind: input, shape index: {}]
  %s3 = inlined_call_operand.vmem [shape: f32[1,168], index: 3, kind: input, shape index: {}]
  %s4 = inlined_call_operand.vmem [shape: f32[5,7,14], index: 4, kind: input, shape index: {}]
  %s5 = inlined_call_operand.vmem [shape: f32[5,168,84], index: 5, kind: input, shape index: {}]
  %s6 = inlined_call_operand.vmem [shape: f32[1,84], index: 6, kind: input, shape index: {}]
  %s7 = inlined_call_operand.vmem [shape: f32[7,84,30], index: 7, kind: input, shape index: {}]
  %s8 = inlined_call_operand.vmem [shape: f32[1,30], index: 8, kind: input, shape index: {}]
  %s9 = inlined_call_operand.vmem [shape: f32[30,10], index: 9, kind: input, shape index: {}]
  %s10 = inlined_call_operand.vmem [shape: f32[1,10], index: 10, kind: input, shape index: {}]
  %s11 = inlined_call_operand.hbm [shape: f32[2,1,10], index: 11, kind: output, shape index: {}]
  %s12 = sld [smem:[#allocation0]]
  $region77: #{model_forward.1} parent=0
    _
  %s14 = ssub.s32 1, %s12
  %s15 = scalar_select 0, %s14, %s12
  $region1: #{model_forward.1} parent=0
    #allocation2 [shape = 'u8[1024]{0}', space=vmem, size = 0x400, scoped, tag = 'output window, operand 0']
    #allocation3 [shape = 's32[2]{0}', space=sflag, size = 0x8, scoped, tag = 'scoped memory for model_forward.1']
    %16 = vsyncpa [#allocation3], 0
    %s17 = scalar_lea.sflag [#allocation3], 1
    %18 = vsyncpa %s17, 0
    loop: start=0, step=1, limit=4
    $region2: #{model_forward.1} parent=1 // loop_pre_header
      _
    $region3: #{model_forward.1} parent=1 // loop_header
      %s20 = sphi 0, %s24
      %p21 = scmp.ge.s32.totalorder %s20, 4
      %s30 = sphi 0, %s32
      %s33 = sphi 0, %s30
      %s34 = sphi 0, %s33
      %s50 = sphi 0, %s34
      %s54 = sphi 0, %s54
      %s56 = sphi 0, %s54
      %s57 = sphi 0, %s56
      %s71 = sphi 0, %s57
      %s75 = sphi 0, %s75
      %s77 = sphi 0, %s75
      %s78 = sphi 0, %s77
      %s92 = sphi 0, %s78
      %s96 = sphi 0, %s96
      %s98 = sphi 0, %s96
      %s99 = sphi 0, %s98
      %s113 = sphi 0, %s99
      %s117 = sphi 0, %s117
      %s119 = sphi 0, %s117
      %s120 = sphi 0, %s119
      %s134 = sphi 0, %s120
      %s138 = sphi 0, %s138
      %s140 = sphi 0, %s138
      %s141 = sphi 0, %s140
      %s155 = sphi 0, %s141
      %s159 = sphi 0, %s159
      %s161 = sphi 0, %s159
      %s162 = sphi 0, %s161
      %s176 = sphi 0, %s162
      %s180 = sphi 0, %s180
      %s182 = sphi 0, %s180
      %s183 = sphi 0, %s182
      %s197 = sphi 0, %s183
      %s201 = sphi 0, %s201
      %s203 = sphi 0, %s201
      %s204 = sphi 0, %s203
      %s218 = sphi 0, %s204
      %s222 = sphi 0, %s222
      %s224 = sphi 0, %s222
      %s225 = sphi 0, %s224
      %s239 = sphi 0, %s225
      %s243 = sphi 0, %s243
      %s245 = sphi 0, %s243
      %s246 = sphi 0, %s245
      %s260 = sphi 0, %s246
      %s266 = sphi 0, %s268
      %s269 = sphi 0, %s266
      %s270 = sphi 0, %s269
      %s286 = sphi 0, %s270
    $region4: #{model_forward.1} parent=1 // loop_header_branch
      %23 = sbr.rel (%p21) target = $region8
    $region5: #{model_forward.1} parent=1 // loop_body
      %s25 = ssub.s32 %s20, 1
      %s26 = ssub.s32 %s20, 2
      %s27 = sadd.s32 %s20, 1
      %s28 = ssub.s32 %s20, %s27
      %p29 = scmp.eq.s32.totalorder %s28, 0
      %s31 = sadd.s32 %s30, 1
      %s32 = scalar_select %p29, %s30, %s31
      %p35 = pneg %p29
      %p36 = scmp.eq.s32.totalorder %s20, 1
      %p37 = por %p35, %p36
      %p38 = scmp.ne.s32.totalorder %s30, %s33
      %p39 = scmp.eq.s32.totalorder %s20, 0
      %p40 = por %p38, %p39
      %p41 = scmp.ne.s32.totalorder %s30, %s33
      %p42 = scmp.eq.s32.totalorder %s25, 1
      %p43 = por %p41, %p42
      %p44 = scmp.ne.s32.totalorder %s33, %s34
      %p45 = scmp.eq.s32.totalorder %s25, 0
      %p46 = por %p44, %p45
      %p47 = scmp.ne.s32.totalorder %s33, %s34
      %p48 = scmp.eq.s32.totalorder %s26, 1
      %p49 = por %p47, %p48
      %p51 = scmp.ne.s32.totalorder %s34, %s50
      %p52 = scmp.eq.s32.totalorder %s26, 0
      %p53 = por %p51, %p52
      %s55 = sadd.s32 %s54, 1
      %p58 = scmp.eq.s32.totalorder %s20, 1
      %p59 = scmp.ne.s32.totalorder %s54, %s56
      %p60 = scmp.eq.s32.totalorder %s20, 0
      %p61 = por %p59, %p60
      %p62 = scmp.ne.s32.totalorder %s54, %s56
      %p63 = scmp.eq.s32.totalorder %s25, 1
      %p64 = por %p62, %p63
      %p65 = scmp.ne.s32.totalorder %s56, %s57
      %p66 = scmp.eq.s32.totalorder %s25, 0
      %p67 = por %p65, %p66
      %p68 = scmp.ne.s32.totalorder %s56, %s57
      %p69 = scmp.eq.s32.totalorder %s26, 1
      %p70 = por %p68, %p69
      %p72 = scmp.ne.s32.totalorder %s57, %s71
      %p73 = scmp.eq.s32.totalorder %s26, 0
      %p74 = por %p72, %p73
      %s76 = sadd.s32 %s75, 1
      %p79 = scmp.eq.s32.totalorder %s20, 1
      %p80 = scmp.ne.s32.totalorder %s75, %s77
      %p81 = scmp.eq.s32.totalorder %s20, 0
      %p82 = por %p80, %p81
      %p83 = scmp.ne.s32.totalorder %s75, %s77
      %p84 = scmp.eq.s32.totalorder %s25, 1
      %p85 = por %p83, %p84
      %p86 = scmp.ne.s32.totalorder %s77, %s78
      %p87 = scmp.eq.s32.totalorder %s25, 0
      %p88 = por %p86, %p87
      %p89 = scmp.ne.s32.totalorder %s77, %s78
      %p90 = scmp.eq.s32.totalorder %s26, 1
      %p91 = por %p89, %p90
      %p93 = scmp.ne.s32.totalorder %s78, %s92
      %p94 = scmp.eq.s32.totalorder %s26, 0
      %p95 = por %p93, %p94
      %s97 = sadd.s32 %s96, 1
      %p100 = scmp.eq.s32.totalorder %s20, 1
      %p101 = scmp.ne.s32.totalorder %s96, %s98
      %p102 = scmp.eq.s32.totalorder %s20, 0
      %p103 = por %p101, %p102
      %p104 = scmp.ne.s32.totalorder %s96, %s98
      %p105 = scmp.eq.s32.totalorder %s25, 1
      %p106 = por %p104, %p105
      %p107 = scmp.ne.s32.totalorder %s98, %s99
      %p108 = scmp.eq.s32.totalorder %s25, 0
      %p109 = por %p107, %p108
      %p110 = scmp.ne.s32.totalorder %s98, %s99
      %p111 = scmp.eq.s32.totalorder %s26, 1
      %p112 = por %p110, %p111
      %p114 = scmp.ne.s32.totalorder %s99, %s113
      %p115 = scmp.eq.s32.totalorder %s26, 0
      %p116 = por %p114, %p115
      %s118 = sadd.s32 %s117, 1
      %p121 = scmp.eq.s32.totalorder %s20, 1
      %p122 = scmp.ne.s32.totalorder %s117, %s119
      %p123 = scmp.eq.s32.totalorder %s20, 0
      %p124 = por %p122, %p123
      %p125 = scmp.ne.s32.totalorder %s117, %s119
      %p126 = scmp.eq.s32.totalorder %s25, 1
      %p127 = por %p125, %p126
      %p128 = scmp.ne.s32.totalorder %s119, %s120
      %p129 = scmp.eq.s32.totalorder %s25, 0
      %p130 = por %p128, %p129
      %p131 = scmp.ne.s32.totalorder %s119, %s120
      %p132 = scmp.eq.s32.totalorder %s26, 1
      %p133 = por %p131, %p132
      %p135 = scmp.ne.s32.totalorder %s120, %s134
      %p136 = scmp.eq.s32.totalorder %s26, 0
      %p137 = por %p135, %p136
      %s139 = sadd.s32 %s138, 1
      %p142 = scmp.eq.s32.totalorder %s20, 1
      %p143 = scmp.ne.s32.totalorder %s138, %s140
      %p144 = scmp.eq.s32.totalorder %s20, 0
      %p145 = por %p143, %p144
      %p146 = scmp.ne.s32.totalorder %s138, %s140
      %p147 = scmp.eq.s32.totalorder %s25, 1
      %p148 = por %p146, %p147
      %p149 = scmp.ne.s32.totalorder %s140, %s141
      %p150 = scmp.eq.s32.totalorder %s25, 0
      %p151 = por %p149, %p150
      %p152 = scmp.ne.s32.totalorder %s140, %s141
      %p153 = scmp.eq.s32.totalorder %s26, 1
      %p154 = por %p152, %p153
      %p156 = scmp.ne.s32.totalorder %s141, %s155
      %p157 = scmp.eq.s32.totalorder %s26, 0
      %p158 = por %p156, %p157
      %s160 = sadd.s32 %s159, 1
      %p163 = scmp.eq.s32.totalorder %s20, 1
      %p164 = scmp.ne.s32.totalorder %s159, %s161
      %p165 = scmp.eq.s32.totalorder %s20, 0
      %p166 = por %p164, %p165
      %p167 = scmp.ne.s32.totalorder %s159, %s161
      %p168 = scmp.eq.s32.totalorder %s25, 1
      %p169 = por %p167, %p168
      %p170 = scmp.ne.s32.totalorder %s161, %s162
      %p171 = scmp.eq.s32.totalorder %s25, 0
      %p172 = por %p170, %p171
      %p173 = scmp.ne.s32.totalorder %s161, %s162
      %p174 = scmp.eq.s32.totalorder %s26, 1
      %p175 = por %p173, %p174
      %p177 = scmp.ne.s32.totalorder %s162, %s176
      %p178 = scmp.eq.s32.totalorder %s26, 0
      %p179 = por %p177, %p178
      %s181 = sadd.s32 %s180, 1
      %p184 = scmp.eq.s32.totalorder %s20, 1
      %p185 = scmp.ne.s32.totalorder %s180, %s182
      %p186 = scmp.eq.s32.totalorder %s20, 0
      %p187 = por %p185, %p186
      %p188 = scmp.ne.s32.totalorder %s180, %s182
      %p189 = scmp.eq.s32.totalorder %s25, 1
      %p190 = por %p188, %p189
      %p191 = scmp.ne.s32.totalorder %s182, %s183
      %p192 = scmp.eq.s32.totalorder %s25, 0
      %p193 = por %p191, %p192
      %p194 = scmp.ne.s32.totalorder %s182, %s183
      %p195 = scmp.eq.s32.totalorder %s26, 1
      %p196 = por %p194, %p195
      %p198 = scmp.ne.s32.totalorder %s183, %s197
      %p199 = scmp.eq.s32.totalorder %s26, 0
      %p200 = por %p198, %p199
      %s202 = sadd.s32 %s201, 1
      %p205 = scmp.eq.s32.totalorder %s20, 1
      %p206 = scmp.ne.s32.totalorder %s201, %s203
      %p207 = scmp.eq.s32.totalorder %s20, 0
      %p208 = por %p206, %p207
      %p209 = scmp.ne.s32.totalorder %s201, %s203
      %p210 = scmp.eq.s32.totalorder %s25, 1
      %p211 = por %p209, %p210
      %p212 = scmp.ne.s32.totalorder %s203, %s204
      %p213 = scmp.eq.s32.totalorder %s25, 0
      %p214 = por %p212, %p213
      %p215 = scmp.ne.s32.totalorder %s203, %s204
      %p216 = scmp.eq.s32.totalorder %s26, 1
      %p217 = por %p215, %p216
      %p219 = scmp.ne.s32.totalorder %s204, %s218
      %p220 = scmp.eq.s32.totalorder %s26, 0
      %p221 = por %p219, %p220
      %s223 = sadd.s32 %s222, 1
      %p226 = scmp.eq.s32.totalorder %s20, 1
      %p227 = scmp.ne.s32.totalorder %s222, %s224
      %p228 = scmp.eq.s32.totalorder %s20, 0
      %p229 = por %p227, %p228
      %p230 = scmp.ne.s32.totalorder %s222, %s224
      %p231 = scmp.eq.s32.totalorder %s25, 1
      %p232 = por %p230, %p231
      %p233 = scmp.ne.s32.totalorder %s224, %s225
      %p234 = scmp.eq.s32.totalorder %s25, 0
      %p235 = por %p233, %p234
      %p236 = scmp.ne.s32.totalorder %s224, %s225
      %p237 = scmp.eq.s32.totalorder %s26, 1
      %p238 = por %p236, %p237
      %p240 = scmp.ne.s32.totalorder %s225, %s239
      %p241 = scmp.eq.s32.totalorder %s26, 0
      %p242 = por %p240, %p241
      %s244 = sadd.s32 %s243, 1
      %p247 = scmp.eq.s32.totalorder %s20, 1
      %p248 = scmp.ne.s32.totalorder %s243, %s245
      %p249 = scmp.eq.s32.totalorder %s20, 0
      %p250 = por %p248, %p249
      %p251 = scmp.ne.s32.totalorder %s243, %s245
      %p252 = scmp.eq.s32.totalorder %s25, 1
      %p253 = por %p251, %p252
      %p254 = scmp.ne.s32.totalorder %s245, %s246
      %p255 = scmp.eq.s32.totalorder %s25, 0
      %p256 = por %p254, %p255
      %p257 = scmp.ne.s32.totalorder %s245, %s246
      %p258 = scmp.eq.s32.totalorder %s26, 1
      %p259 = por %p257, %p258
      %p261 = scmp.ne.s32.totalorder %s246, %s260
      %p262 = scmp.eq.s32.totalorder %s26, 0
      %p263 = por %p261, %p262
      %s264 = ssub.s32 %s20, %s27
      %p265 = scmp.eq.s32.totalorder %s264, 0
      %s267 = sadd.s32 %s266, 1
      %s268 = scalar_select %p265, %s266, %s267
      %p271 = pneg %p265
      %p272 = scmp.eq.s32.totalorder %s20, 1
      %p273 = por %p271, %p272
      %p274 = scmp.ne.s32.totalorder %s266, %s269
      %p275 = scmp.eq.s32.totalorder %s20, 0
      %p276 = por %p274, %p275
      %p277 = scmp.ne.s32.totalorder %s266, %s269
      %p278 = scmp.eq.s32.totalorder %s25, 1
      %p279 = por %p277, %p278
      %p280 = scmp.ne.s32.totalorder %s269, %s270
      %p281 = scmp.eq.s32.totalorder %s25, 0
      %p282 = por %p280, %p281
      %p283 = scmp.ne.s32.totalorder %s269, %s270
      %p284 = scmp.eq.s32.totalorder %s26, 1
      %p285 = por %p283, %p284
      %p287 = scmp.ne.s32.totalorder %s270, %s286
      %p288 = scmp.eq.s32.totalorder %s26, 0
      %p289 = por %p287, %p288
      %p290 = scmp.le.s32.totalorder 1, %s20
      %p291 = scmp.lt.s32.totalorder %s20, 3
      %p292 = pnand %p290, %p291
      %p293 = pneg %p292
      // Predicated region
      $region9: #{model_forward.1} parent=5 // pred_check
        _
      $region10: #{model_forward.1} parent=5 // pred_check_branch
        %295 = sbr.rel (%p292) target = $region12
      $region11: #{model_forward.1} parent=5 // pred_region
        %s296 = ssub.s32 %s20, 1
        // Predicated region
        $region13: #{model_forward.1} parent=11 // pred_check
          %p297 = pneg %p67
        $region14: #{model_forward.1} parent=11 // pred_check_branch
          %299 = sbr.rel (%p297) target = $region16
        $region15: #{model_forward.1} parent=11 // pred_region
          _
        $region16: #{model_forward.1} parent=11 // pred_fallthru
          _
        // Predicated region
        $region17: #{model_forward.1} parent=11 // pred_check
          %p300 = pneg %p88
        $region18: #{model_forward.1} parent=11 // pred_check_branch
          %302 = sbr.rel (%p300) target = $region20
        $region19: #{model_forward.1} parent=11 // pred_region
          _
        $region20: #{model_forward.1} parent=11 // pred_fallthru
          _
        // Predicated region
        $region21: #{model_forward.1} parent=11 // pred_check
          %p303 = pneg %p109
        $region22: #{model_forward.1} parent=11 // pred_check_branch
          %305 = sbr.rel (%p303) target = $region24
        $region23: #{model_forward.1} parent=11 // pred_region
          _
        $region24: #{model_forward.1} parent=11 // pred_fallthru
          _
        // Predicated region
        $region25: #{model_forward.1} parent=11 // pred_check
          %p306 = pneg %p130
        $region26: #{model_forward.1} parent=11 // pred_check_branch
          %308 = sbr.rel (%p306) target = $region28
        $region27: #{model_forward.1} parent=11 // pred_region
          _
        $region28: #{model_forward.1} parent=11 // pred_fallthru
          _
        // Predicated region
        $region29: #{model_forward.1} parent=11 // pred_check
          %p309 = pneg %p151
        $region30: #{model_forward.1} parent=11 // pred_check_branch
          %311 = sbr.rel (%p309) target = $region32
        $region31: #{model_forward.1} parent=11 // pred_region
          _
        $region32: #{model_forward.1} parent=11 // pred_fallthru
          _
        // Predicated region
        $region33: #{model_forward.1} parent=11 // pred_check
          %p312 = pneg %p172
        $region34: #{model_forward.1} parent=11 // pred_check_branch
          %314 = sbr.rel (%p312) target = $region36
        $region35: #{model_forward.1} parent=11 // pred_region
          _
        $region36: #{model_forward.1} parent=11 // pred_fallthru
          _
        // Predicated region
        $region37: #{model_forward.1} parent=11 // pred_check
          %p315 = pneg %p193
        $region38: #{model_forward.1} parent=11 // pred_check_branch
          %317 = sbr.rel (%p315) target = $region40
        $region39: #{model_forward.1} parent=11 // pred_region
          _
        $region40: #{model_forward.1} parent=11 // pred_fallthru
          _
        // Predicated region
        $region41: #{model_forward.1} parent=11 // pred_check
          %p318 = pneg %p214
        $region42: #{model_forward.1} parent=11 // pred_check_branch
          %320 = sbr.rel (%p318) target = $region44
        $region43: #{model_forward.1} parent=11 // pred_region
          _
        $region44: #{model_forward.1} parent=11 // pred_fallthru
          _
        // Predicated region
        $region45: #{model_forward.1} parent=11 // pred_check
          %p321 = pneg %p235
        $region46: #{model_forward.1} parent=11 // pred_check_branch
          %323 = sbr.rel (%p321) target = $region48
        $region47: #{model_forward.1} parent=11 // pred_region
          _
        $region48: #{model_forward.1} parent=11 // pred_fallthru
          _
        // Predicated region
        $region49: #{model_forward.1} parent=11 // pred_check
          %p324 = pneg %p256
        $region50: #{model_forward.1} parent=11 // pred_check_branch
          %326 = sbr.rel (%p324) target = $region52
        $region51: #{model_forward.1} parent=11 // pred_region
          _
        $region52: #{model_forward.1} parent=11 // pred_fallthru
          _
      $region12: #{model_forward.1} parent=5 // pred_fallthru
        _
      %p327 = scmp.lt.s32.totalorder %s20, 2
      // Predicated region
      $region53: #{model_forward.1} parent=5 // pred_check
        %p328 = pneg %p327
      $region54: #{model_forward.1} parent=5 // pred_check_branch
        %330 = sbr.rel (%p328) target = $region56
      $region55: #{model_forward.1} parent=5 // pred_region
        // Predicated region
        $region57: #{model_forward.1} parent=55 // pred_check
          %p331 = pneg %p40
        $region58: #{model_forward.1} parent=55 // pred_check_branch
          %333 = sbr.rel (%p331) target = $region60
        $region59: #{model_forward.1} parent=55 // pred_region
          %p334 = scmp.lt.s32.totalorder %s20, 1
          %s335 = scalar_select %p334, %s20, 1
          %s336 = smul.addr %s335, 4
          %s337 = smul.addr %s336, 8
          %s338 = scalar_lea.vmem %s0, %s337
        $region60: #{model_forward.1} parent=55 // pred_fallthru
          _
      $region56: #{model_forward.1} parent=5 // pred_fallthru
        _
      %p339 = scmp.le.s32.totalorder 1, %s20
      %p340 = scmp.lt.s32.totalorder %s20, 3
      %p341 = pnand %p339, %p340
      %p342 = pneg %p341
      // Predicated region
      $region61: #{model_forward.1} parent=5 // pred_check
        _
      $region62: #{model_forward.1} parent=5 // pred_check_branch
        %344 = sbr.rel (%p341) target = $region64
      $region63: #{model_forward.1} parent=5 // pred_region
        %s345 = ssub.s32 %s20, 1
        %p346 = scmp.lt.s32.totalorder %s25, 1
        %s347 = scalar_select %p346, %s25, 1
        %s348 = smul.addr %s347, 4
        %s349 = smul.addr %s348, 8
        %s350 = scalar_lea.vmem %s0, %s349
        %p351 = pneg %p46
        %p352 = pneg %p43
        %p353 = pneg %p67
        %p354 = pneg %p64
        %p355 = pneg %p88
        %p356 = pneg %p85
        %p357 = pneg %p109
        %p358 = pneg %p106
        %p359 = pneg %p130
        %p360 = pneg %p127
        %p361 = pneg %p151
        %p362 = pneg %p148
        %p363 = pneg %p172
        %p364 = pneg %p169
        %p365 = pneg %p193
        %p366 = pneg %p190
        %p367 = pneg %p214
        %p368 = pneg %p211
        %p369 = pneg %p235
        %p370 = pneg %p232
        %p371 = pneg %p256
        %p372 = pneg %p253
        %p373 = pneg %p282
        %p374 = pneg %p279
        %s375 = sand.u32 %s269, 1
        %s376 = scalar_lea.sflag [#allocation3], %s375
        %s377 = sand.u32 %s269, 1
        %s378 = scalar_lea.vmem [#allocation2], %s377
        %p379 = scmp.lt.s32.totalorder %s25, 1
        %s380 = scalar_select %p379, %s25, 1
        %s381 = smul.addr %s380, 4
        %s382 = smul.addr %s381, 8
        %s383 = scalar_lea.vmem %s0, %s382
        %v384 = vld [vmem:[%s383] sm:$0xff]
        %v385 = vld [vmem:[%s383 + $0x8] sm:$0xff]
        %v386 = vld [vmem:[%s383 + $0x10] sm:$0xff]
        %v387 = vld [vmem:[%s383 + $0x18] sm:$0xff]
        %v388 = vld [vmem:[%s1] sm:$0xff]
        %v389 = vld [vmem:[%s1 + $0x8] sm:$0x3f]
        %vm390 = vcmask 261120
        %v392 = vsel %vm390, %v388, 0
        %v395 = vsel %vm390, %v389, 0
        %397 = vmatprep.subr.mxu0 0.0
        %398 = vmatpush1.msra.mxu0 %v384
        %399 = vmatprep.subr.mxu0 0.0
        %400 = vmatpush1.msra.mxu0 %v385
        %401 = vmatprep.subr.mxu0 0.0
        %402 = vmatpush1.msra.mxu0 %v386
        %403 = vmatprep.subr.mxu0 0.0
        %404 = vmatpush1.msra.mxu0 %v387
        %405 = vmatprep.subr.mxu0 0.0
        %406 = vmatpush1.msra.mxu0 0.0
        %407 = vmatprep.subr.mxu0 0.0
        %408 = vmatpush1.msra.mxu0 0.0
        %409 = vmatprep.subr.mxu0 0.0
        %410 = vmatpush1.msra.mxu0 0.0
        %411 = vmatprep.subr.mxu0 0.0
        %412 = vmatpush1.msra.mxu0 0.0
        %413 = vmatprep.subr.mxu0 0.0
        %414 = vmatpush1.msra.mxu0 0.0
        %415 = vmatprep.subr.mxu0 0.0
        %416 = vmatpush1.msra.mxu0 0.0
        %417 = vmatprep.subr.mxu0 0.0
        %418 = vmatpush1.msra.mxu0 0.0
        %419 = vmatprep.subr.mxu0 0.0
        %420 = vmatpush1.msra.mxu0 0.0
        %421 = vmatprep.subr.mxu0 0.0
        %422 = vmatpush1.msra.mxu0 0.0
        %423 = vmatprep.subr.mxu0 0.0
        %424 = vmatpush1.msra.mxu0 0.0
        %425 = vmatprep.subr.mxu0 0.0
        %426 = vmatpush1.msra.mxu0 0.0
        %427 = vmatprep.subr.mxu0 0.0
        %428 = vmatpush1.msra.mxu0 0.0
        %429 = vmatprep.subr.mxu0 0.0
        %430 = vmatpush1.msra.mxu0 0.0
        %431 = vmatprep.subr.mxu0 0.0
        %432 = vmatpush1.msra.mxu0 0.0
        %433 = vmatprep.subr.mxu0 0.0
        %434 = vmatpush1.msra.mxu0 0.0
        %435 = vmatprep.subr.mxu0 0.0
        %436 = vmatpush1.msra.mxu0 0.0
        %437 = vmatprep.subr.mxu0 0.0
        %438 = vmatpush1.msra.mxu0 0.0
        %439 = vmatprep.subr.mxu0 0.0
        %440 = vmatpush1.msra.mxu0 0.0
        %441 = vmatprep.subr.mxu0 0.0
        %442 = vmatpush1.msra.mxu0 0.0
        %443 = vmatprep.subr.mxu0 0.0
        %444 = vmatpush1.msra.mxu0 0.0
        %445 = vmatprep.subr.mxu0 0.0
        %446 = vmatpush1.msra.mxu0 0.0
        %447 = vmatprep.subr.mxu0 0.0
        %448 = vmatpush1.msra.mxu0 0.0
        %449 = vmatprep.subr.mxu0 0.0
        %450 = vmatpush1.msra.mxu0 0.0
        %451 = vmatprep.subr.mxu0 0.0
        %452 = vmatpush1.msra.mxu0 0.0
        %453 = vmatprep.subr.mxu0 0.0
        %454 = vmatpush1.msra.mxu0 0.0
        %455 = vmatprep.subr.mxu0 0.0
        %456 = vmatpush1.msra.mxu0 0.0
        %457 = vmatprep.subr.mxu0 0.0
        %458 = vmatpush1.msra.mxu0 0.0
        %459 = vmatprep.subr.mxu0 0.0
        %460 = vmatpush1.msra.mxu0 0.0
        %461 = vmatprep.mubr.f32.mxu0 0.0
        %462 = vmatmul.mubr.f32.gmra.mrb[0].mxu0 %v392
        %v463 = vpop.f32.mrb[0].mxu0
        %v464 = vadd.f32 0.0, %v463
        %v465 = vpop.f32.mrb[0].mxu0
        %466 = vmatprep.mubr.f32.mxu0 0.0
        %467 = vmatmul.mubr.f32.gmra.mrb[0].mxu0 %v395
        %v468 = vpop.f32.mrb[0].mxu0
        %v469 = vadd.f32 0.0, %v468
        %v470 = vpop.f32.mrb[0].mxu0
        %471 = vdwg.mxu0
        %v472 = vld [vmem:[%s2] sm:$0xff]
        %v473 = vld [vmem:[%s2 + $0x8] sm:$0xff]
        %v474 = vld [vmem:[%s2 + $0x10] sm:$0xff]
        %v475 = vld [vmem:[%s2 + $0x18] sm:$0xff]
        %v476 = vld [vmem:[%s2 + $0x20] sm:$0xff]
        %v477 = vld [vmem:[%s2 + $0x28] sm:$0xff]
        %v478 = vld [vmem:[%s2 + $0x30] sm:$0xff]
        %v479 = vld [vmem:[%s2 + $0x38] sm:$0xff]
        %s480 = scalar_lea.vmem %s1, 16
        %v481 = vld [vmem:[%s480] sm:$0xff]
        %v482 = vld [vmem:[%s480 + $0x8] sm:$0x3f]
        %v484 = vsel %vm390, %v481, 0
        %v487 = vsel %vm390, %v482, 0
        %489 = vmatprep.subr.mxu0 0.0
        %490 = vmatpush1.msra.mxu0 %v384
        %491 = vmatprep.subr.mxu0 0.0
        %492 = vmatpush1.msra.mxu0 %v385
        %493 = vmatprep.subr.mxu0 0.0
        %494 = vmatpush1.msra.mxu0 %v386
        %495 = vmatprep.subr.mxu0 0.0
        %496 = vmatpush1.msra.mxu0 %v387
        %497 = vmatprep.subr.mxu0 0.0
        %498 = vmatpush1.msra.mxu0 0.0
        %499 = vmatprep.subr.mxu0 0.0
        %500 = vmatpush1.msra.mxu0 0.0
        %501 = vmatprep.subr.mxu0 0.0
        %502 = vmatpush1.msra.mxu0 0.0
        %503 = vmatprep.subr.mxu0 0.0
        %504 = vmatpush1.msra.mxu0 0.0
        %505 = vmatprep.subr.mxu0 0.0
        %506 = vmatpush1.msra.mxu0 0.0
        %507 = vmatprep.subr.mxu0 0.0
        %508 = vmatpush1.msra.mxu0 0.0
        %509 = vmatprep.subr.mxu0 0.0
        %510 = vmatpush1.msra.mxu0 0.0
        %511 = vmatprep.subr.mxu0 0.0
        %512 = vmatpush1.msra.mxu0 0.0
        %513 = vmatprep.subr.mxu0 0.0
        %514 = vmatpush1.msra.mxu0 0.0
        %515 = vmatprep.subr.mxu0 0.0
        %516 = vmatpush1.msra.mxu0 0.0
        %517 = vmatprep.subr.mxu0 0.0
        %518 = vmatpush1.msra.mxu0 0.0
        %519 = vmatprep.subr.mxu0 0.0
        %520 = vmatpush1.msra.mxu0 0.0
        %521 = vmatprep.subr.mxu0 0.0
        %522 = vmatpush1.msra.mxu0 0.0
        %523 = vmatprep.subr.mxu0 0.0
        %524 = vmatpush1.msra.mxu0 0.0
        %525 = vmatprep.subr.mxu0 0.0
        %526 = vmatpush1.msra.mxu0 0.0
        %527 = vmatprep.subr.mxu0 0.0
        %528 = vmatpush1.msra.mxu0 0.0
        %529 = vmatprep.subr.mxu0 0.0
        %530 = vmatpush1.msra.mxu0 0.0
        %531 = vmatprep.subr.mxu0 0.0
        %532 = vmatpush1.msra.mxu0 0.0
        %533 = vmatprep.subr.mxu0 0.0
        %534 = vmatpush1.msra.mxu0 0.0
        %535 = vmatprep.subr.mxu0 0.0
        %536 = vmatpush1.msra.mxu0 0.0
        %537 = vmatprep.subr.mxu0 0.0
        %538 = vmatpush1.msra.mxu0 0.0
        %539 = vmatprep.subr.mxu0 0.0
        %540 = vmatpush1.msra.mxu0 0.0
        %541 = vmatprep.subr.mxu0 0.0
        %542 = vmatpush1.msra.mxu0 0.0
        %543 = vmatprep.subr.mxu0 0.0
        %544 = vmatpush1.msra.mxu0 0.0
        %545 = vmatprep.subr.mxu0 0.0
        %546 = vmatpush1.msra.mxu0 0.0
        %547 = vmatprep.subr.mxu0 0.0
        %548 = vmatpush1.msra.mxu0 0.0
        %549 = vmatprep.subr.mxu0 0.0
        %550 = vmatpush1.msra.mxu0 0.0
        %551 = vmatprep.subr.mxu0 0.0
        %552 = vmatpush1.msra.mxu0 0.0
        %553 = vmatprep.mubr.f32.mxu0 0.0
        %554 = vmatmul.mubr.f32.gmra.mrb[0].mxu0 %v484
        %v555 = vpop.f32.mrb[0].mxu0
        %v556 = vadd.f32 0.0, %v555
        %v557 = vpop.f32.mrb[0].mxu0
        %558 = vmatprep.mubr.f32.mxu0 0.0
        %559 = vmatmul.mubr.f32.gmra.mrb[0].mxu0 %v487
        %v560 = vpop.f32.mrb[0].mxu0
        %v561 = vadd.f32 0.0, %v560
        %v562 = vpop.f32.mrb[0].mxu0
        %563 = vdwg.mxu0
        %s564 = scalar_lea.vmem %s2, 64
        %v565 = vld [vmem:[%s564] sm:$0xff]
        %v566 = vld [vmem:[%s564 + $0x8] sm:$0xff]
        %v567 = vld [vmem:[%s564 + $0x10] sm:$0xff]
        %v568 = vld [vmem:[%s564 + $0x18] sm:$0xff]
        %v569 = vld [vmem:[%s564 + $0x20] sm:$0xff]
        %v570 = vld [vmem:[%s564 + $0x28] sm:$0xff]
        %v571 = vld [vmem:[%s564 + $0x30] sm:$0xff]
        %v572 = vld [vmem:[%s564 + $0x38] sm:$0xff]
        %v574 = vsel %vm390, %v556, 0
        %v577 = vsel %vm390, %v561, 0
        %579 = vmatprep.subr.mxu0 %v566
        %580 = vmatpush1.msra.mxu0 %v565
        %581 = vmatprep.subr.mxu0 %v568
        %582 = vmatpush1.msra.mxu0 %v567
        %583 = vmatprep.subr.mxu0 %v570
        %584 = vmatpush1.msra.mxu0 %v569
        %585 = vmatprep.subr.mxu0 %v572
        %586 = vmatpush1.msra.mxu0 %v571
        %587 = vmatprep.subr.mxu0 0.0
        %588 = vmatpush1.msra.mxu0 0.0
        %589 = vmatprep.subr.mxu0 0.0
        %590 = vmatpush1.msra.mxu0 0.0
        %591 = vmatprep.subr.mxu0 0.0
        %592 = vmatpush1.msra.mxu0 0.0
        %593 = vmatprep.subr.mxu0 0.0
        %594 = vmatpush1.msra.mxu0 0.0
        %595 = vmatprep.subr.mxu0 0.0
        %596 = vmatpush1.msra.mxu0 0.0
        %597 = vmatprep.subr.mxu0 0.0
        %598 = vmatpush1.msra.mxu0 0.0
        %599 = vmatprep.subr.mxu0 0.0
        %600 = vmatpush1.msra.mxu0 0.0
        %601 = vmatprep.subr.mxu0 0.0
        %602 = vmatpush1.msra.mxu0 0.0
        %603 = vmatprep.subr.mxu0 0.0
        %604 = vmatpush1.msra.mxu0 0.0
        %605 = vmatprep.subr.mxu0 0.0
        %606 = vmatpush1.msra.mxu0 0.0
        %607 = vmatprep.subr.mxu0 0.0
        %608 = vmatpush1.msra.mxu0 0.0
        %609 = vmatprep.subr.mxu0 0.0
        %610 = vmatpush1.msra.mxu0 0.0
        %611 = vmatprep.subr.mxu0 0.0
        %612 = vmatpush1.msra.mxu0 0.0
        %613 = vmatprep.subr.mxu0 0.0
        %614 = vmatpush1.msra.mxu0 0.0
        %615 = vmatprep.subr.mxu0 0.0
        %616 = vmatpush1.msra.mxu0 0.0
        %617 = vmatprep.subr.mxu0 0.0
        %618 = vmatpush1.msra.mxu0 0.0
        %619 = vmatprep.subr.mxu0 0.0
        %620 = vmatpush1.msra.mxu0 0.0
        %621 = vmatprep.subr.mxu0 0.0
        %622 = vmatpush1.msra.mxu0 0.0
        %623 = vmatprep.subr.mxu0 0.0
        %624 = vmatpush1.msra.mxu0 0.0
        %625 = vmatprep.subr.mxu0 0.0
        %626 = vmatpush1.msra.mxu0 0.0
        %627 = vmatprep.subr.mxu0 0.0
        %628 = vmatpush1.msra.mxu0 0.0
        %629 = vmatprep.subr.mxu0 0.0
        %630 = vmatpush1.msra.mxu0 0.0
        %631 = vmatprep.subr.mxu0 0.0
        %632 = vmatpush1.msra.mxu0 0.0
        %633 = vmatprep.subr.mxu0 0.0
        %634 = vmatpush1.msra.mxu0 0.0
        %635 = vmatprep.subr.mxu0 0.0
        %636 = vmatpush1.msra.mxu0 0.0
        %637 = vmatprep.subr.mxu0 0.0
        %638 = vmatpush1.msra.mxu0 0.0
        %639 = vmatprep.subr.mxu0 0.0
        %640 = vmatpush1.msra.mxu0 0.0
        %641 = vmatprep.subr.mxu0 0.0
        %642 = vmatpush1.msra.mxu0 0.0
        %643 = vmatprep.mubr.f32.mxu0 0.0
        %644 = vmatmul.mubr.f32.gmra.mrb[0].mxu0 %v574
        %v645 = vpop.f32.mrb[0].mxu0
        %v646 = vadd.f32 0.0, %v645
        %v647 = vpop.f32.mrb[0].mxu0
        %v648 = vadd.f32 0.0, %v647
        %649 = vmatprep.mubr.f32.mxu0 0.0
        %650 = vmatmul.mubr.f32.gmra.mrb[0].mxu0 %v577
        %v651 = vpop.f32.mrb[0].mxu0
        %v652 = vadd.f32 0.0, %v651
        %v653 = vpop.f32.mrb[0].mxu0
        %v654 = vadd.f32 0.0, %v653
        %655 = vdwg.mxu0
        %v657 = vsel %vm390, %v464, 0
        %v660 = vsel %vm390, %v469, 0
        %662 = vmatprep.subr.mxu0 %v473
        %663 = vmatpush1.msra.mxu0 %v472
        %664 = vmatprep.subr.mxu0 %v475
        %665 = vmatpush1.msra.mxu0 %v474
        %666 = vmatprep.subr.mxu0 %v477
        %667 = vmatpush1.msra.mxu0 %v476
        %668 = vmatprep.subr.mxu0 %v479
        %669 = vmatpush1.msra.mxu0 %v478
        %670 = vmatprep.subr.mxu0 0.0
        %671 = vmatpush1.msra.mxu0 0.0
        %672 = vmatprep.subr.mxu0 0.0
        %673 = vmatpush1.msra.mxu0 0.0
        %674 = vmatprep.subr.mxu0 0.0
        %675 = vmatpush1.msra.mxu0 0.0
        %676 = vmatprep.subr.mxu0 0.0
        %677 = vmatpush1.msra.mxu0 0.0
        %678 = vmatprep.subr.mxu0 0.0
        %679 = vmatpush1.msra.mxu0 0.0
        %680 = vmatprep.subr.mxu0 0.0
        %681 = vmatpush1.msra.mxu0 0.0
        %682 = vmatprep.subr.mxu0 0.0
        %683 = vmatpush1.msra.mxu0 0.0
        %684 = vmatprep.subr.mxu0 0.0
        %685 = vmatpush1.msra.mxu0 0.0
        %686 = vmatprep.subr.mxu0 0.0
        %687 = vmatpush1.msra.mxu0 0.0
        %688 = vmatprep.subr.mxu0 0.0
        %689 = vmatpush1.msra.mxu0 0.0
        %690 = vmatprep.subr.mxu0 0.0
        %691 = vmatpush1.msra.mxu0 0.0
        %692 = vmatprep.subr.mxu0 0.0
        %693 = vmatpush1.msra.mxu0 0.0
        %694 = vmatprep.subr.mxu0 0.0
        %695 = vmatpush1.msra.mxu0 0.0
        %696 = vmatprep.subr.mxu0 0.0
        %697 = vmatpush1.msra.mxu0 0.0
        %698 = vmatprep.subr.mxu0 0.0
        %699 = vmatpush1.msra.mxu0 0.0
        %700 = vmatprep.subr.mxu0 0.0
        %701 = vmatpush1.msra.mxu0 0.0
        %702 = vmatprep.subr.mxu0 0.0
        %703 = vmatpush1.msra.mxu0 0.0
        %704 = vmatprep.subr.mxu0 0.0
        %705 = vmatpush1.msra.mxu0 0.0
        %706 = vmatprep.subr.mxu0 0.0
        %707 = vmatpush1.msra.mxu0 0.0
        %708 = vmatprep.subr.mxu0 0.0
        %709 = vmatpush1.msra.mxu0 0.0
        %710 = vmatprep.subr.mxu0 0.0
        %711 = vmatpush1.msra.mxu0 0.0
        %712 = vmatprep.subr.mxu0 0.0
        %713 = vmatpush1.msra.mxu0 0.0
        %714 = vmatprep.subr.mxu0 0.0
        %715 = vmatpush1.msra.mxu0 0.0
        %716 = vmatprep.subr.mxu0 0.0
        %717 = vmatpush1.msra.mxu0 0.0
        %718 = vmatprep.subr.mxu0 0.0
        %719 = vmatpush1.msra.mxu0 0.0
        %720 = vmatprep.subr.mxu0 0.0
        %721 = vmatpush1.msra.mxu0 0.0
        %722 = vmatprep.subr.mxu0 0.0
        %723 = vmatpush1.msra.mxu0 0.0
        %724 = vmatprep.subr.mxu0 0.0
        %725 = vmatpush1.msra.mxu0 0.0
        %726 = vmatprep.mubr.f32.mxu0 0.0
        %727 = vmatmul.mubr.f32.gmra.mrb[0].mxu0 %v657
        %v728 = vpop.f32.mrb[0].mxu0
        %v729 = vadd.f32 %v646, %v728
        %v730 = vpop.f32.mrb[0].mxu0
        %v731 = vadd.f32 %v648, %v730
        %732 = vmatprep.mubr.f32.mxu0 0.0
        %733 = vmatmul.mubr.f32.gmra.mrb[0].mxu0 %v660
        %v734 = vpop.f32.mrb[0].mxu0
        %v735 = vadd.f32 %v652, %v734
        %v736 = vpop.f32.mrb[0].mxu0
        %v737 = vadd.f32 %v654, %v736
        %738 = vdwg.mxu0
        %s739 = scalar_lea.vmem %s1, 32
        %v740 = vld [vmem:[%s739] sm:$0xff]
        %v741 = vld [vmem:[%s739 + $0x8] sm:$0x3f]
        %v743 = vsel %vm390, %v740, 0
        %v746 = vsel %vm390, %v741, 0
        %748 = vmatprep.subr.mxu0 0.0
        %749 = vmatpush1.msra.mxu0 %v384
        %750 = vmatprep.subr.mxu0 0.0
        %751 = vmatpush1.msra.mxu0 %v385
        %752 = vmatprep.subr.mxu0 0.0
        %753 = vmatpush1.msra.mxu0 %v386
        %754 = vmatprep.subr.mxu0 0.0
        %755 = vmatpush1.msra.mxu0 %v387
        %756 = vmatprep.subr.mxu0 0.0
        %757 = vmatpush1.msra.mxu0 0.0
        %758 = vmatprep.subr.mxu0 0.0
        %759 = vmatpush1.msra.mxu0 0.0
        %760 = vmatprep.subr.mxu0 0.0
        %761 = vmatpush1.msra.mxu0 0.0
        %762 = vmatprep.subr.mxu0 0.0
        %763 = vmatpush1.msra.mxu0 0.0
        %764 = vmatprep.subr.mxu0 0.0
        %765 = vmatpush1.msra.mxu0 0.0
        %766 = vmatprep.subr.mxu0 0.0
        %767 = vmatpush1.msra.mxu0 0.0
        %768 = vmatprep.subr.mxu0 0.0
        %769 = vmatpush1.msra.mxu0 0.0
        %770 = vmatprep.subr.mxu0 0.0
        %771 = vmatpush1.msra.mxu0 0.0
        %772 = vmatprep.subr.mxu0 0.0
        %773 = vmatpush1.msra.mxu0 0.0
        %774 = vmatprep.subr.mxu0 0.0
        %775 = vmatpush1.msra.mxu0 0.0
        %776 = vmatprep.subr.mxu0 0.0
        %777 = vmatpush1.msra.mxu0 0.0
        %778 = vmatprep.subr.mxu0 0.0
        %779 = vmatpush1.msra.mxu0 0.0
        %780 = vmatprep.subr.mxu0 0.0
        %781 = vmatpush1.msra.mxu0 0.0
        %782 = vmatprep.subr.mxu0 0.0
        %783 = vmatpush1.msra.mxu0 0.0
        %784 = vmatprep.subr.mxu0 0.0
        %785 = vmatpush1.msra.mxu0 0.0
        %786 = vmatprep.subr.mxu0 0.0
        %787 = vmatpush1.msra.mxu0 0.0
        %788 = vmatprep.subr.mxu0 0.0
        %789 = vmatpush1.msra.mxu0 0.0
        %790 = vmatprep.subr.mxu0 0.0
        %791 = vmatpush1.msra.mxu0 0.0
        %792 = vmatprep.subr.mxu0 0.0
        %793 = vmatpush1.msra.mxu0 0.0
        %794 = vmatprep.subr.mxu0 0.0
        %795 = vmatpush1.msra.mxu0 0.0
        %796 = vmatprep.subr.mxu0 0.0
        %797 = vmatpush1.msra.mxu0 0.0
        %798 = vmatprep.subr.mxu0 0.0
        %799 = vmatpush1.msra.mxu0 0.0
        %800 = vmatprep.subr.mxu0 0.0
        %801 = vmatpush1.msra.mxu0 0.0
        %802 = vmatprep.subr.mxu0 0.0
        %803 = vmatpush1.msra.mxu0 0.0
        %804 = vmatprep.subr.mxu0 0.0
        %805 = vmatpush1.msra.mxu0 0.0
        %806 = vmatprep.subr.mxu0 0.0
        %807 = vmatpush1.msra.mxu0 0.0
        %808 = vmatprep.subr.mxu0 0.0
        %809 = vmatpush1.msra.mxu0 0.0
        %810 = vmatprep.subr.mxu0 0.0
        %811 = vmatpush1.msra.mxu0 0.0
        %812 = vmatprep.mubr.f32.mxu0 0.0
        %813 = vmatmul.mubr.f32.gmra.mrb[0].mxu0 %v743
        %v814 = vpop.f32.mrb[0].mxu0
        %v815 = vadd.f32 0.0, %v814
        %v816 = vpop.f32.mrb[0].mxu0
        %817 = vmatprep.mubr.f32.mxu0 0.0
        %818 = vmatmul.mubr.f32.gmra.mrb[0].mxu0 %v746
        %v819 = vpop.f32.mrb[0].mxu0
        %v820 = vadd.f32 0.0, %v819
        %v821 = vpop.f32.mrb[0].mxu0
        %822 = vdwg.mxu0
        %s823 = scalar_lea.vmem %s2, 128
        %v824 = vld [vmem:[%s823] sm:$0xff]
        %v825 = vld [vmem:[%s823 + $0x8] sm:$0xff]
        %v826 = vld [vmem:[%s823 + $0x10] sm:$0xff]
        %v827 = vld [vmem:[%s823 + $0x18] sm:$0xff]
        %v828 = vld [vmem:[%s823 + $0x20] sm:$0xff]
        %v829 = vld [vmem:[%s823 + $0x28] sm:$0xff]
        %v830 = vld [vmem:[%s823 + $0x30] sm:$0xff]
        %v831 = vld [vmem:[%s823 + $0x38] sm:$0xff]
        %v833 = vsel %vm390, %v815, 0
        %v836 = vsel %vm390, %v820, 0
        %838 = vmatprep.subr.mxu0 %v825
        %839 = vmatpush1.msra.mxu0 %v824
        %840 = vmatprep.subr.mxu0 %v827
        %841 = vmatpush1.msra.mxu0 %v826
        %842 = vmatprep.subr.mxu0 %v829
        %843 = vmatpush1.msra.mxu0 %v828
        %844 = vmatprep.subr.mxu0 %v831
        %845 = vmatpush1.msra.mxu0 %v830
        %846 = vmatprep.subr.mxu0 0.0
        %847 = vmatpush1.msra.mxu0 0.0
        %848 = vmatprep.subr.mxu0 0.0
        %849 = vmatpush1.msra.mxu0 0.0
        %850 = vmatprep.subr.mxu0 0.0
        %851 = vmatpush1.msra.mxu0 0.0
        %852 = vmatprep.subr.mxu0 0.0
        %853 = vmatpush1.msra.mxu0 0.0
        %854 = vmatprep.subr.mxu0 0.0
        %855 = vmatpush1.msra.mxu0 0.0
        %856 = vmatprep.subr.mxu0 0.0
        %857 = vmatpush1.msra.mxu0 0.0
        %858 = vmatprep.subr.mxu0 0.0
        %859 = vmatpush1.msra.mxu0 0.0
        %860 = vmatprep.subr.mxu0 0.0
        %861 = vmatpush1.msra.mxu0 0.0
        %862 = vmatprep.subr.mxu0 0.0
        %863 = vmatpush1.msra.mxu0 0.0
        %864 = vmatprep.subr.mxu0 0.0
        %865 = vmatpush1.msra.mxu0 0.0
        %866 = vmatprep.subr.mxu0 0.0
        %867 = vmatpush1.msra.mxu0 0.0
        %868 = vmatprep.subr.mxu0 0.0
        %869 = vmatpush1.msra.mxu0 0.0
        %870 = vmatprep.subr.mxu0 0.0
        %871 = vmatpush1.msra.mxu0 0.0
        %872 = vmatprep.subr.mxu0 0.0
        %873 = vmatpush1.msra.mxu0 0.0
        %874 = vmatprep.subr.mxu0 0.0
        %875 = vmatpush1.msra.mxu0 0.0
        %876 = vmatprep.subr.mxu0 0.0
        %877 = vmatpush1.msra.mxu0 0.0
        %878 = vmatprep.subr.mxu0 0.0
        %879 = vmatpush1.msra.mxu0 0.0
        %880 = vmatprep.subr.mxu0 0.0
        %881 = vmatpush1.msra.mxu0 0.0
        %882 = vmatprep.subr.mxu0 0.0
        %883 = vmatpush1.msra.mxu0 0.0
        %884 = vmatprep.subr.mxu0 0.0
        %885 = vmatpush1.msra.mxu0 0.0
        %886 = vmatprep.subr.mxu0 0.0
        %887 = vmatpush1.msra.mxu0 0.0
        %888 = vmatprep.subr.mxu0 0.0
        %889 = vmatpush1.msra.mxu0 0.0
        %890 = vmatprep.subr.mxu0 0.0
        %891 = vmatpush1.msra.mxu0 0.0
        %892 = vmatprep.subr.mxu0 0.0
        %893 = vmatpush1.msra.mxu0 0.0
        %894 = vmatprep.subr.mxu0 0.0
        %895 = vmatpush1.msra.mxu0 0.0
        %896 = vmatprep.subr.mxu0 0.0
        %897 = vmatpush1.msra.mxu0 0.0
        %898 = vmatprep.subr.mxu0 0.0
        %899 = vmatpush1.msra.mxu0 0.0
        %900 = vmatprep.subr.mxu0 0.0
        %901 = vmatpush1.msra.mxu0 0.0
        %902 = vmatprep.mubr.f32.mxu0 0.0
        %903 = vmatmul.mubr.f32.gmra.mrb[0].mxu0 %v833
        %v904 = vpop.f32.mrb[0].mxu0
        %v905 = vadd.f32 0.0, %v904
        %v906 = vpop.f32.mrb[0].mxu0
        %v907 = vadd.f32 0.0, %v906
        %908 = vmatprep.mubr.f32.mxu0 0.0
        %909 = vmatmul.mubr.f32.gmra.mrb[0].mxu0 %v836
        %v910 = vpop.f32.mrb[0].mxu0
        %v911 = vadd.f32 0.0, %v910
        %v912 = vpop.f32.mrb[0].mxu0
        %v913 = vadd.f32 0.0, %v912
        %914 = vdwg.mxu0
        %v915 = vadd.f32 %v729, %v905
        %v916 = vadd.f32 %v731, %v907
        %v917 = vadd.f32 %v735, %v911
        %v918 = vadd.f32 %v737, %v913
        %s919 = scalar_lea.vmem %s1, 48
        %v920 = vld [vmem:[%s919] sm:$0xff]
        %v921 = vld [vmem:[%s919 + $0x8] sm:$0x3f]
        %v923 = vsel %vm390, %v920, 0
        %v926 = vsel %vm390, %v921, 0
        %928 = vmatprep.subr.mxu0 0.0
        %929 = vmatpush1.msra.mxu0 %v384
        %930 = vmatprep.subr.mxu0 0.0
        %931 = vmatpush1.msra.mxu0 %v385
        %932 = vmatprep.subr.mxu0 0.0
        %933 = vmatpush1.msra.mxu0 %v386
        %934 = vmatprep.subr.mxu0 0.0
        %935 = vmatpush1.msra.mxu0 %v387
        %936 = vmatprep.subr.mxu0 0.0
        %937 = vmatpush1.msra.mxu0 0.0
        %938 = vmatprep.subr.mxu0 0.0
        %939 = vmatpush1.msra.mxu0 0.0
        %940 = vmatprep.subr.mxu0 0.0
        %941 = vmatpush1.msra.mxu0 0.0
        %942 = vmatprep.subr.mxu0 0.0
        %943 = vmatpush1.msra.mxu0 0.0
        %944 = vmatprep.subr.mxu0 0.0
        %945 = vmatpush1.msra.mxu0 0.0
        %946 = vmatprep.subr.mxu0 0.0
        %947 = vmatpush1.msra.mxu0 0.0
        %948 = vmatprep.subr.mxu0 0.0
        %949 = vmatpush1.msra.mxu0 0.0
        %950 = vmatprep.subr.mxu0 0.0
        %951 = vmatpush1.msra.mxu0 0.0
        %952 = vmatprep.subr.mxu0 0.0
        %953 = vmatpush1.msra.mxu0 0.0
        %954 = vmatprep.subr.mxu0 0.0
        %955 = vmatpush1.msra.mxu0 0.0
        %956 = vmatprep.subr.mxu0 0.0
        %957 = vmatpush1.msra.mxu0 0.0
        %958 = vmatprep.subr.mxu0 0.0
        %959 = vmatpush1.msra.mxu0 0.0
        %960 = vmatprep.subr.mxu0 0.0
        %961 = vmatpush1.msra.mxu0 0.0
        %962 = vmatprep.subr.mxu0 0.0
        %963 = vmatpush1.msra.mxu0 0.0
        %964 = vmatprep.subr.mxu0 0.0
        %965 = vmatpush1.msra.mxu0 0.0
        %966 = vmatprep.subr.mxu0 0.0
        %967 = vmatpush1.msra.mxu0 0.0
        %968 = vmatprep.subr.mxu0 0.0
        %969 = vmatpush1.msra.mxu0 0.0
        %970 = vmatprep.subr.mxu0 0.0
        %971 = vmatpush1.msra.mxu0 0.0
        %972 = vmatprep.subr.mxu0 0.0
        %973 = vmatpush1.msra.mxu0 0.0
        %974 = vmatprep.subr.mxu0 0.0
        %975 = vmatpush1.msra.mxu0 0.0
        %976 = vmatprep.subr.mxu0 0.0
        %977 = vmatpush1.msra.mxu0 0.0
        %978 = vmatprep.subr.mxu0 0.0
        %979 = vmatpush1.msra.mxu0 0.0
        %980 = vmatprep.subr.mxu0 0.0
        %981 = vmatpush1.msra.mxu0 0.0
        %982 = vmatprep.subr.mxu0 0.0
        %983 = vmatpush1.msra.mxu0 0.0
        %984 = vmatprep.subr.mxu0 0.0
        %985 = vmatpush1.msra.mxu0 0.0
        %986 = vmatprep.subr.mxu0 0.0
        %987 = vmatpush1.msra.mxu0 0.0
        %988 = vmatprep.subr.mxu0 0.0
        %989 = vmatpush1.msra.mxu0 0.0
        %990 = vmatprep.subr.mxu0 0.0
        %991 = vmatpush1.msra.mxu0 0.0
        %992 = vmatprep.mubr.f32.mxu0 0.0
        %993 = vmatmul.mubr.f32.gmra.mrb[0].mxu0 %v923
        %v994 = vpop.f32.mrb[0].mxu0
        %v995 = vadd.f32 0.0, %v994
        %v996 = vpop.f32.mrb[0].mxu0
        %997 = vmatprep.mubr.f32.mxu0 0.0
        %998 = vmatmul.mubr.f32.gmra.mrb[0].mxu0 %v926
        %v999 = vpop.f32.mrb[0].mxu0
        %v1000 = vadd.f32 0.0, %v999
        %v1001 = vpop.f32.mrb[0].mxu0
        %1002 = vdwg.mxu0
        %s1003 = scalar_lea.vmem %s2, 192
        %v1004 = vld [vmem:[%s1003] sm:$0xff]
        %v1005 = vld [vmem:[%s1003 + $0x8] sm:$0xff]
        %v1006 = vld [vmem:[%s1003 + $0x10] sm:$0xff]
        %v1007 = vld [vmem:[%s1003 + $0x18] sm:$0xff]
        %v1008 = vld [vmem:[%s1003 + $0x20] sm:$0xff]
        %v1009 = vld [vmem:[%s1003 + $0x28] sm:$0xff]
        %v1010 = vld [vmem:[%s1003 + $0x30] sm:$0xff]
        %v1011 = vld [vmem:[%s1003 + $0x38] sm:$0xff]
        %v1013 = vsel %vm390, %v995, 0
        %v1016 = vsel %vm390, %v1000, 0
        %1018 = vmatprep.subr.mxu0 %v1005
        %1019 = vmatpush1.msra.mxu0 %v1004
        %1020 = vmatprep.subr.mxu0 %v1007
        %1021 = vmatpush1.msra.mxu0 %v1006
        %1022 = vmatprep.subr.mxu0 %v1009
        %1023 = vmatpush1.msra.mxu0 %v1008
        %1024 = vmatprep.subr.mxu0 %v1011
        %1025 = vmatpush1.msra.mxu0 %v1010
        %1026 = vmatprep.subr.mxu0 0.0
        %1027 = vmatpush1.msra.mxu0 0.0
        %1028 = vmatprep.subr.mxu0 0.0
        %1029 = vmatpush1.msra.mxu0 0.0
        %1030 = vmatprep.subr.mxu0 0.0
        %1031 = vmatpush1.msra.mxu0 0.0
        %1032 = vmatprep.subr.mxu0 0.0
        %1033 = vmatpush1.msra.mxu0 0.0
        %1034 = vmatprep.subr.mxu0 0.0
        %1035 = vmatpush1.msra.mxu0 0.0
        %1036 = vmatprep.subr.mxu0 0.0
        %1037 = vmatpush1.msra.mxu0 0.0
        %1038 = vmatprep.subr.mxu0 0.0
        %1039 = vmatpush1.msra.mxu0 0.0
        %1040 = vmatprep.subr.mxu0 0.0
        %1041 = vmatpush1.msra.mxu0 0.0
        %1042 = vmatprep.subr.mxu0 0.0
        %1043 = vmatpush1.msra.mxu0 0.0
        %1044 = vmatprep.subr.mxu0 0.0
        %1045 = vmatpush1.msra.mxu0 0.0
        %1046 = vmatprep.subr.mxu0 0.0
        %1047 = vmatpush1.msra.mxu0 0.0
        %1048 = vmatprep.subr.mxu0 0.0
        %1049 = vmatpush1.msra.mxu0 0.0
        %1050 = vmatprep.subr.mxu0 0.0
        %1051 = vmatpush1.msra.mxu0 0.0
        %1052 = vmatprep.subr.mxu0 0.0
        %1053 = vmatpush1.msra.mxu0 0.0
        %1054 = vmatprep.subr.mxu0 0.0
        %1055 = vmatpush1.msra.mxu0 0.0
        %1056 = vmatprep.subr.mxu0 0.0
        %1057 = vmatpush1.msra.mxu0 0.0
        %1058 = vmatprep.subr.mxu0 0.0
        %1059 = vmatpush1.msra.mxu0 0.0
        %1060 = vmatprep.subr.mxu0 0.0
        %1061 = vmatpush1.msra.mxu0 0.0
        %1062 = vmatprep.subr.mxu0 0.0
        %1063 = vmatpush1.msra.mxu0 0.0
        %1064 = vmatprep.subr.mxu0 0.0
        %1065 = vmatpush1.msra.mxu0 0.0
        %1066 = vmatprep.subr.mxu0 0.0
        %1067 = vmatpush1.msra.mxu0 0.0
        %1068 = vmatprep.subr.mxu0 0.0
        %1069 = vmatpush1.msra.mxu0 0.0
        %1070 = vmatprep.subr.mxu0 0.0
        %1071 = vmatpush1.msra.mxu0 0.0
        %1072 = vmatprep.subr.mxu0 0.0
        %1073 = vmatpush1.msra.mxu0 0.0
        %1074 = vmatprep.subr.mxu0 0.0
        %1075 = vmatpush1.msra.mxu0 0.0
        %1076 = vmatprep.subr.mxu0 0.0
        %1077 = vmatpush1.msra.mxu0 0.0
        %1078 = vmatprep.subr.mxu0 0.0
        %1079 = vmatpush1.msra.mxu0 0.0
        %1080 = vmatprep.subr.mxu0 0.0
        %1081 = vmatpush1.msra.mxu0 0.0
        %1082 = vmatprep.mubr.f32.mxu0 0.0
        %1083 = vmatmul.mubr.f32.gmra.mrb[0].mxu0 %v1013
        %v1084 = vpop.f32.mrb[0].mxu0
        %v1085 = vadd.f32 0.0, %v1084
        %v1086 = vpop.f32.mrb[0].mxu0
        %v1087 = vadd.f32 0.0, %v1086
        %1088 = vmatprep.mubr.f32.mxu0 0.0
        %1089 = vmatmul.mubr.f32.gmra.mrb[0].mxu0 %v1016
        %v1090 = vpop.f32.mrb[0].mxu0
        %v1091 = vadd.f32 0.0, %v1090
        %v1092 = vpop.f32.mrb[0].mxu0
        %v1093 = vadd.f32 0.0, %v1092
        %1094 = vdwg.mxu0
        %v1095 = vadd.f32 %v915, %v1085
        %v1096 = vadd.f32 %v916, %v1087
        %v1097 = vadd.f32 %v917, %v1091
        %v1098 = vadd.f32 %v918, %v1093
        %s1099 = scalar_lea.vmem %s1, 64
        %v1100 = vld [vmem:[%s1099] sm:$0xff]
        %v1101 = vld [vmem:[%s1099 + $0x8] sm:$0x3f]
        %v1103 = vsel %vm390, %v1100, 0
        %v1106 = vsel %vm390, %v1101, 0
        %1108 = vmatprep.subr.mxu0 0.0
        %1109 = vmatpush1.msra.mxu0 %v384
        %1110 = vmatprep.subr.mxu0 0.0
        %1111 = vmatpush1.msra.mxu0 %v385
        %1112 = vmatprep.subr.mxu0 0.0
        %1113 = vmatpush1.msra.mxu0 %v386
        %1114 = vmatprep.subr.mxu0 0.0
        %1115 = vmatpush1.msra.mxu0 %v387
        %1116 = vmatprep.subr.mxu0 0.0
        %1117 = vmatpush1.msra.mxu0 0.0
        %1118 = vmatprep.subr.mxu0 0.0
        %1119 = vmatpush1.msra.mxu0 0.0
        %1120 = vmatprep.subr.mxu0 0.0
        %1121 = vmatpush1.msra.mxu0 0.0
        %1122 = vmatprep.subr.mxu0 0.0
        %1123 = vmatpush1.msra.mxu0 0.0
        %1124 = vmatprep.subr.mxu0 0.0
        %1125 = vmatpush1.msra.mxu0 0.0
        %1126 = vmatprep.subr.mxu0 0.0
        %1127 = vmatpush1.msra.mxu0 0.0
        %1128 = vmatprep.subr.mxu0 0.0
        %1129 = vmatpush1.msra.mxu0 0.0
        %1130 = vmatprep.subr.mxu0 0.0
        %1131 = vmatpush1.msra.mxu0 0.0
        %1132 = vmatprep.subr.mxu0 0.0
        %1133 = vmatpush1.msra.mxu0 0.0
        %1134 = vmatprep.subr.mxu0 0.0
        %1135 = vmatpush1.msra.mxu0 0.0
        %1136 = vmatprep.subr.mxu0 0.0
        %1137 = vmatpush1.msra.mxu0 0.0
        %1138 = vmatprep.subr.mxu0 0.0
        %1139 = vmatpush1.msra.mxu0 0.0
        %1140 = vmatprep.subr.mxu0 0.0
        %1141 = vmatpush1.msra.mxu0 0.0
        %1142 = vmatprep.subr.mxu0 0.0
        %1143 = vmatpush1.msra.mxu0 0.0
        %1144 = vmatprep.subr.mxu0 0.0
        %1145 = vmatpush1.msra.mxu0 0.0
        %1146 = vmatprep.subr.mxu0 0.0
        %1147 = vmatpush1.msra.mxu0 0.0
        %1148 = vmatprep.subr.mxu0 0.0
        %1149 = vmatpush1.msra.mxu0 0.0
        %1150 = vmatprep.subr.mxu0 0.0
        %1151 = vmatpush1.msra.mxu0 0.0
        %1152 = vmatprep.subr.mxu0 0.0
        %1153 = vmatpush1.msra.mxu0 0.0
        %1154 = vmatprep.subr.mxu0 0.0
        %1155 = vmatpush1.msra.mxu0 0.0
        %1156 = vmatprep.subr.mxu0 0.0
        %1157 = vmatpush1.msra.mxu0 0.0
        %1158 = vmatprep.subr.mxu0 0.0
        %1159 = vmatpush1.msra.mxu0 0.0
        %1160 = vmatprep.subr.mxu0 0.0
        %1161 = vmatpush1.msra.mxu0 0.0
        %1162 = vmatprep.subr.mxu0 0.0
        %1163 = vmatpush1.msra.mxu0 0.0
        %1164 = vmatprep.subr.mxu0 0.0
        %1165 = vmatpush1.msra.mxu0 0.0
        %1166 = vmatprep.subr.mxu0 0.0
        %1167 = vmatpush1.msra.mxu0 0.0
        %1168 = vmatprep.subr.mxu0 0.0
        %1169 = vmatpush1.msra.mxu0 0.0
        %1170 = vmatprep.subr.mxu0 0.0
        %1171 = vmatpush1.msra.mxu0 0.0
        %1172 = vmatprep.mubr.f32.mxu0 0.0
        %1173 = vmatmul.mubr.f32.gmra.mrb[0].mxu0 %v1103
        %v1174 = vpop.f32.mrb[0].mxu0
        %v1175 = vadd.f32 0.0, %v1174
        %v1176 = vpop.f32.mrb[0].mxu0
        %1177 = vmatprep.mubr.f32.mxu0 0.0
        %1178 = vmatmul.mubr.f32.gmra.mrb[0].mxu0 %v1106
        %v1179 = vpop.f32.mrb[0].mxu0
        %v1180 = vadd.f32 0.0, %v1179
        %v1181 = vpop.f32.mrb[0].mxu0
        %1182 = vdwg.mxu0
        %s1183 = scalar_lea.vmem %s2, 256
        %v1184 = vld [vmem:[%s1183] sm:$0xff]
        %v1185 = vld [vmem:[%s1183 + $0x8] sm:$0xff]
        %v1186 = vld [vmem:[%s1183 + $0x10] sm:$0xff]
        %v1187 = vld [vmem:[%s1183 + $0x18] sm:$0xff]
        %v1188 = vld [vmem:[%s1183 + $0x20] sm:$0xff]
        %v1189 = vld [vmem:[%s1183 + $0x28] sm:$0xff]
        %v1190 = vld [vmem:[%s1183 + $0x30] sm:$0xff]
        %v1191 = vld [vmem:[%s1183 + $0x38] sm:$0xff]
        %v1193 = vsel %vm390, %v1175, 0
        %v1196 = vsel %vm390, %v1180, 0
        %1198 = vmatprep.subr.mxu0 %v1185
        %1199 = vmatpush1.msra.mxu0 %v1184
        %1200 = vmatprep.subr.mxu0 %v1187
        %1201 = vmatpush1.msra.mxu0 %v1186
        %1202 = vmatprep.subr.mxu0 %v1189
        %1203 = vmatpush1.msra.mxu0 %v1188
        %1204 = vmatprep.subr.mxu0 %v1191
        %1205 = vmatpush1.msra.mxu0 %v1190
        %1206 = vmatprep.subr.mxu0 0.0
        %1207 = vmatpush1.msra.mxu0 0.0
        %1208 = vmatprep.subr.mxu0 0.0
        %1209 = vmatpush1.msra.mxu0 0.0
        %1210 = vmatprep.subr.mxu0 0.0
        %1211 = vmatpush1.msra.mxu0 0.0
        %1212 = vmatprep.subr.mxu0 0.0
        %1213 = vmatpush1.msra.mxu0 0.0
        %1214 = vmatprep.subr.mxu0 0.0
        %1215 = vmatpush1.msra.mxu0 0.0
        %1216 = vmatprep.subr.mxu0 0.0
        %1217 = vmatpush1.msra.mxu0 0.0
        %1218 = vmatprep.subr.mxu0 0.0
        %1219 = vmatpush1.msra.mxu0 0.0
        %1220 = vmatprep.subr.mxu0 0.0
        %1221 = vmatpush1.msra.mxu0 0.0
        %1222 = vmatprep.subr.mxu0 0.0
        %1223 = vmatpush1.msra.mxu0 0.0
        %1224 = vmatprep.subr.mxu0 0.0
        %1225 = vmatpush1.msra.mxu0 0.0
        %1226 = vmatprep.subr.mxu0 0.0
        %1227 = vmatpush1.msra.mxu0 0.0
        %1228 = vmatprep.subr.mxu0 0.0
        %1229 = vmatpush1.msra.mxu0 0.0
        %1230 = vmatprep.subr.mxu0 0.0
        %1231 = vmatpush1.msra.mxu0 0.0
        %1232 = vmatprep.subr.mxu0 0.0
        %1233 = vmatpush1.msra.mxu0 0.0
        %1234 = vmatprep.subr.mxu0 0.0
        %1235 = vmatpush1.msra.mxu0 0.0
        %1236 = vmatprep.subr.mxu0 0.0
        %1237 = vmatpush1.msra.mxu0 0.0
        %1238 = vmatprep.subr.mxu0 0.0
        %1239 = vmatpush1.msra.mxu0 0.0
        %1240 = vmatprep.subr.mxu0 0.0
        %1241 = vmatpush1.msra.mxu0 0.0
        %1242 = vmatprep.subr.mxu0 0.0
        %1243 = vmatpush1.msra.mxu0 0.0
        %1244 = vmatprep.subr.mxu0 0.0
        %1245 = vmatpush1.msra.mxu0 0.0
        %1246 = vmatprep.subr.mxu0 0.0
        %1247 = vmatpush1.msra.mxu0 0.0
        %1248 = vmatprep.subr.mxu0 0.0
        %1249 = vmatpush1.msra.mxu0 0.0
        %1250 = vmatprep.subr.mxu0 0.0
        %1251 = vmatpush1.msra.mxu0 0.0
        %1252 = vmatprep.subr.mxu0 0.0
        %1253 = vmatpush1.msra.mxu0 0.0
        %1254 = vmatprep.subr.mxu0 0.0
        %1255 = vmatpush1.msra.mxu0 0.0
        %1256 = vmatprep.subr.mxu0 0.0
        %1257 = vmatpush1.msra.mxu0 0.0
        %1258 = vmatprep.subr.mxu0 0.0
        %1259 = vmatpush1.msra.mxu0 0.0
        %1260 = vmatprep.subr.mxu0 0.0
        %1261 = vmatpush1.msra.mxu0 0.0
        %1262 = vmatprep.mubr.f32.mxu0 0.0
        %1263 = vmatmul.mubr.f32.gmra.mrb[0].mxu0 %v1193
        %v1264 = vpop.f32.mrb[0].mxu0
        %v1265 = vadd.f32 0.0, %v1264
        %v1266 = vpop.f32.mrb[0].mxu0
        %v1267 = vadd.f32 0.0, %v1266
        %1268 = vmatprep.mubr.f32.mxu0 0.0
        %1269 = vmatmul.mubr.f32.gmra.mrb[0].mxu0 %v1196
        %v1270 = vpop.f32.mrb[0].mxu0
        %v1271 = vadd.f32 0.0, %v1270
        %v1272 = vpop.f32.mrb[0].mxu0
        %v1273 = vadd.f32 0.0, %v1272
        %1274 = vdwg.mxu0
        %v1275 = vadd.f32 %v1095, %v1265
        %v1276 = vadd.f32 %v1096, %v1267
        %v1277 = vadd.f32 %v1097, %v1271
        %v1278 = vadd.f32 %v1098, %v1273
        %v1279 = vld [vmem:[%s3] sm:$0x3]
        %v1281 = vlaneseq
        %v1282 = vshrl.u32 %v1281, 7
        %v1283 = vsub.s32 0, %v1282
        %v1284 = vrot.slane %v1279, %v1283
        %v1285 = vlaneseq
        %v1286 = vshrl.u32 %v1285, 7
        %v1287 = vsub.s32 1, %v1286
        %v1288 = vrot.slane %v1279, %v1287
        %v1291 = vadd.f32 %v1275, %v1284
        %v1292 = vadd.f32 %v1276, %v1288
        %v1293 = vadd.f32 %v1277, %v1284
        %v1294 = vadd.f32 %v1278, %v1288
        %v1295 = vmul.f32 %v1291, 0.6666667
        %v1296 = vmul.f32 %v1292, 0.6666667
        %v1297 = vmul.f32 %v1293, 0.6666667
        %v1298 = vmul.f32 %v1294, 0.6666667
        %v1299 = vtanh.pop %v1295
        %v1300 = vtanh.pop %v1296
        %v1301 = vtanh.pop %v1297
        %v1302 = vtanh.pop %v1298
        %v1303 = vmul.f32 %v1299, 1.716
        %v1304 = vmul.f32 %v1300, 1.716
        %v1305 = vmul.f32 %v1301, 1.716
        %v1306 = vmul.f32 %v1302, 1.716
        %v1307 = vld [vmem:[%s4] sm:$0x7f]
        %vm1308 = vcmask 113664
        %v1310 = vsel %vm1308, %v1307, 0
        %vm1312 = vcmask 1045504
        %v1314 = vsel %vm1312, %v1305, 0
        %v1317 = vsel %vm1312, %v1306, 0
        %1319 = vmatprep.subr.mxu0 %v1304
        %1320 = vmatpush1.msra.mxu0 %v1303
        %1321 = vmatprep.subr.mxu0 %v1317
        %1322 = vmatpush1.msra.mxu0 %v1314
        %1323 = vmatprep.subr.mxu0 0.0
        %1324 = vmatpush1.msra.mxu0 0.0
        %1325 = vmatprep.subr.mxu0 0.0
        %1326 = vmatpush1.msra.mxu0 0.0
        %1327 = vmatprep.subr.mxu0 0.0
        %1328 = vmatpush1.msra.mxu0 0.0
        %1329 = vmatprep.subr.mxu0 0.0
        %1330 = vmatpush1.msra.mxu0 0.0
        %1331 = vmatprep.subr.mxu0 0.0
        %1332 = vmatpush1.msra.mxu0 0.0
        %1333 = vmatprep.subr.mxu0 0.0
        %1334 = vmatpush1.msra.mxu0 0.0
        %1335 = vmatprep.subr.mxu0 0.0
        %1336 = vmatpush1.msra.mxu0 0.0
        %1337 = vmatprep.subr.mxu0 0.0
        %1338 = vmatpush1.msra.mxu0 0.0
        %1339 = vmatprep.subr.mxu0 0.0
        %1340 = vmatpush1.msra.mxu0 0.0
        %1341 = vmatprep.subr.mxu0 0.0
        %1342 = vmatpush1.msra.mxu0 0.0
        %1343 = vmatprep.subr.mxu0 0.0
        %1344 = vmatpush1.msra.mxu0 0.0
        %1345 = vmatprep.subr.mxu0 0.0
        %1346 = vmatpush1.msra.mxu0 0.0
        %1347 = vmatprep.subr.mxu0 0.0
        %1348 = vmatpush1.msra.mxu0 0.0
        %1349 = vmatprep.subr.mxu0 0.0
        %1350 = vmatpush1.msra.mxu0 0.0
        %1351 = vmatprep.subr.mxu0 0.0
        %1352 = vmatpush1.msra.mxu0 0.0
        %1353 = vmatprep.subr.mxu0 0.0
        %1354 = vmatpush1.msra.mxu0 0.0
        %1355 = vmatprep.subr.mxu0 0.0
        %1356 = vmatpush1.msra.mxu0 0.0
        %1357 = vmatprep.subr.mxu0 0.0
        %1358 = vmatpush1.msra.mxu0 0.0
        %1359 = vmatprep.subr.mxu0 0.0
        %1360 = vmatpush1.msra.mxu0 0.0
        %1361 = vmatprep.subr.mxu0 0.0
        %1362 = vmatpush1.msra.mxu0 0.0
        %1363 = vmatprep.subr.mxu0 0.0
        %1364 = vmatpush1.msra.mxu0 0.0
        %1365 = vmatprep.subr.mxu0 0.0
        %1366 = vmatpush1.msra.mxu0 0.0
        %1367 = vmatprep.subr.mxu0 0.0
        %1368 = vmatpush1.msra.mxu0 0.0
        %1369 = vmatprep.subr.mxu0 0.0
        %1370 = vmatpush1.msra.mxu0 0.0
        %1371 = vmatprep.subr.mxu0 0.0
        %1372 = vmatpush1.msra.mxu0 0.0
        %1373 = vmatprep.subr.mxu0 0.0
        %1374 = vmatpush1.msra.mxu0 0.0
        %1375 = vmatprep.subr.mxu0 0.0
        %1376 = vmatpush1.msra.mxu0 0.0
        %1377 = vmatprep.subr.mxu0 0.0
        %1378 = vmatpush1.msra.mxu0 0.0
        %1379 = vmatprep.subr.mxu0 0.0
        %1380 = vmatpush1.msra.mxu0 0.0
        %1381 = vmatprep.subr.mxu0 0.0
        %1382 = vmatpush1.msra.mxu0 0.0
        %1383 = vmatprep.mubr.f32.mxu0 0.0
        %1384 = vmatmul.mubr.f32.gmra.mrb[0].mxu0 %v1310
        %v1385 = vpop.f32.mrb[0].mxu0
        %v1386 = vadd.f32 0.0, %v1385
        %v1387 = vpop.f32.mrb[0].mxu0
        %v1388 = vadd.f32 0.0, %v1387
        %1389 = vdwg.mxu0
        %v1390 = vld [vmem:[%s5] sm:$0xff]
        %v1391 = vld [vmem:[%s5 + $0x8] sm:$0xff]
        %v1392 = vld [vmem:[%s5 + $0x10] sm:$0xff]
        %v1393 = vld [vmem:[%s5 + $0x18] sm:$0xff]
        %v1394 = vld [vmem:[%s5 + $0x20] sm:$0xff]
        %v1395 = vld [vmem:[%s5 + $0x28] sm:$0xff]
        %v1396 = vld [vmem:[%s5 + $0x30] sm:$0xff]
        %v1397 = vld [vmem:[%s5 + $0x38] sm:$0xff]
        %v1398 = vld [vmem:[%s5 + $0x40] sm:$0xff]
        %v1399 = vld [vmem:[%s5 + $0x48] sm:$0xff]
        %v1400 = vld [vmem:[%s5 + $0x50] sm:$0xff]
        %v1401 = vld [vmem:[%s5 + $0x58] sm:$0xff]
        %v1402 = vld [vmem:[%s5 + $0x60] sm:$0xff]
        %v1403 = vld [vmem:[%s5 + $0x68] sm:$0xff]
        %v1404 = vld [vmem:[%s5 + $0x70] sm:$0xff]
        %v1405 = vld [vmem:[%s5 + $0x78] sm:$0xff]
        %v1406 = vld [vmem:[%s5 + $0x80] sm:$0xff]
        %v1407 = vld [vmem:[%s5 + $0x88] sm:$0xff]
        %v1408 = vld [vmem:[%s5 + $0x90] sm:$0xff]
        %v1409 = vld [vmem:[%s5 + $0x98] sm:$0xff]
        %v1410 = vld [vmem:[%s5 + $0xa0] sm:$0xff]
        %s1411 = scalar_lea.vmem %s4, 8
        %v1412 = vld [vmem:[%s1411] sm:$0x7f]
        %v1414 = vsel %vm1308, %v1412, 0
        %1416 = vmatprep.subr.mxu0 %v1304
        %1417 = vmatpush1.msra.mxu0 %v1303
        %1418 = vmatprep.subr.mxu0 %v1317
        %1419 = vmatpush1.msra.mxu0 %v1314
        %1420 = vmatprep.subr.mxu0 0.0
        %1421 = vmatpush1.msra.mxu0 0.0
        %1422 = vmatprep.subr.mxu0 0.0
        %1423 = vmatpush1.msra.mxu0 0.0
        %1424 = vmatprep.subr.mxu0 0.0
        %1425 = vmatpush1.msra.mxu0 0.0
        %1426 = vmatprep.subr.mxu0 0.0
        %1427 = vmatpush1.msra.mxu0 0.0
        %1428 = vmatprep.subr.mxu0 0.0
        %1429 = vmatpush1.msra.mxu0 0.0
        %1430 = vmatprep.subr.mxu0 0.0
        %1431 = vmatpush1.msra.mxu0 0.0
        %1432 = vmatprep.subr.mxu0 0.0
        %1433 = vmatpush1.msra.mxu0 0.0
        %1434 = vmatprep.subr.mxu0 0.0
        %1435 = vmatpush1.msra.mxu0 0.0
        %1436 = vmatprep.subr.mxu0 0.0
        %1437 = vmatpush1.msra.mxu0 0.0
        %1438 = vmatprep.subr.mxu0 0.0
        %1439 = vmatpush1.msra.mxu0 0.0
        %1440 = vmatprep.subr.mxu0 0.0
        %1441 = vmatpush1.msra.mxu0 0.0
        %1442 = vmatprep.subr.mxu0 0.0
        %1443 = vmatpush1.msra.mxu0 0.0
        %1444 = vmatprep.subr.mxu0 0.0
        %1445 = vmatpush1.msra.mxu0 0.0
        %1446 = vmatprep.subr.mxu0 0.0
        %1447 = vmatpush1.msra.mxu0 0.0
        %1448 = vmatprep.subr.mxu0 0.0
        %1449 = vmatpush1.msra.mxu0 0.0
        %1450 = vmatprep.subr.mxu0 0.0
        %1451 = vmatpush1.msra.mxu0 0.0
        %1452 = vmatprep.subr.mxu0 0.0
        %1453 = vmatpush1.msra.mxu0 0.0
        %1454 = vmatprep.subr.mxu0 0.0
        %1455 = vmatpush1.msra.mxu0 0.0
        %1456 = vmatprep.subr.mxu0 0.0
        %1457 = vmatpush1.msra.mxu0 0.0
        %1458 = vmatprep.subr.mxu0 0.0
        %1459 = vmatpush1.msra.mxu0 0.0
        %1460 = vmatprep.subr.mxu0 0.0
        %1461 = vmatpush1.msra.mxu0 0.0
        %1462 = vmatprep.subr.mxu0 0.0
        %1463 = vmatpush1.msra.mxu0 0.0
        %1464 = vmatprep.subr.mxu0 0.0
        %1465 = vmatpush1.msra.mxu0 0.0
        %1466 = vmatprep.subr.mxu0 0.0
        %1467 = vmatpush1.msra.mxu0 0.0
        %1468 = vmatprep.subr.mxu0 0.0
        %1469 = vmatpush1.msra.mxu0 0.0
        %1470 = vmatprep.subr.mxu0 0.0
        %1471 = vmatpush1.msra.mxu0 0.0
        %1472 = vmatprep.subr.mxu0 0.0
        %1473 = vmatpush1.msra.mxu0 0.0
        %1474 = vmatprep.subr.mxu0 0.0
        %1475 = vmatpush1.msra.mxu0 0.0
        %1476 = vmatprep.subr.mxu0 0.0
        %1477 = vmatpush1.msra.mxu0 0.0
        %1478 = vmatprep.subr.mxu0 0.0
        %1479 = vmatpush1.msra.mxu0 0.0
        %1480 = vmatprep.mubr.f32.mxu0 0.0
        %1481 = vmatmul.mubr.f32.gmra.mrb[0].mxu0 %v1414
        %v1482 = vpop.f32.mrb[0].mxu0
        %v1483 = vadd.f32 0.0, %v1482
        %v1484 = vpop.f32.mrb[0].mxu0
        %v1485 = vadd.f32 0.0, %v1484
        %1486 = vdwg.mxu0
        %s1487 = scalar_lea.vmem %s5, 168
        %v1488 = vld [vmem:[%s1487] sm:$0xff]
        %v1489 = vld [vmem:[%s1487 + $0x8] sm:$0xff]
        %v1490 = vld [vmem:[%s1487 + $0x10] sm:$0xff]
        %v1491 = vld [vmem:[%s1487 + $0x18] sm:$0xff]
        %v1492 = vld [vmem:[%s1487 + $0x20] sm:$0xff]
        %v1493 = vld [vmem:[%s1487 + $0x28] sm:$0xff]
        %v1494 = vld [vmem:[%s1487 + $0x30] sm:$0xff]
        %v1495 = vld [vmem:[%s1487 + $0x38] sm:$0xff]
        %v1496 = vld [vmem:[%s1487 + $0x40] sm:$0xff]
        %v1497 = vld [vmem:[%s1487 + $0x48] sm:$0xff]
        %v1498 = vld [vmem:[%s1487 + $0x50] sm:$0xff]
        %v1499 = vld [vmem:[%s1487 + $0x58] sm:$0xff]
        %v1500 = vld [vmem:[%s1487 + $0x60] sm:$0xff]
        %v1501 = vld [vmem:[%s1487 + $0x68] sm:$0xff]
        %v1502 = vld [vmem:[%s1487 + $0x70] sm:$0xff]
        %v1503 = vld [vmem:[%s1487 + $0x78] sm:$0xff]
        %v1504 = vld [vmem:[%s1487 + $0x80] sm:$0xff]
        %v1505 = vld [vmem:[%s1487 + $0x88] sm:$0xff]
        %v1506 = vld [vmem:[%s1487 + $0x90] sm:$0xff]
        %v1507 = vld [vmem:[%s1487 + $0x98] sm:$0xff]
        %v1508 = vld [vmem:[%s1487 + $0xa0] sm:$0xff]
        %vm1509 = vcmask 326656
        %v1511 = vsel %vm1509, %v1485, 0
        %1513 = vmatprep.subr.mxu0 0.0
        %1514 = vmatpush1.msra.mxu0 %v1488
        %1515 = vmatprep.subr.mxu0 0.0
        %1516 = vmatpush1.msra.mxu0 %v1489
        %1517 = vmatprep.subr.mxu0 0.0
        %1518 = vmatpush1.msra.mxu0 %v1490
        %1519 = vmatprep.subr.mxu0 0.0
        %1520 = vmatpush1.msra.mxu0 %v1491
        %1521 = vmatprep.subr.mxu0 0.0
        %1522 = vmatpush1.msra.mxu0 %v1492
        %1523 = vmatprep.subr.mxu0 0.0
        %1524 = vmatpush1.msra.mxu0 %v1493
        %1525 = vmatprep.subr.mxu0 0.0
        %1526 = vmatpush1.msra.mxu0 %v1494
        %1527 = vmatprep.subr.mxu0 0.0
        %1528 = vmatpush1.msra.mxu0 %v1495
        %1529 = vmatprep.subr.mxu0 0.0
        %1530 = vmatpush1.msra.mxu0 %v1496
        %1531 = vmatprep.subr.mxu0 0.0
        %1532 = vmatpush1.msra.mxu0 %v1497
        %1533 = vmatprep.subr.mxu0 0.0
        %1534 = vmatpush1.msra.mxu0 %v1498
        %1535 = vmatprep.subr.mxu0 0.0
        %1536 = vmatpush1.msra.mxu0 %v1499
        %1537 = vmatprep.subr.mxu0 0.0
        %1538 = vmatpush1.msra.mxu0 %v1500
        %1539 = vmatprep.subr.mxu0 0.0
        %1540 = vmatpush1.msra.mxu0 %v1501
        %1541 = vmatprep.subr.mxu0 0.0
        %1542 = vmatpush1.msra.mxu0 %v1502
        %1543 = vmatprep.subr.mxu0 0.0
        %1544 = vmatpush1.msra.mxu0 %v1503
        %1545 = vmatprep.subr.mxu0 0.0
        %1546 = vmatpush1.msra.mxu0 %v1504
        %1547 = vmatprep.subr.mxu0 0.0
        %1548 = vmatpush1.msra.mxu0 %v1505
        %1549 = vmatprep.subr.mxu0 0.0
        %1550 = vmatpush1.msra.mxu0 %v1506
        %1551 = vmatprep.subr.mxu0 0.0
        %1552 = vmatpush1.msra.mxu0 %v1507
        %1553 = vmatprep.subr.mxu0 0.0
        %1554 = vmatpush1.msra.mxu0 %v1508
        %1555 = vmatprep.subr.mxu0 0.0
        %1556 = vmatpush1.msra.mxu0 0.0
        %1557 = vmatprep.subr.mxu0 0.0
        %1558 = vmatpush1.msra.mxu0 0.0
        %1559 = vmatprep.subr.mxu0 0.0
        %1560 = vmatpush1.msra.mxu0 0.0
        %1561 = vmatprep.subr.mxu0 0.0
        %1562 = vmatpush1.msra.mxu0 0.0
        %1563 = vmatprep.subr.mxu0 0.0
        %1564 = vmatpush1.msra.mxu0 0.0
        %1565 = vmatprep.subr.mxu0 0.0
        %1566 = vmatpush1.msra.mxu0 0.0
        %1567 = vmatprep.subr.mxu0 0.0
        %1568 = vmatpush1.msra.mxu0 0.0
        %1569 = vmatprep.subr.mxu0 0.0
        %1570 = vmatpush1.msra.mxu0 0.0
        %1571 = vmatprep.subr.mxu0 0.0
        %1572 = vmatpush1.msra.mxu0 0.0
        %1573 = vmatprep.subr.mxu0 0.0
        %1574 = vmatpush1.msra.mxu0 0.0
        %1575 = vmatprep.subr.mxu0 0.0
        %1576 = vmatpush1.msra.mxu0 0.0
        %1577 = vmatprep.mubr.f32.mxu0 %v1511
        %1578 = vmatmul.mubr.f32.gmra.mrb[0].mxu0 %v1483
        %v1579 = vpop.f32.mrb[0].mxu0
        %v1580 = vadd.f32 0.0, %v1579
        %v1581 = vpop.f32.mrb[0].mxu0
        %1582 = vdwg.mxu0
        %v1584 = vsel %vm1509, %v1388, 0
        %1586 = vmatprep.subr.mxu0 0.0
        %1587 = vmatpush1.msra.mxu0 %v1390
        %1588 = vmatprep.subr.mxu0 0.0
        %1589 = vmatpush1.msra.mxu0 %v1391
        %1590 = vmatprep.subr.mxu0 0.0
        %1591 = vmatpush1.msra.mxu0 %v1392
        %1592 = vmatprep.subr.mxu0 0.0
        %1593 = vmatpush1.msra.mxu0 %v1393
        %1594 = vmatprep.subr.mxu0 0.0
        %1595 = vmatpush1.msra.mxu0 %v1394
        %1596 = vmatprep.subr.mxu0 0.0
        %1597 = vmatpush1.msra.mxu0 %v1395
        %1598 = vmatprep.subr.mxu0 0.0
        %1599 = vmatpush1.msra.mxu0 %v1396
        %1600 = vmatprep.subr.mxu0 0.0
        %1601 = vmatpush1.msra.mxu0 %v1397
        %1602 = vmatprep.subr.mxu0 0.0
        %1603 = vmatpush1.msra.mxu0 %v1398
        %1604 = vmatprep.subr.mxu0 0.0
        %1605 = vmatpush1.msra.mxu0 %v1399
        %1606 = vmatprep.subr.mxu0 0.0
        %1607 = vmatpush1.msra.mxu0 %v1400
        %1608 = vmatprep.subr.mxu0 0.0
        %1609 = vmatpush1.msra.mxu0 %v1401
        %1610 = vmatprep.subr.mxu0 0.0
        %1611 = vmatpush1.msra.mxu0 %v1402
        %1612 = vmatprep.subr.mxu0 0.0
        %1613 = vmatpush1.msra.mxu0 %v1403
        %1614 = vmatprep.subr.mxu0 0.0
        %1615 = vmatpush1.msra.mxu0 %v1404
        %1616 = vmatprep.subr.mxu0 0.0
        %1617 = vmatpush1.msra.mxu0 %v1405
        %1618 = vmatprep.subr.mxu0 0.0
        %1619 = vmatpush1.msra.mxu0 %v1406
        %1620 = vmatprep.subr.mxu0 0.0
        %1621 = vmatpush1.msra.mxu0 %v1407
        %1622 = vmatprep.subr.mxu0 0.0
        %1623 = vmatpush1.msra.mxu0 %v1408
        %1624 = vmatprep.subr.mxu0 0.0
        %1625 = vmatpush1.msra.mxu0 %v1409
        %1626 = vmatprep.subr.mxu0 0.0
        %1627 = vmatpush1.msra.mxu0 %v1410
        %1628 = vmatprep.subr.mxu0 0.0
        %1629 = vmatpush1.msra.mxu0 0.0
        %1630 = vmatprep.subr.mxu0 0.0
        %1631 = vmatpush1.msra.mxu0 0.0
        %1632 = vmatprep.subr.mxu0 0.0
        %1633 = vmatpush1.msra.mxu0 0.0
        %1634 = vmatprep.subr.mxu0 0.0
        %1635 = vmatpush1.msra.mxu0 0.0
        %1636 = vmatprep.subr.mxu0 0.0
        %1637 = vmatpush1.msra.mxu0 0.0
        %1638 = vmatprep.subr.mxu0 0.0
        %1639 = vmatpush1.msra.mxu0 0.0
        %1640 = vmatprep.subr.mxu0 0.0
        %1641 = vmatpush1.msra.mxu0 0.0
        %1642 = vmatprep.subr.mxu0 0.0
        %1643 = vmatpush1.msra.mxu0 0.0
        %1644 = vmatprep.subr.mxu0 0.0
        %1645 = vmatpush1.msra.mxu0 0.0
        %1646 = vmatprep.subr.mxu0 0.0
        %1647 = vmatpush1.msra.mxu0 0.0
        %1648 = vmatprep.subr.mxu0 0.0
        %1649 = vmatpush1.msra.mxu0 0.0
        %1650 = vmatprep.mubr.f32.mxu0 %v1584
        %1651 = vmatmul.mubr.f32.gmra.mrb[0].mxu0 %v1386
        %v1652 = vpop.f32.mrb[0].mxu0
        %v1653 = vadd.f32 %v1580, %v1652
        %v1654 = vpop.f32.mrb[0].mxu0
        %1655 = vdwg.mxu0
        %s1656 = scalar_lea.vmem %s4, 16
        %v1657 = vld [vmem:[%s1656] sm:$0x7f]
        %v1659 = vsel %vm1308, %v1657, 0
        %1661 = vmatprep.subr.mxu0 %v1304
        %1662 = vmatpush1.msra.mxu0 %v1303
        %1663 = vmatprep.subr.mxu0 %v1317
        %1664 = vmatpush1.msra.mxu0 %v1314
        %1665 = vmatprep.subr.mxu0 0.0
        %1666 = vmatpush1.msra.mxu0 0.0
        %1667 = vmatprep.subr.mxu0 0.0
        %1668 = vmatpush1.msra.mxu0 0.0
        %1669 = vmatprep.subr.mxu0 0.0
        %1670 = vmatpush1.msra.mxu0 0.0
        %1671 = vmatprep.subr.mxu0 0.0
        %1672 = vmatpush1.msra.mxu0 0.0
        %1673 = vmatprep.subr.mxu0 0.0
        %1674 = vmatpush1.msra.mxu0 0.0
        %1675 = vmatprep.subr.mxu0 0.0
        %1676 = vmatpush1.msra.mxu0 0.0
        %1677 = vmatprep.subr.mxu0 0.0
        %1678 = vmatpush1.msra.mxu0 0.0
        %1679 = vmatprep.subr.mxu0 0.0
        %1680 = vmatpush1.msra.mxu0 0.0
        %1681 = vmatprep.subr.mxu0 0.0
        %1682 = vmatpush1.msra.mxu0 0.0
        %1683 = vmatprep.subr.mxu0 0.0
        %1684 = vmatpush1.msra.mxu0 0.0
        %1685 = vmatprep.subr.mxu0 0.0
        %1686 = vmatpush1.msra.mxu0 0.0
        %1687 = vmatprep.subr.mxu0 0.0
        %1688 = vmatpush1.msra.mxu0 0.0
        %1689 = vmatprep.subr.mxu0 0.0
        %1690 = vmatpush1.msra.mxu0 0.0
        %1691 = vmatprep.subr.mxu0 0.0
        %1692 = vmatpush1.msra.mxu0 0.0
        %1693 = vmatprep.subr.mxu0 0.0
        %1694 = vmatpush1.msra.mxu0 0.0
        %1695 = vmatprep.subr.mxu0 0.0
        %1696 = vmatpush1.msra.mxu0 0.0
        %1697 = vmatprep.subr.mxu0 0.0
        %1698 = vmatpush1.msra.mxu0 0.0
        %1699 = vmatprep.subr.mxu0 0.0
        %1700 = vmatpush1.msra.mxu0 0.0
        %1701 = vmatprep.subr.mxu0 0.0
        %1702 = vmatpush1.msra.mxu0 0.0
        %1703 = vmatprep.subr.mxu0 0.0
        %1704 = vmatpush1.msra.mxu0 0.0
        %1705 = vmatprep.subr.mxu0 0.0
        %1706 = vmatpush1.msra.mxu0 0.0
        %1707 = vmatprep.subr.mxu0 0.0
        %1708 = vmatpush1.msra.mxu0 0.0
        %1709 = vmatprep.subr.mxu0 0.0
        %1710 = vmatpush1.msra.mxu0 0.0
        %1711 = vmatprep.subr.mxu0 0.0
        %1712 = vmatpush1.msra.mxu0 0.0
        %1713 = vmatprep.subr.mxu0 0.0
        %1714 = vmatpush1.msra.mxu0 0.0
        %1715 = vmatprep.subr.mxu0 0.0
        %1716 = vmatpush1.msra.mxu0 0.0
        %1717 = vmatprep.subr.mxu0 0.0
        %1718 = vmatpush1.msra.mxu0 0.0
        %1719 = vmatprep.subr.mxu0 0.0
        %1720 = vmatpush1.msra.mxu0 0.0
        %1721 = vmatprep.subr.mxu0 0.0
        %1722 = vmatpush1.msra.mxu0 0.0
        %1723 = vmatprep.subr.mxu0 0.0
        %1724 = vmatpush1.msra.mxu0 0.0
        %1725 = vmatprep.mubr.f32.mxu0 0.0
        %1726 = vmatmul.mubr.f32.gmra.mrb[0].mxu0 %v1659
        %v1727 = vpop.f32.mrb[0].mxu0
        %v1728 = vadd.f32 0.0, %v1727
        %v1729 = vpop.f32.mrb[0].mxu0
        %v1730 = vadd.f32 0.0, %v1729
        %1731 = vdwg.mxu0
        %s1732 = scalar_lea.vmem %s5, 336
        %v1733 = vld [vmem:[%s1732] sm:$0xff]
        %v1734 = vld [vmem:[%s1732 + $0x8] sm:$0xff]
        %v1735 = vld [vmem:[%s1732 + $0x10] sm:$0xff]
        %v1736 = vld [vmem:[%s1732 + $0x18] sm:$0xff]
        %v1737 = vld [vmem:[%s1732 + $0x20] sm:$0xff]
        %v1738 = vld [vmem:[%s1732 + $0x28] sm:$0xff]
        %v1739 = vld [vmem:[%s1732 + $0x30] sm:$0xff]
        %v1740 = vld [vmem:[%s1732 + $0x38] sm:$0xff]
        %v1741 = vld [vmem:[%s1732 + $0x40] sm:$0xff]
        %v1742 = vld [vmem:[%s1732 + $0x48] sm:$0xff]
        %v1743 = vld [vmem:[%s1732 + $0x50] sm:$0xff]
        %v1744 = vld [vmem:[%s1732 + $0x58] sm:$0xff]
        %v1745 = vld [vmem:[%s1732 + $0x60] sm:$0xff]
        %v1746 = vld [vmem:[%s1732 + $0x68] sm:$0xff]
        %v1747 = vld [vmem:[%s1732 + $0x70] sm:$0xff]
        %v1748 = vld [vmem:[%s1732 + $0x78] sm:$0xff]
        %v1749 = vld [vmem:[%s1732 + $0x80] sm:$0xff]
        %v1750 = vld [vmem:[%s1732 + $0x88] sm:$0xff]
        %v1751 = vld [vmem:[%s1732 + $0x90] sm:$0xff]
        %v1752 = vld [vmem:[%s1732 + $0x98] sm:$0xff]
        %v1753 = vld [vmem:[%s1732 + $0xa0] sm:$0xff]
        %v1755 = vsel %vm1509, %v1730, 0
        %1757 = vmatprep.subr.mxu0 0.0
        %1758 = vmatpush1.msra.mxu0 %v1733
        %1759 = vmatprep.subr.mxu0 0.0
        %1760 = vmatpush1.msra.mxu0 %v1734
        %1761 = vmatprep.subr.mxu0 0.0
        %1762 = vmatpush1.msra.mxu0 %v1735
        %1763 = vmatprep.subr.mxu0 0.0
        %1764 = vmatpush1.msra.mxu0 %v1736
        %1765 = vmatprep.subr.mxu0 0.0
        %1766 = vmatpush1.msra.mxu0 %v1737
        %1767 = vmatprep.subr.mxu0 0.0
        %1768 = vmatpush1.msra.mxu0 %v1738
        %1769 = vmatprep.subr.mxu0 0.0
        %1770 = vmatpush1.msra.mxu0 %v1739
        %1771 = vmatprep.subr.mxu0 0.0
        %1772 = vmatpush1.msra.mxu0 %v1740
        %1773 = vmatprep.subr.mxu0 0.0
        %1774 = vmatpush1.msra.mxu0 %v1741
        %1775 = vmatprep.subr.mxu0 0.0
        %1776 = vmatpush1.msra.mxu0 %v1742
        %1777 = vmatprep.subr.mxu0 0.0
        %1778 = vmatpush1.msra.mxu0 %v1743
        %1779 = vmatprep.subr.mxu0 0.0
        %1780 = vmatpush1.msra.mxu0 %v1744
        %1781 = vmatprep.subr.mxu0 0.0
        %1782 = vmatpush1.msra.mxu0 %v1745
        %1783 = vmatprep.subr.mxu0 0.0
        %1784 = vmatpush1.msra.mxu0 %v1746
        %1785 = vmatprep.subr.mxu0 0.0
        %1786 = vmatpush1.msra.mxu0 %v1747
        %1787 = vmatprep.subr.mxu0 0.0
        %1788 = vmatpush1.msra.mxu0 %v1748
        %1789 = vmatprep.subr.mxu0 0.0
        %1790 = vmatpush1.msra.mxu0 %v1749
        %1791 = vmatprep.subr.mxu0 0.0
        %1792 = vmatpush1.msra.mxu0 %v1750
        %1793 = vmatprep.subr.mxu0 0.0
        %1794 = vmatpush1.msra.mxu0 %v1751
        %1795 = vmatprep.subr.mxu0 0.0
        %1796 = vmatpush1.msra.mxu0 %v1752
        %1797 = vmatprep.subr.mxu0 0.0
        %1798 = vmatpush1.msra.mxu0 %v1753
        %1799 = vmatprep.subr.mxu0 0.0
        %1800 = vmatpush1.msra.mxu0 0.0
        %1801 = vmatprep.subr.mxu0 0.0
        %1802 = vmatpush1.msra.mxu0 0.0
        %1803 = vmatprep.subr.mxu0 0.0
        %1804 = vmatpush1.msra.mxu0 0.0
        %1805 = vmatprep.subr.mxu0 0.0
        %1806 = vmatpush1.msra.mxu0 0.0
        %1807 = vmatprep.subr.mxu0 0.0
        %1808 = vmatpush1.msra.mxu0 0.0
        %1809 = vmatprep.subr.mxu0 0.0
        %1810 = vmatpush1.msra.mxu0 0.0
        %1811 = vmatprep.subr.mxu0 0.0
        %1812 = vmatpush1.msra.mxu0 0.0
        %1813 = vmatprep.subr.mxu0 0.0
        %1814 = vmatpush1.msra.mxu0 0.0
        %1815 = vmatprep.subr.mxu0 0.0
        %1816 = vmatpush1.msra.mxu0 0.0
        %1817 = vmatprep.subr.mxu0 0.0
        %1818 = vmatpush1.msra.mxu0 0.0
        %1819 = vmatprep.subr.mxu0 0.0
        %1820 = vmatpush1.msra.mxu0 0.0
        %1821 = vmatprep.mubr.f32.mxu0 %v1755
        %1822 = vmatmul.mubr.f32.gmra.mrb[0].mxu0 %v1728
        %v1823 = vpop.f32.mrb[0].mxu0
        %v1824 = vadd.f32 0.0, %v1823
        %v1825 = vpop.f32.mrb[0].mxu0
        %1826 = vdwg.mxu0
        %v1827 = vadd.f32 %v1653, %v1824
        %s1828 = scalar_lea.vmem %s4, 24
        %v1829 = vld [vmem:[%s1828] sm:$0x7f]
        %v1831 = vsel %vm1308, %v1829, 0
        %1833 = vmatprep.subr.mxu0 %v1304
        %1834 = vmatpush1.msra.mxu0 %v1303
        %1835 = vmatprep.subr.mxu0 %v1317
        %1836 = vmatpush1.msra.mxu0 %v1314
        %1837 = vmatprep.subr.mxu0 0.0
        %1838 = vmatpush1.msra.mxu0 0.0
        %1839 = vmatprep.subr.mxu0 0.0
        %1840 = vmatpush1.msra.mxu0 0.0
        %1841 = vmatprep.subr.mxu0 0.0
        %1842 = vmatpush1.msra.mxu0 0.0
        %1843 = vmatprep.subr.mxu0 0.0
        %1844 = vmatpush1.msra.mxu0 0.0
        %1845 = vmatprep.subr.mxu0 0.0
        %1846 = vmatpush1.msra.mxu0 0.0
        %1847 = vmatprep.subr.mxu0 0.0
        %1848 = vmatpush1.msra.mxu0 0.0
        %1849 = vmatprep.subr.mxu0 0.0
        %1850 = vmatpush1.msra.mxu0 0.0
        %1851 = vmatprep.subr.mxu0 0.0
        %1852 = vmatpush1.msra.mxu0 0.0
        %1853 = vmatprep.subr.mxu0 0.0
        %1854 = vmatpush1.msra.mxu0 0.0
        %1855 = vmatprep.subr.mxu0 0.0
        %1856 = vmatpush1.msra.mxu0 0.0
        %1857 = vmatprep.subr.mxu0 0.0
        %1858 = vmatpush1.msra.mxu0 0.0
        %1859 = vmatprep.subr.mxu0 0.0
        %1860 = vmatpush1.msra.mxu0 0.0
        %1861 = vmatprep.subr.mxu0 0.0
        %1862 = vmatpush1.msra.mxu0 0.0
        %1863 = vmatprep.subr.mxu0 0.0
        %1864 = vmatpush1.msra.mxu0 0.0
        %1865 = vmatprep.subr.mxu0 0.0
        %1866 = vmatpush1.msra.mxu0 0.0
        %1867 = vmatprep.subr.mxu0 0.0
        %1868 = vmatpush1.msra.mxu0 0.0
        %1869 = vmatprep.subr.mxu0 0.0
        %1870 = vmatpush1.msra.mxu0 0.0
        %1871 = vmatprep.subr.mxu0 0.0
        %1872 = vmatpush1.msra.mxu0 0.0
        %1873 = vmatprep.subr.mxu0 0.0
        %1874 = vmatpush1.msra.mxu0 0.0
        %1875 = vmatprep.subr.mxu0 0.0
        %1876 = vmatpush1.msra.mxu0 0.0
        %1877 = vmatprep.subr.mxu0 0.0
        %1878 = vmatpush1.msra.mxu0 0.0
        %1879 = vmatprep.subr.mxu0 0.0
        %1880 = vmatpush1.msra.mxu0 0.0
        %1881 = vmatprep.subr.mxu0 0.0
        %1882 = vmatpush1.msra.mxu0 0.0
        %1883 = vmatprep.subr.mxu0 0.0
        %1884 = vmatpush1.msra.mxu0 0.0
        %1885 = vmatprep.subr.mxu0 0.0
        %1886 = vmatpush1.msra.mxu0 0.0
        %1887 = vmatprep.subr.mxu0 0.0
        %1888 = vmatpush1.msra.mxu0 0.0
        %1889 = vmatprep.subr.mxu0 0.0
        %1890 = vmatpush1.msra.mxu0 0.0
        %1891 = vmatprep.subr.mxu0 0.0
        %1892 = vmatpush1.msra.mxu0 0.0
        %1893 = vmatprep.subr.mxu0 0.0
        %1894 = vmatpush1.msra.mxu0 0.0
        %1895 = vmatprep.subr.mxu0 0.0
        %1896 = vmatpush1.msra.mxu0 0.0
        %1897 = vmatprep.mubr.f32.mxu0 0.0
        %1898 = vmatmul.mubr.f32.gmra.mrb[0].mxu0 %v1831
        %v1899 = vpop.f32.mrb[0].mxu0
        %v1900 = vadd.f32 0.0, %v1899
        %v1901 = vpop.f32.mrb[0].mxu0
        %v1902 = vadd.f32 0.0, %v1901
        %1903 = vdwg.mxu0
        %s1904 = scalar_lea.vmem %s5, 504
        %v1905 = vld [vmem:[%s1904] sm:$0xff]
        %v1906 = vld [vmem:[%s1904 + $0x8] sm:$0xff]
        %v1907 = vld [vmem:[%s1904 + $0x10] sm:$0xff]
        %v1908 = vld [vmem:[%s1904 + $0x18] sm:$0xff]
        %v1909 = vld [vmem:[%s1904 + $0x20] sm:$0xff]
        %v1910 = vld [vmem:[%s1904 + $0x28] sm:$0xff]
        %v1911 = vld [vmem:[%s1904 + $0x30] sm:$0xff]
        %v1912 = vld [vmem:[%s1904 + $0x38] sm:$0xff]
        %v1913 = vld [vmem:[%s1904 + $0x40] sm:$0xff]
        %v1914 = vld [vmem:[%s1904 + $0x48] sm:$0xff]
        %v1915 = vld [vmem:[%s1904 + $0x50] sm:$0xff]
        %v1916 = vld [vmem:[%s1904 + $0x58] sm:$0xff]
        %v1917 = vld [vmem:[%s1904 + $0x60] sm:$0xff]
        %v1918 = vld [vmem:[%s1904 + $0x68] sm:$0xff]
        %v1919 = vld [vmem:[%s1904 + $0x70] sm:$0xff]
        %v1920 = vld [vmem:[%s1904 + $0x78] sm:$0xff]
        %v1921 = vld [vmem:[%s1904 + $0x80] sm:$0xff]
        %v1922 = vld [vmem:[%s1904 + $0x88] sm:$0xff]
        %v1923 = vld [vmem:[%s1904 + $0x90] sm:$0xff]
        %v1924 = vld [vmem:[%s1904 + $0x98] sm:$0xff]
        %v1925 = vld [vmem:[%s1904 + $0xa0] sm:$0xff]
        %v1927 = vsel %vm1509, %v1902, 0
        %1929 = vmatprep.subr.mxu0 0.0
        %1930 = vmatpush1.msra.mxu0 %v1905
        %1931 = vmatprep.subr.mxu0 0.0
        %1932 = vmatpush1.msra.mxu0 %v1906
        %1933 = vmatprep.subr.mxu0 0.0
        %1934 = vmatpush1.msra.mxu0 %v1907
        %1935 = vmatprep.subr.mxu0 0.0
        %1936 = vmatpush1.msra.mxu0 %v1908
        %1937 = vmatprep.subr.mxu0 0.0
        %1938 = vmatpush1.msra.mxu0 %v1909
        %1939 = vmatprep.subr.mxu0 0.0
        %1940 = vmatpush1.msra.mxu0 %v1910
        %1941 = vmatprep.subr.mxu0 0.0
        %1942 = vmatpush1.msra.mxu0 %v1911
        %1943 = vmatprep.subr.mxu0 0.0
        %1944 = vmatpush1.msra.mxu0 %v1912
        %1945 = vmatprep.subr.mxu0 0.0
        %1946 = vmatpush1.msra.mxu0 %v1913
        %1947 = vmatprep.subr.mxu0 0.0
        %1948 = vmatpush1.msra.mxu0 %v1914
        %1949 = vmatprep.subr.mxu0 0.0
        %1950 = vmatpush1.msra.mxu0 %v1915
        %1951 = vmatprep.subr.mxu0 0.0
        %1952 = vmatpush1.msra.mxu0 %v1916
        %1953 = vmatprep.subr.mxu0 0.0
        %1954 = vmatpush1.msra.mxu0 %v1917
        %1955 = vmatprep.subr.mxu0 0.0
        %1956 = vmatpush1.msra.mxu0 %v1918
        %1957 = vmatprep.subr.mxu0 0.0
        %1958 = vmatpush1.msra.mxu0 %v1919
        %1959 = vmatprep.subr.mxu0 0.0
        %1960 = vmatpush1.msra.mxu0 %v1920
        %1961 = vmatprep.subr.mxu0 0.0
        %1962 = vmatpush1.msra.mxu0 %v1921
        %1963 = vmatprep.subr.mxu0 0.0
        %1964 = vmatpush1.msra.mxu0 %v1922
        %1965 = vmatprep.subr.mxu0 0.0
        %1966 = vmatpush1.msra.mxu0 %v1923
        %1967 = vmatprep.subr.mxu0 0.0
        %1968 = vmatpush1.msra.mxu0 %v1924
        %1969 = vmatprep.subr.mxu0 0.0
        %1970 = vmatpush1.msra.mxu0 %v1925
        %1971 = vmatprep.subr.mxu0 0.0
        %1972 = vmatpush1.msra.mxu0 0.0
        %1973 = vmatprep.subr.mxu0 0.0
        %1974 = vmatpush1.msra.mxu0 0.0
        %1975 = vmatprep.subr.mxu0 0.0
        %1976 = vmatpush1.msra.mxu0 0.0
        %1977 = vmatprep.subr.mxu0 0.0
        %1978 = vmatpush1.msra.mxu0 0.0
        %1979 = vmatprep.subr.mxu0 0.0
        %1980 = vmatpush1.msra.mxu0 0.0
        %1981 = vmatprep.subr.mxu0 0.0
        %1982 = vmatpush1.msra.mxu0 0.0
        %1983 = vmatprep.subr.mxu0 0.0
        %1984 = vmatpush1.msra.mxu0 0.0
        %1985 = vmatprep.subr.mxu0 0.0
        %1986 = vmatpush1.msra.mxu0 0.0
        %1987 = vmatprep.subr.mxu0 0.0
        %1988 = vmatpush1.msra.mxu0 0.0
        %1989 = vmatprep.subr.mxu0 0.0
        %1990 = vmatpush1.msra.mxu0 0.0
        %1991 = vmatprep.subr.mxu0 0.0
        %1992 = vmatpush1.msra.mxu0 0.0
        %1993 = vmatprep.mubr.f32.mxu0 %v1927
        %1994 = vmatmul.mubr.f32.gmra.mrb[0].mxu0 %v1900
        %v1995 = vpop.f32.mrb[0].mxu0
        %v1996 = vadd.f32 0.0, %v1995
        %v1997 = vpop.f32.mrb[0].mxu0
        %1998 = vdwg.mxu0
        %v1999 = vadd.f32 %v1827, %v1996
        %s2000 = scalar_lea.vmem %s4, 32
        %v2001 = vld [vmem:[%s2000] sm:$0x7f]
        %v2003 = vsel %vm1308, %v2001, 0
        %2005 = vmatprep.subr.mxu0 %v1304
        %2006 = vmatpush1.msra.mxu0 %v1303
        %2007 = vmatprep.subr.mxu0 %v1317
        %2008 = vmatpush1.msra.mxu0 %v1314
        %2009 = vmatprep.subr.mxu0 0.0
        %2010 = vmatpush1.msra.mxu0 0.0
        %2011 = vmatprep.subr.mxu0 0.0
        %2012 = vmatpush1.msra.mxu0 0.0
        %2013 = vmatprep.subr.mxu0 0.0
        %2014 = vmatpush1.msra.mxu0 0.0
        %2015 = vmatprep.subr.mxu0 0.0
        %2016 = vmatpush1.msra.mxu0 0.0
        %2017 = vmatprep.subr.mxu0 0.0
        %2018 = vmatpush1.msra.mxu0 0.0
        %2019 = vmatprep.subr.mxu0 0.0
        %2020 = vmatpush1.msra.mxu0 0.0
        %2021 = vmatprep.subr.mxu0 0.0
        %2022 = vmatpush1.msra.mxu0 0.0
        %2023 = vmatprep.subr.mxu0 0.0
        %2024 = vmatpush1.msra.mxu0 0.0
        %2025 = vmatprep.subr.mxu0 0.0
        %2026 = vmatpush1.msra.mxu0 0.0
        %2027 = vmatprep.subr.mxu0 0.0
        %2028 = vmatpush1.msra.mxu0 0.0
        %2029 = vmatprep.subr.mxu0 0.0
        %2030 = vmatpush1.msra.mxu0 0.0
        %2031 = vmatprep.subr.mxu0 0.0
        %2032 = vmatpush1.msra.mxu0 0.0
        %2033 = vmatprep.subr.mxu0 0.0
        %2034 = vmatpush1.msra.mxu0 0.0
        %2035 = vmatprep.subr.mxu0 0.0
        %2036 = vmatpush1.msra.mxu0 0.0
        %2037 = vmatprep.subr.mxu0 0.0
        %2038 = vmatpush1.msra.mxu0 0.0
        %2039 = vmatprep.subr.mxu0 0.0
        %2040 = vmatpush1.msra.mxu0 0.0
        %2041 = vmatprep.subr.mxu0 0.0
        %2042 = vmatpush1.msra.mxu0 0.0
        %2043 = vmatprep.subr.mxu0 0.0
        %2044 = vmatpush1.msra.mxu0 0.0
        %2045 = vmatprep.subr.mxu0 0.0
        %2046 = vmatpush1.msra.mxu0 0.0
        %2047 = vmatprep.subr.mxu0 0.0
        %2048 = vmatpush1.msra.mxu0 0.0
        %2049 = vmatprep.subr.mxu0 0.0
        %2050 = vmatpush1.msra.mxu0 0.0
        %2051 = vmatprep.subr.mxu0 0.0
        %2052 = vmatpush1.msra.mxu0 0.0
        %2053 = vmatprep.subr.mxu0 0.0
        %2054 = vmatpush1.msra.mxu0 0.0
        %2055 = vmatprep.subr.mxu0 0.0
        %2056 = vmatpush1.msra.mxu0 0.0
        %2057 = vmatprep.subr.mxu0 0.0
        %2058 = vmatpush1.msra.mxu0 0.0
        %2059 = vmatprep.subr.mxu0 0.0
        %2060 = vmatpush1.msra.mxu0 0.0
        %2061 = vmatprep.subr.mxu0 0.0
        %2062 = vmatpush1.msra.mxu0 0.0
        %2063 = vmatprep.subr.mxu0 0.0
        %2064 = vmatpush1.msra.mxu0 0.0
        %2065 = vmatprep.subr.mxu0 0.0
        %2066 = vmatpush1.msra.mxu0 0.0
        %2067 = vmatprep.subr.mxu0 0.0
        %2068 = vmatpush1.msra.mxu0 0.0
        %2069 = vmatprep.mubr.f32.mxu0 0.0
        %2070 = vmatmul.mubr.f32.gmra.mrb[0].mxu0 %v2003
        %v2071 = vpop.f32.mrb[0].mxu0
        %v2072 = vadd.f32 0.0, %v2071
        %v2073 = vpop.f32.mrb[0].mxu0
        %v2074 = vadd.f32 0.0, %v2073
        %2075 = vdwg.mxu0
        %s2076 = scalar_lea.vmem %s5, 672
        %v2077 = vld [vmem:[%s2076] sm:$0xff]
        %v2078 = vld [vmem:[%s2076 + $0x8] sm:$0xff]
        %v2079 = vld [vmem:[%s2076 + $0x10] sm:$0xff]
        %v2080 = vld [vmem:[%s2076 + $0x18] sm:$0xff]
        %v2081 = vld [vmem:[%s2076 + $0x20] sm:$0xff]
        %v2082 = vld [vmem:[%s2076 + $0x28] sm:$0xff]
        %v2083 = vld [vmem:[%s2076 + $0x30] sm:$0xff]
        %v2084 = vld [vmem:[%s2076 + $0x38] sm:$0xff]
        %v2085 = vld [vmem:[%s2076 + $0x40] sm:$0xff]
        %v2086 = vld [vmem:[%s2076 + $0x48] sm:$0xff]
        %v2087 = vld [vmem:[%s2076 + $0x50] sm:$0xff]
        %v2088 = vld [vmem:[%s2076 + $0x58] sm:$0xff]
        %v2089 = vld [vmem:[%s2076 + $0x60] sm:$0xff]
        %v2090 = vld [vmem:[%s2076 + $0x68] sm:$0xff]
        %v2091 = vld [vmem:[%s2076 + $0x70] sm:$0xff]
        %v2092 = vld [vmem:[%s2076 + $0x78] sm:$0xff]
        %v2093 = vld [vmem:[%s2076 + $0x80] sm:$0xff]
        %v2094 = vld [vmem:[%s2076 + $0x88] sm:$0xff]
        %v2095 = vld [vmem:[%s2076 + $0x90] sm:$0xff]
        %v2096 = vld [vmem:[%s2076 + $0x98] sm:$0xff]
        %v2097 = vld [vmem:[%s2076 + $0xa0] sm:$0xff]
        %v2099 = vsel %vm1509, %v2074, 0
        %2101 = vmatprep.subr.mxu0 0.0
        %2102 = vmatpush1.msra.mxu0 %v2077
        %2103 = vmatprep.subr.mxu0 0.0
        %2104 = vmatpush1.msra.mxu0 %v2078
        %2105 = vmatprep.subr.mxu0 0.0
        %2106 = vmatpush1.msra.mxu0 %v2079
        %2107 = vmatprep.subr.mxu0 0.0
        %2108 = vmatpush1.msra.mxu0 %v2080
        %2109 = vmatprep.subr.mxu0 0.0
        %2110 = vmatpush1.msra.mxu0 %v2081
        %2111 = vmatprep.subr.mxu0 0.0
        %2112 = vmatpush1.msra.mxu0 %v2082
        %2113 = vmatprep.subr.mxu0 0.0
        %2114 = vmatpush1.msra.mxu0 %v2083
        %2115 = vmatprep.subr.mxu0 0.0
        %2116 = vmatpush1.msra.mxu0 %v2084
        %2117 = vmatprep.subr.mxu0 0.0
        %2118 = vmatpush1.msra.mxu0 %v2085
        %2119 = vmatprep.subr.mxu0 0.0
        %2120 = vmatpush1.msra.mxu0 %v2086
        %2121 = vmatprep.subr.mxu0 0.0
        %2122 = vmatpush1.msra.mxu0 %v2087
        %2123 = vmatprep.subr.mxu0 0.0
        %2124 = vmatpush1.msra.mxu0 %v2088
        %2125 = vmatprep.subr.mxu0 0.0
        %2126 = vmatpush1.msra.mxu0 %v2089
        %2127 = vmatprep.subr.mxu0 0.0
        %2128 = vmatpush1.msra.mxu0 %v2090
        %2129 = vmatprep.subr.mxu0 0.0
        %2130 = vmatpush1.msra.mxu0 %v2091
        %2131 = vmatprep.subr.mxu0 0.0
        %2132 = vmatpush1.msra.mxu0 %v2092
        %2133 = vmatprep.subr.mxu0 0.0
        %2134 = vmatpush1.msra.mxu0 %v2093
        %2135 = vmatprep.subr.mxu0 0.0
        %2136 = vmatpush1.msra.mxu0 %v2094
        %2137 = vmatprep.subr.mxu0 0.0
        %2138 = vmatpush1.msra.mxu0 %v2095
        %2139 = vmatprep.subr.mxu0 0.0
        %2140 = vmatpush1.msra.mxu0 %v2096
        %2141 = vmatprep.subr.mxu0 0.0
        %2142 = vmatpush1.msra.mxu0 %v2097
        %2143 = vmatprep.subr.mxu0 0.0
        %2144 = vmatpush1.msra.mxu0 0.0
        %2145 = vmatprep.subr.mxu0 0.0
        %2146 = vmatpush1.msra.mxu0 0.0
        %2147 = vmatprep.subr.mxu0 0.0
        %2148 = vmatpush1.msra.mxu0 0.0
        %2149 = vmatprep.subr.mxu0 0.0
        %2150 = vmatpush1.msra.mxu0 0.0
        %2151 = vmatprep.subr.mxu0 0.0
        %2152 = vmatpush1.msra.mxu0 0.0
        %2153 = vmatprep.subr.mxu0 0.0
        %2154 = vmatpush1.msra.mxu0 0.0
        %2155 = vmatprep.subr.mxu0 0.0
        %2156 = vmatpush1.msra.mxu0 0.0
        %2157 = vmatprep.subr.mxu0 0.0
        %2158 = vmatpush1.msra.mxu0 0.0
        %2159 = vmatprep.subr.mxu0 0.0
        %2160 = vmatpush1.msra.mxu0 0.0
        %2161 = vmatprep.subr.mxu0 0.0
        %2162 = vmatpush1.msra.mxu0 0.0
        %2163 = vmatprep.subr.mxu0 0.0
        %2164 = vmatpush1.msra.mxu0 0.0
        %2165 = vmatprep.mubr.f32.mxu0 %v2099
        %2166 = vmatmul.mubr.f32.gmra.mrb[0].mxu0 %v2072
        %v2167 = vpop.f32.mrb[0].mxu0
        %v2168 = vadd.f32 0.0, %v2167
        %v2169 = vpop.f32.mrb[0].mxu0
        %2170 = vdwg.mxu0
        %v2171 = vadd.f32 %v1999, %v2168
        %v2172 = vld [vmem:[%s6] sm:$0x1]
        %v2174 = vlaneseq
        %v2175 = vshrl.u32 %v2174, 7
        %v2176 = vsub.s32 0, %v2175
        %v2177 = vrot.slane %v2172, %v2176
        %v2179 = vadd.f32 %v2171, %v2177
        %v2180 = vmul.f32 %v2179, 0.6666667
        %v2181 = vtanh.pop %v2180
        %v2182 = vmul.f32 %v2181, 1.716
        %v2183 = vld [vmem:[%s7] sm:$0xff]
        %v2184 = vld [vmem:[%s7 + $0x8] sm:$0xff]
        %v2185 = vld [vmem:[%s7 + $0x10] sm:$0xff]
        %v2186 = vld [vmem:[%s7 + $0x18] sm:$0xff]
        %v2187 = vld [vmem:[%s7 + $0x20] sm:$0xff]
        %v2188 = vld [vmem:[%s7 + $0x28] sm:$0xff]
        %v2189 = vld [vmem:[%s7 + $0x30] sm:$0xff]
        %v2190 = vld [vmem:[%s7 + $0x38] sm:$0xff]
        %v2191 = vld [vmem:[%s7 + $0x40] sm:$0xff]
        %v2192 = vld [vmem:[%s7 + $0x48] sm:$0xff]
        %v2193 = vld [vmem:[%s7 + $0x50] sm:$0xf]
        %s2194 = scalar_lea.vmem %s7, 88
        %v2195 = vld [vmem:[%s2194] sm:$0xff]
        %v2196 = vld [vmem:[%s2194 + $0x8] sm:$0xff]
        %v2197 = vld [vmem:[%s2194 + $0x10] sm:$0xff]
        %v2198 = vld [vmem:[%s2194 + $0x18] sm:$0xff]
        %v2199 = vld [vmem:[%s2194 + $0x20] sm:$0xff]
        %v2200 = vld [vmem:[%s2194 + $0x28] sm:$0xff]
        %v2201 = vld [vmem:[%s2194 + $0x30] sm:$0xff]
        %v2202 = vld [vmem:[%s2194 + $0x38] sm:$0xff]
        %v2203 = vld [vmem:[%s2194 + $0x40] sm:$0xff]
        %v2204 = vld [vmem:[%s2194 + $0x48] sm:$0xff]
        %v2205 = vld [vmem:[%s2194 + $0x50] sm:$0xf]
        %v2207 = vrot.slane %v2182, 1
        %vm2208 = vcmask 687104
        %v2209 = vsel %vm2208, %v2207, 0
        %vm2211 = vcmask 1043456
        %v2213 = vsel %vm2211, %v2205, 0
        %2215 = vmatprep.subr.mxu0 0.0
        %2216 = vmatpush1.msra.mxu0 %v2195
        %2217 = vmatprep.subr.mxu0 0.0
        %2218 = vmatpush1.msra.mxu0 %v2196
        %2219 = vmatprep.subr.mxu0 0.0
        %2220 = vmatpush1.msra.mxu0 %v2197
        %2221 = vmatprep.subr.mxu0 0.0
        %2222 = vmatpush1.msra.mxu0 %v2198
        %2223 = vmatprep.subr.mxu0 0.0
        %2224 = vmatpush1.msra.mxu0 %v2199
        %2225 = vmatprep.subr.mxu0 0.0
        %2226 = vmatpush1.msra.mxu0 %v2200
        %2227 = vmatprep.subr.mxu0 0.0
        %2228 = vmatpush1.msra.mxu0 %v2201
        %2229 = vmatprep.subr.mxu0 0.0
        %2230 = vmatpush1.msra.mxu0 %v2202
        %2231 = vmatprep.subr.mxu0 0.0
        %2232 = vmatpush1.msra.mxu0 %v2203
        %2233 = vmatprep.subr.mxu0 0.0
        %2234 = vmatpush1.msra.mxu0 %v2204
        %2235 = vmatprep.subr.mxu0 0.0
        %2236 = vmatpush1.msra.mxu0 %v2213
        %2237 = vmatprep.subr.mxu0 0.0
        %2238 = vmatpush1.msra.mxu0 0.0
        %2239 = vmatprep.subr.mxu0 0.0
        %2240 = vmatpush1.msra.mxu0 0.0
        %2241 = vmatprep.subr.mxu0 0.0
        %2242 = vmatpush1.msra.mxu0 0.0
        %2243 = vmatprep.subr.mxu0 0.0
        %2244 = vmatpush1.msra.mxu0 0.0
        %2245 = vmatprep.subr.mxu0 0.0
        %2246 = vmatpush1.msra.mxu0 0.0
        %2247 = vmatprep.subr.mxu0 0.0
        %2248 = vmatpush1.msra.mxu0 0.0
        %2249 = vmatprep.subr.mxu0 0.0
        %2250 = vmatpush1.msra.mxu0 0.0
        %2251 = vmatprep.subr.mxu0 0.0
        %2252 = vmatpush1.msra.mxu0 0.0
        %2253 = vmatprep.subr.mxu0 0.0
        %2254 = vmatpush1.msra.mxu0 0.0
        %2255 = vmatprep.subr.mxu0 0.0
        %2256 = vmatpush1.msra.mxu0 0.0
        %2257 = vmatprep.subr.mxu0 0.0
        %2258 = vmatpush1.msra.mxu0 0.0
        %2259 = vmatprep.subr.mxu0 0.0
        %2260 = vmatpush1.msra.mxu0 0.0
        %2261 = vmatprep.subr.mxu0 0.0
        %2262 = vmatpush1.msra.mxu0 0.0
        %2263 = vmatprep.subr.mxu0 0.0
        %2264 = vmatpush1.msra.mxu0 0.0
        %2265 = vmatprep.subr.mxu0 0.0
        %2266 = vmatpush1.msra.mxu0 0.0
        %2267 = vmatprep.subr.mxu0 0.0
        %2268 = vmatpush1.msra.mxu0 0.0
        %2269 = vmatprep.subr.mxu0 0.0
        %2270 = vmatpush1.msra.mxu0 0.0
        %2271 = vmatprep.subr.mxu0 0.0
        %2272 = vmatpush1.msra.mxu0 0.0
        %2273 = vmatprep.subr.mxu0 0.0
        %2274 = vmatpush1.msra.mxu0 0.0
        %2275 = vmatprep.subr.mxu0 0.0
        %2276 = vmatpush1.msra.mxu0 0.0
        %2277 = vmatprep.subr.mxu0 0.0
        %2278 = vmatpush1.msra.mxu0 0.0
        %2279 = vmatprep.mubr.f32.mxu0 0.0
        %2280 = vmatmul.mubr.f32.gmra.mrb[0].mxu0 %v2209
        %v2281 = vpop.f32.mrb[0].mxu0
        %v2282 = vadd.f32 0.0, %v2281
        %v2283 = vpop.f32.mrb[0].mxu0
        %2284 = vdwg.mxu0
        %v2285 = vsel %vm2208, %v2182, 0
        %v2288 = vsel %vm2211, %v2193, 0
        %2290 = vmatprep.subr.mxu0 0.0
        %2291 = vmatpush1.msra.mxu0 %v2183
        %2292 = vmatprep.subr.mxu0 0.0
        %2293 = vmatpush1.msra.mxu0 %v2184
        %2294 = vmatprep.subr.mxu0 0.0
        %2295 = vmatpush1.msra.mxu0 %v2185
        %2296 = vmatprep.subr.mxu0 0.0
        %2297 = vmatpush1.msra.mxu0 %v2186
        %2298 = vmatprep.subr.mxu0 0.0
        %2299 = vmatpush1.msra.mxu0 %v2187
        %2300 = vmatprep.subr.mxu0 0.0
        %2301 = vmatpush1.msra.mxu0 %v2188
        %2302 = vmatprep.subr.mxu0 0.0
        %2303 = vmatpush1.msra.mxu0 %v2189
        %2304 = vmatprep.subr.mxu0 0.0
        %2305 = vmatpush1.msra.mxu0 %v2190
        %2306 = vmatprep.subr.mxu0 0.0
        %2307 = vmatpush1.msra.mxu0 %v2191
        %2308 = vmatprep.subr.mxu0 0.0
        %2309 = vmatpush1.msra.mxu0 %v2192
        %2310 = vmatprep.subr.mxu0 0.0
        %2311 = vmatpush1.msra.mxu0 %v2288
        %2312 = vmatprep.subr.mxu0 0.0
        %2313 = vmatpush1.msra.mxu0 0.0
        %2314 = vmatprep.subr.mxu0 0.0
        %2315 = vmatpush1.msra.mxu0 0.0
        %2316 = vmatprep.subr.mxu0 0.0
        %2317 = vmatpush1.msra.mxu0 0.0
        %2318 = vmatprep.subr.mxu0 0.0
        %2319 = vmatpush1.msra.mxu0 0.0
        %2320 = vmatprep.subr.mxu0 0.0
        %2321 = vmatpush1.msra.mxu0 0.0
        %2322 = vmatprep.subr.mxu0 0.0
        %2323 = vmatpush1.msra.mxu0 0.0
        %2324 = vmatprep.subr.mxu0 0.0
        %2325 = vmatpush1.msra.mxu0 0.0
        %2326 = vmatprep.subr.mxu0 0.0
        %2327 = vmatpush1.msra.mxu0 0.0
        %2328 = vmatprep.subr.mxu0 0.0
        %2329 = vmatpush1.msra.mxu0 0.0
        %2330 = vmatprep.subr.mxu0 0.0
        %2331 = vmatpush1.msra.mxu0 0.0
        %2332 = vmatprep.subr.mxu0 0.0
        %2333 = vmatpush1.msra.mxu0 0.0
        %2334 = vmatprep.subr.mxu0 0.0
        %2335 = vmatpush1.msra.mxu0 0.0
        %2336 = vmatprep.subr.mxu0 0.0
        %2337 = vmatpush1.msra.mxu0 0.0
        %2338 = vmatprep.subr.mxu0 0.0
        %2339 = vmatpush1.msra.mxu0 0.0
        %2340 = vmatprep.subr.mxu0 0.0
        %2341 = vmatpush1.msra.mxu0 0.0
        %2342 = vmatprep.subr.mxu0 0.0
        %2343 = vmatpush1.msra.mxu0 0.0
        %2344 = vmatprep.subr.mxu0 0.0
        %2345 = vmatpush1.msra.mxu0 0.0
        %2346 = vmatprep.subr.mxu0 0.0
        %2347 = vmatpush1.msra.mxu0 0.0
        %2348 = vmatprep.subr.mxu0 0.0
        %2349 = vmatpush1.msra.mxu0 0.0
        %2350 = vmatprep.subr.mxu0 0.0
        %2351 = vmatpush1.msra.mxu0 0.0
        %2352 = vmatprep.subr.mxu0 0.0
        %2353 = vmatpush1.msra.mxu0 0.0
        %2354 = vmatprep.mubr.f32.mxu0 0.0
        %2355 = vmatmul.mubr.f32.gmra.mrb[0].mxu0 %v2285
        %v2356 = vpop.f32.mrb[0].mxu0
        %v2357 = vadd.f32 %v2282, %v2356
        %v2358 = vpop.f32.mrb[0].mxu0
        %2359 = vdwg.mxu0
        %s2360 = scalar_lea.vmem %s7, 176
        %v2361 = vld [vmem:[%s2360] sm:$0xff]
        %v2362 = vld [vmem:[%s2360 + $0x8] sm:$0xff]
        %v2363 = vld [vmem:[%s2360 + $0x10] sm:$0xff]
        %v2364 = vld [vmem:[%s2360 + $0x18] sm:$0xff]
        %v2365 = vld [vmem:[%s2360 + $0x20] sm:$0xff]
        %v2366 = vld [vmem:[%s2360 + $0x28] sm:$0xff]
        %v2367 = vld [vmem:[%s2360 + $0x30] sm:$0xff]
        %v2368 = vld [vmem:[%s2360 + $0x38] sm:$0xff]
        %v2369 = vld [vmem:[%s2360 + $0x40] sm:$0xff]
        %v2370 = vld [vmem:[%s2360 + $0x48] sm:$0xff]
        %v2371 = vld [vmem:[%s2360 + $0x50] sm:$0xf]
        %v2372 = vrot.slane %v2182, 2
        %v2373 = vsel %vm2208, %v2372, 0
        %v2376 = vsel %vm2211, %v2371, 0
        %2378 = vmatprep.subr.mxu0 0.0
        %2379 = vmatpush1.msra.mxu0 %v2361
        %2380 = vmatprep.subr.mxu0 0.0
        %2381 = vmatpush1.msra.mxu0 %v2362
        %2382 = vmatprep.subr.mxu0 0.0
        %2383 = vmatpush1.msra.mxu0 %v2363
        %2384 = vmatprep.subr.mxu0 0.0
        %2385 = vmatpush1.msra.mxu0 %v2364
        %2386 = vmatprep.subr.mxu0 0.0
        %2387 = vmatpush1.msra.mxu0 %v2365
        %2388 = vmatprep.subr.mxu0 0.0
        %2389 = vmatpush1.msra.mxu0 %v2366
        %2390 = vmatprep.subr.mxu0 0.0
        %2391 = vmatpush1.msra.mxu0 %v2367
        %2392 = vmatprep.subr.mxu0 0.0
        %2393 = vmatpush1.msra.mxu0 %v2368
        %2394 = vmatprep.subr.mxu0 0.0
        %2395 = vmatpush1.msra.mxu0 %v2369
        %2396 = vmatprep.subr.mxu0 0.0
        %2397 = vmatpush1.msra.mxu0 %v2370
        %2398 = vmatprep.subr.mxu0 0.0
        %2399 = vmatpush1.msra.mxu0 %v2376
        %2400 = vmatprep.subr.mxu0 0.0
        %2401 = vmatpush1.msra.mxu0 0.0
        %2402 = vmatprep.subr.mxu0 0.0
        %2403 = vmatpush1.msra.mxu0 0.0
        %2404 = vmatprep.subr.mxu0 0.0
        %2405 = vmatpush1.msra.mxu0 0.0
        %2406 = vmatprep.subr.mxu0 0.0
        %2407 = vmatpush1.msra.mxu0 0.0
        %2408 = vmatprep.subr.mxu0 0.0
        %2409 = vmatpush1.msra.mxu0 0.0
        %2410 = vmatprep.subr.mxu0 0.0
        %2411 = vmatpush1.msra.mxu0 0.0
        %2412 = vmatprep.subr.mxu0 0.0
        %2413 = vmatpush1.msra.mxu0 0.0
        %2414 = vmatprep.subr.mxu0 0.0
        %2415 = vmatpush1.msra.mxu0 0.0
        %2416 = vmatprep.subr.mxu0 0.0
        %2417 = vmatpush1.msra.mxu0 0.0
        %2418 = vmatprep.subr.mxu0 0.0
        %2419 = vmatpush1.msra.mxu0 0.0
        %2420 = vmatprep.subr.mxu0 0.0
        %2421 = vmatpush1.msra.mxu0 0.0
        %2422 = vmatprep.subr.mxu0 0.0
        %2423 = vmatpush1.msra.mxu0 0.0
        %2424 = vmatprep.subr.mxu0 0.0
        %2425 = vmatpush1.msra.mxu0 0.0
        %2426 = vmatprep.subr.mxu0 0.0
        %2427 = vmatpush1.msra.mxu0 0.0
        %2428 = vmatprep.subr.mxu0 0.0
        %2429 = vmatpush1.msra.mxu0 0.0
        %2430 = vmatprep.subr.mxu0 0.0
        %2431 = vmatpush1.msra.mxu0 0.0
        %2432 = vmatprep.subr.mxu0 0.0
        %2433 = vmatpush1.msra.mxu0 0.0
        %2434 = vmatprep.subr.mxu0 0.0
        %2435 = vmatpush1.msra.mxu0 0.0
        %2436 = vmatprep.subr.mxu0 0.0
        %2437 = vmatpush1.msra.mxu0 0.0
        %2438 = vmatprep.subr.mxu0 0.0
        %2439 = vmatpush1.msra.mxu0 0.0
        %2440 = vmatprep.subr.mxu0 0.0
        %2441 = vmatpush1.msra.mxu0 0.0
        %2442 = vmatprep.mubr.f32.mxu0 0.0
        %2443 = vmatmul.mubr.f32.gmra.mrb[0].mxu0 %v2373
        %v2444 = vpop.f32.mrb[0].mxu0
        %v2445 = vadd.f32 0.0, %v2444
        %v2446 = vpop.f32.mrb[0].mxu0
        %2447 = vdwg.mxu0
        %v2448 = vadd.f32 %v2357, %v2445
        %s2449 = scalar_lea.vmem %s7, 264
        %v2450 = vld [vmem:[%s2449] sm:$0xff]
        %v2451 = vld [vmem:[%s2449 + $0x8] sm:$0xff]
        %v2452 = vld [vmem:[%s2449 + $0x10] sm:$0xff]
        %v2453 = vld [vmem:[%s2449 + $0x18] sm:$0xff]
        %v2454 = vld [vmem:[%s2449 + $0x20] sm:$0xff]
        %v2455 = vld [vmem:[%s2449 + $0x28] sm:$0xff]
        %v2456 = vld [vmem:[%s2449 + $0x30] sm:$0xff]
        %v2457 = vld [vmem:[%s2449 + $0x38] sm:$0xff]
        %v2458 = vld [vmem:[%s2449 + $0x40] sm:$0xff]
        %v2459 = vld [vmem:[%s2449 + $0x48] sm:$0xff]
        %v2460 = vld [vmem:[%s2449 + $0x50] sm:$0xf]
        %v2461 = vrot.slane %v2182, 3
        %v2462 = vsel %vm2208, %v2461, 0
        %v2465 = vsel %vm2211, %v2460, 0
        %2467 = vmatprep.subr.mxu0 0.0
        %2468 = vmatpush1.msra.mxu0 %v2450
        %2469 = vmatprep.subr.mxu0 0.0
        %2470 = vmatpush1.msra.mxu0 %v2451
        %2471 = vmatprep.subr.mxu0 0.0
        %2472 = vmatpush1.msra.mxu0 %v2452
        %2473 = vmatprep.subr.mxu0 0.0
        %2474 = vmatpush1.msra.mxu0 %v2453
        %2475 = vmatprep.subr.mxu0 0.0
        %2476 = vmatpush1.msra.mxu0 %v2454
        %2477 = vmatprep.subr.mxu0 0.0
        %2478 = vmatpush1.msra.mxu0 %v2455
        %2479 = vmatprep.subr.mxu0 0.0
        %2480 = vmatpush1.msra.mxu0 %v2456
        %2481 = vmatprep.subr.mxu0 0.0
        %2482 = vmatpush1.msra.mxu0 %v2457
        %2483 = vmatprep.subr.mxu0 0.0
        %2484 = vmatpush1.msra.mxu0 %v2458
        %2485 = vmatprep.subr.mxu0 0.0
        %2486 = vmatpush1.msra.mxu0 %v2459
        %2487 = vmatprep.subr.mxu0 0.0
        %2488 = vmatpush1.msra.mxu0 %v2465
        %2489 = vmatprep.subr.mxu0 0.0
        %2490 = vmatpush1.msra.mxu0 0.0
        %2491 = vmatprep.subr.mxu0 0.0
        %2492 = vmatpush1.msra.mxu0 0.0
        %2493 = vmatprep.subr.mxu0 0.0
        %2494 = vmatpush1.msra.mxu0 0.0
        %2495 = vmatprep.subr.mxu0 0.0
        %2496 = vmatpush1.msra.mxu0 0.0
        %2497 = vmatprep.subr.mxu0 0.0
        %2498 = vmatpush1.msra.mxu0 0.0
        %2499 = vmatprep.subr.mxu0 0.0
        %2500 = vmatpush1.msra.mxu0 0.0
        %2501 = vmatprep.subr.mxu0 0.0
        %2502 = vmatpush1.msra.mxu0 0.0
        %2503 = vmatprep.subr.mxu0 0.0
        %2504 = vmatpush1.msra.mxu0 0.0
        %2505 = vmatprep.subr.mxu0 0.0
        %2506 = vmatpush1.msra.mxu0 0.0
        %2507 = vmatprep.subr.mxu0 0.0
        %2508 = vmatpush1.msra.mxu0 0.0
        %2509 = vmatprep.subr.mxu0 0.0
        %2510 = vmatpush1.msra.mxu0 0.0
        %2511 = vmatprep.subr.mxu0 0.0
        %2512 = vmatpush1.msra.mxu0 0.0
        %2513 = vmatprep.subr.mxu0 0.0
        %2514 = vmatpush1.msra.mxu0 0.0
        %2515 = vmatprep.subr.mxu0 0.0
        %2516 = vmatpush1.msra.mxu0 0.0
        %2517 = vmatprep.subr.mxu0 0.0
        %2518 = vmatpush1.msra.mxu0 0.0
        %2519 = vmatprep.subr.mxu0 0.0
        %2520 = vmatpush1.msra.mxu0 0.0
        %2521 = vmatprep.subr.mxu0 0.0
        %2522 = vmatpush1.msra.mxu0 0.0
        %2523 = vmatprep.subr.mxu0 0.0
        %2524 = vmatpush1.msra.mxu0 0.0
        %2525 = vmatprep.subr.mxu0 0.0
        %2526 = vmatpush1.msra.mxu0 0.0
        %2527 = vmatprep.subr.mxu0 0.0
        %2528 = vmatpush1.msra.mxu0 0.0
        %2529 = vmatprep.subr.mxu0 0.0
        %2530 = vmatpush1.msra.mxu0 0.0
        %2531 = vmatprep.mubr.f32.mxu0 0.0
        %2532 = vmatmul.mubr.f32.gmra.mrb[0].mxu0 %v2462
        %v2533 = vpop.f32.mrb[0].mxu0
        %v2534 = vadd.f32 0.0, %v2533
        %v2535 = vpop.f32.mrb[0].mxu0
        %2536 = vdwg.mxu0
        %v2537 = vadd.f32 %v2448, %v2534
        %s2538 = scalar_lea.vmem %s7, 352
        %v2539 = vld [vmem:[%s2538] sm:$0xff]
        %v2540 = vld [vmem:[%s2538 + $0x8] sm:$0xff]
        %v2541 = vld [vmem:[%s2538 + $0x10] sm:$0xff]
        %v2542 = vld [vmem:[%s2538 + $0x18] sm:$0xff]
        %v2543 = vld [vmem:[%s2538 + $0x20] sm:$0xff]
        %v2544 = vld [vmem:[%s2538 + $0x28] sm:$0xff]
        %v2545 = vld [vmem:[%s2538 + $0x30] sm:$0xff]
        %v2546 = vld [vmem:[%s2538 + $0x38] sm:$0xff]
        %v2547 = vld [vmem:[%s2538 + $0x40] sm:$0xff]
        %v2548 = vld [vmem:[%s2538 + $0x48] sm:$0xff]
        %v2549 = vld [vmem:[%s2538 + $0x50] sm:$0xf]
        %v2550 = vrot.slane %v2182, 4
        %v2551 = vsel %vm2208, %v2550, 0
        %v2554 = vsel %vm2211, %v2549, 0
        %2556 = vmatprep.subr.mxu0 0.0
        %2557 = vmatpush1.msra.mxu0 %v2539
        %2558 = vmatprep.subr.mxu0 0.0
        %2559 = vmatpush1.msra.mxu0 %v2540
        %2560 = vmatprep.subr.mxu0 0.0
        %2561 = vmatpush1.msra.mxu0 %v2541
        %2562 = vmatprep.subr.mxu0 0.0
        %2563 = vmatpush1.msra.mxu0 %v2542
        %2564 = vmatprep.subr.mxu0 0.0
        %2565 = vmatpush1.msra.mxu0 %v2543
        %2566 = vmatprep.subr.mxu0 0.0
        %2567 = vmatpush1.msra.mxu0 %v2544
        %2568 = vmatprep.subr.mxu0 0.0
        %2569 = vmatpush1.msra.mxu0 %v2545
        %2570 = vmatprep.subr.mxu0 0.0
        %2571 = vmatpush1.msra.mxu0 %v2546
        %2572 = vmatprep.subr.mxu0 0.0
        %2573 = vmatpush1.msra.mxu0 %v2547
        %2574 = vmatprep.subr.mxu0 0.0
        %2575 = vmatpush1.msra.mxu0 %v2548
        %2576 = vmatprep.subr.mxu0 0.0
        %2577 = vmatpush1.msra.mxu0 %v2554
        %2578 = vmatprep.subr.mxu0 0.0
        %2579 = vmatpush1.msra.mxu0 0.0
        %2580 = vmatprep.subr.mxu0 0.0
        %2581 = vmatpush1.msra.mxu0 0.0
        %2582 = vmatprep.subr.mxu0 0.0
        %2583 = vmatpush1.msra.mxu0 0.0
        %2584 = vmatprep.subr.mxu0 0.0
        %2585 = vmatpush1.msra.mxu0 0.0
        %2586 = vmatprep.subr.mxu0 0.0
        %2587 = vmatpush1.msra.mxu0 0.0
        %2588 = vmatprep.subr.mxu0 0.0
        %2589 = vmatpush1.msra.mxu0 0.0
        %2590 = vmatprep.subr.mxu0 0.0
        %2591 = vmatpush1.msra.mxu0 0.0
        %2592 = vmatprep.subr.mxu0 0.0
        %2593 = vmatpush1.msra.mxu0 0.0
        %2594 = vmatprep.subr.mxu0 0.0
        %2595 = vmatpush1.msra.mxu0 0.0
        %2596 = vmatprep.subr.mxu0 0.0
        %2597 = vmatpush1.msra.mxu0 0.0
        %2598 = vmatprep.subr.mxu0 0.0
        %2599 = vmatpush1.msra.mxu0 0.0
        %2600 = vmatprep.subr.mxu0 0.0
        %2601 = vmatpush1.msra.mxu0 0.0
        %2602 = vmatprep.subr.mxu0 0.0
        %2603 = vmatpush1.msra.mxu0 0.0
        %2604 = vmatprep.subr.mxu0 0.0
        %2605 = vmatpush1.msra.mxu0 0.0
        %2606 = vmatprep.subr.mxu0 0.0
        %2607 = vmatpush1.msra.mxu0 0.0
        %2608 = vmatprep.subr.mxu0 0.0
        %2609 = vmatpush1.msra.mxu0 0.0
        %2610 = vmatprep.subr.mxu0 0.0
        %2611 = vmatpush1.msra.mxu0 0.0
        %2612 = vmatprep.subr.mxu0 0.0
        %2613 = vmatpush1.msra.mxu0 0.0
        %2614 = vmatprep.subr.mxu0 0.0
        %2615 = vmatpush1.msra.mxu0 0.0
        %2616 = vmatprep.subr.mxu0 0.0
        %2617 = vmatpush1.msra.mxu0 0.0
        %2618 = vmatprep.subr.mxu0 0.0
        %2619 = vmatpush1.msra.mxu0 0.0
        %2620 = vmatprep.mubr.f32.mxu0 0.0
        %2621 = vmatmul.mubr.f32.gmra.mrb[0].mxu0 %v2551
        %v2622 = vpop.f32.mrb[0].mxu0
        %v2623 = vadd.f32 0.0, %v2622
        %v2624 = vpop.f32.mrb[0].mxu0
        %2625 = vdwg.mxu0
        %v2626 = vadd.f32 %v2537, %v2623
        %s2627 = scalar_lea.vmem %s7, 440
        %v2628 = vld [vmem:[%s2627] sm:$0xff]
        %v2629 = vld [vmem:[%s2627 + $0x8] sm:$0xff]
        %v2630 = vld [vmem:[%s2627 + $0x10] sm:$0xff]
        %v2631 = vld [vmem:[%s2627 + $0x18] sm:$0xff]
        %v2632 = vld [vmem:[%s2627 + $0x20] sm:$0xff]
        %v2633 = vld [vmem:[%s2627 + $0x28] sm:$0xff]
        %v2634 = vld [vmem:[%s2627 + $0x30] sm:$0xff]
        %v2635 = vld [vmem:[%s2627 + $0x38] sm:$0xff]
        %v2636 = vld [vmem:[%s2627 + $0x40] sm:$0xff]
        %v2637 = vld [vmem:[%s2627 + $0x48] sm:$0xff]
        %v2638 = vld [vmem:[%s2627 + $0x50] sm:$0xf]
        %v2639 = vrot.slane %v2182, 5
        %v2640 = vsel %vm2208, %v2639, 0
        %v2643 = vsel %vm2211, %v2638, 0
        %2645 = vmatprep.subr.mxu0 0.0
        %2646 = vmatpush1.msra.mxu0 %v2628
        %2647 = vmatprep.subr.mxu0 0.0
        %2648 = vmatpush1.msra.mxu0 %v2629
        %2649 = vmatprep.subr.mxu0 0.0
        %2650 = vmatpush1.msra.mxu0 %v2630
        %2651 = vmatprep.subr.mxu0 0.0
        %2652 = vmatpush1.msra.mxu0 %v2631
        %2653 = vmatprep.subr.mxu0 0.0
        %2654 = vmatpush1.msra.mxu0 %v2632
        %2655 = vmatprep.subr.mxu0 0.0
        %2656 = vmatpush1.msra.mxu0 %v2633
        %2657 = vmatprep.subr.mxu0 0.0
        %2658 = vmatpush1.msra.mxu0 %v2634
        %2659 = vmatprep.subr.mxu0 0.0
        %2660 = vmatpush1.msra.mxu0 %v2635
        %2661 = vmatprep.subr.mxu0 0.0
        %2662 = vmatpush1.msra.mxu0 %v2636
        %2663 = vmatprep.subr.mxu0 0.0
        %2664 = vmatpush1.msra.mxu0 %v2637
        %2665 = vmatprep.subr.mxu0 0.0
        %2666 = vmatpush1.msra.mxu0 %v2643
        %2667 = vmatprep.subr.mxu0 0.0
        %2668 = vmatpush1.msra.mxu0 0.0
        %2669 = vmatprep.subr.mxu0 0.0
        %2670 = vmatpush1.msra.mxu0 0.0
        %2671 = vmatprep.subr.mxu0 0.0
        %2672 = vmatpush1.msra.mxu0 0.0
        %2673 = vmatprep.subr.mxu0 0.0
        %2674 = vmatpush1.msra.mxu0 0.0
        %2675 = vmatprep.subr.mxu0 0.0
        %2676 = vmatpush1.msra.mxu0 0.0
        %2677 = vmatprep.subr.mxu0 0.0
        %2678 = vmatpush1.msra.mxu0 0.0
        %2679 = vmatprep.subr.mxu0 0.0
        %2680 = vmatpush1.msra.mxu0 0.0
        %2681 = vmatprep.subr.mxu0 0.0
        %2682 = vmatpush1.msra.mxu0 0.0
        %2683 = vmatprep.subr.mxu0 0.0
        %2684 = vmatpush1.msra.mxu0 0.0
        %2685 = vmatprep.subr.mxu0 0.0
        %2686 = vmatpush1.msra.mxu0 0.0
        %2687 = vmatprep.subr.mxu0 0.0
        %2688 = vmatpush1.msra.mxu0 0.0
        %2689 = vmatprep.subr.mxu0 0.0
        %2690 = vmatpush1.msra.mxu0 0.0
        %2691 = vmatprep.subr.mxu0 0.0
        %2692 = vmatpush1.msra.mxu0 0.0
        %2693 = vmatprep.subr.mxu0 0.0
        %2694 = vmatpush1.msra.mxu0 0.0
        %2695 = vmatprep.subr.mxu0 0.0
        %2696 = vmatpush1.msra.mxu0 0.0
        %2697 = vmatprep.subr.mxu0 0.0
        %2698 = vmatpush1.msra.mxu0 0.0
        %2699 = vmatprep.subr.mxu0 0.0
        %2700 = vmatpush1.msra.mxu0 0.0
        %2701 = vmatprep.subr.mxu0 0.0
        %2702 = vmatpush1.msra.mxu0 0.0
        %2703 = vmatprep.subr.mxu0 0.0
        %2704 = vmatpush1.msra.mxu0 0.0
        %2705 = vmatprep.subr.mxu0 0.0
        %2706 = vmatpush1.msra.mxu0 0.0
        %2707 = vmatprep.subr.mxu0 0.0
        %2708 = vmatpush1.msra.mxu0 0.0
        %2709 = vmatprep.mubr.f32.mxu0 0.0
        %2710 = vmatmul.mubr.f32.gmra.mrb[0].mxu0 %v2640
        %v2711 = vpop.f32.mrb[0].mxu0
        %v2712 = vadd.f32 0.0, %v2711
        %v2713 = vpop.f32.mrb[0].mxu0
        %2714 = vdwg.mxu0
        %v2715 = vadd.f32 %v2626, %v2712
        %s2716 = scalar_lea.vmem %s7, 528
        %v2717 = vld [vmem:[%s2716] sm:$0xff]
        %v2718 = vld [vmem:[%s2716 + $0x8] sm:$0xff]
        %v2719 = vld [vmem:[%s2716 + $0x10] sm:$0xff]
        %v2720 = vld [vmem:[%s2716 + $0x18] sm:$0xff]
        %v2721 = vld [vmem:[%s2716 + $0x20] sm:$0xff]
        %v2722 = vld [vmem:[%s2716 + $0x28] sm:$0xff]
        %v2723 = vld [vmem:[%s2716 + $0x30] sm:$0xff]
        %v2724 = vld [vmem:[%s2716 + $0x38] sm:$0xff]
        %v2725 = vld [vmem:[%s2716 + $0x40] sm:$0xff]
        %v2726 = vld [vmem:[%s2716 + $0x48] sm:$0xff]
        %v2727 = vld [vmem:[%s2716 + $0x50] sm:$0xf]
        %v2728 = vrot.slane %v2182, 6
        %v2729 = vsel %vm2208, %v2728, 0
        %v2732 = vsel %vm2211, %v2727, 0
        %2734 = vmatprep.subr.mxu0 0.0
        %2735 = vmatpush1.msra.mxu0 %v2717
        %2736 = vmatprep.subr.mxu0 0.0
        %2737 = vmatpush1.msra.mxu0 %v2718
        %2738 = vmatprep.subr.mxu0 0.0
        %2739 = vmatpush1.msra.mxu0 %v2719
        %2740 = vmatprep.subr.mxu0 0.0
        %2741 = vmatpush1.msra.mxu0 %v2720
        %2742 = vmatprep.subr.mxu0 0.0
        %2743 = vmatpush1.msra.mxu0 %v2721
        %2744 = vmatprep.subr.mxu0 0.0
        %2745 = vmatpush1.msra.mxu0 %v2722
        %2746 = vmatprep.subr.mxu0 0.0
        %2747 = vmatpush1.msra.mxu0 %v2723
        %2748 = vmatprep.subr.mxu0 0.0
        %2749 = vmatpush1.msra.mxu0 %v2724
        %2750 = vmatprep.subr.mxu0 0.0
        %2751 = vmatpush1.msra.mxu0 %v2725
        %2752 = vmatprep.subr.mxu0 0.0
        %2753 = vmatpush1.msra.mxu0 %v2726
        %2754 = vmatprep.subr.mxu0 0.0
        %2755 = vmatpush1.msra.mxu0 %v2732
        %2756 = vmatprep.subr.mxu0 0.0
        %2757 = vmatpush1.msra.mxu0 0.0
        %2758 = vmatprep.subr.mxu0 0.0
        %2759 = vmatpush1.msra.mxu0 0.0
        %2760 = vmatprep.subr.mxu0 0.0
        %2761 = vmatpush1.msra.mxu0 0.0
        %2762 = vmatprep.subr.mxu0 0.0
        %2763 = vmatpush1.msra.mxu0 0.0
        %2764 = vmatprep.subr.mxu0 0.0
        %2765 = vmatpush1.msra.mxu0 0.0
        %2766 = vmatprep.subr.mxu0 0.0
        %2767 = vmatpush1.msra.mxu0 0.0
        %2768 = vmatprep.subr.mxu0 0.0
        %2769 = vmatpush1.msra.mxu0 0.0
        %2770 = vmatprep.subr.mxu0 0.0
        %2771 = vmatpush1.msra.mxu0 0.0
        %2772 = vmatprep.subr.mxu0 0.0
        %2773 = vmatpush1.msra.mxu0 0.0
        %2774 = vmatprep.subr.mxu0 0.0
        %2775 = vmatpush1.msra.mxu0 0.0
        %2776 = vmatprep.subr.mxu0 0.0
        %2777 = vmatpush1.msra.mxu0 0.0
        %2778 = vmatprep.subr.mxu0 0.0
        %2779 = vmatpush1.msra.mxu0 0.0
        %2780 = vmatprep.subr.mxu0 0.0
        %2781 = vmatpush1.msra.mxu0 0.0
        %2782 = vmatprep.subr.mxu0 0.0
        %2783 = vmatpush1.msra.mxu0 0.0
        %2784 = vmatprep.subr.mxu0 0.0
        %2785 = vmatpush1.msra.mxu0 0.0
        %2786 = vmatprep.subr.mxu0 0.0
        %2787 = vmatpush1.msra.mxu0 0.0
        %2788 = vmatprep.subr.mxu0 0.0
        %2789 = vmatpush1.msra.mxu0 0.0
        %2790 = vmatprep.subr.mxu0 0.0
        %2791 = vmatpush1.msra.mxu0 0.0
        %2792 = vmatprep.subr.mxu0 0.0
        %2793 = vmatpush1.msra.mxu0 0.0
        %2794 = vmatprep.subr.mxu0 0.0
        %2795 = vmatpush1.msra.mxu0 0.0
        %2796 = vmatprep.subr.mxu0 0.0
        %2797 = vmatpush1.msra.mxu0 0.0
        %2798 = vmatprep.mubr.f32.mxu0 0.0
        %2799 = vmatmul.mubr.f32.gmra.mrb[0].mxu0 %v2729
        %v2800 = vpop.f32.mrb[0].mxu0
        %v2801 = vadd.f32 0.0, %v2800
        %v2802 = vpop.f32.mrb[0].mxu0
        %2803 = vdwg.mxu0
        %v2804 = vadd.f32 %v2715, %v2801
        %v2805 = vld [vmem:[%s8] sm:$0x1]
        %v2806 = vadd.f32 %v2804, %v2805
        %v2807 = vmul.f32 %v2806, 0.6666667
        %v2808 = vtanh.pop %v2807
        %v2809 = vmul.f32 %v2808, 1.716
        %v2810 = vld [vmem:[%s9] sm:$0xff]
        %v2811 = vld [vmem:[%s9 + $0x8] sm:$0xff]
        %v2812 = vld [vmem:[%s9 + $0x10] sm:$0xff]
        %v2813 = vld [vmem:[%s9 + $0x18] sm:$0x3f]
        %v2814 = vld [vmem:[%s10] sm:$0x1]
        %vm2815 = vcmask 244736
        %v2817 = vsel %vm2815, %v2809, 0
        %v2820 = vsel %vm1312, %v2813, 0
        %2822 = vmatprep.subr.mxu0 0.0
        %2823 = vmatpush1.msra.mxu0 %v2810
        %2824 = vmatprep.subr.mxu0 0.0
        %2825 = vmatpush1.msra.mxu0 %v2811
        %2826 = vmatprep.subr.mxu0 0.0
        %2827 = vmatpush1.msra.mxu0 %v2812
        %2828 = vmatprep.subr.mxu0 0.0
        %2829 = vmatpush1.msra.mxu0 %v2820
        %2830 = vmatprep.subr.mxu0 0.0
        %2831 = vmatpush1.msra.mxu0 0.0
        %2832 = vmatprep.subr.mxu0 0.0
        %2833 = vmatpush1.msra.mxu0 0.0
        %2834 = vmatprep.subr.mxu0 0.0
        %2835 = vmatpush1.msra.mxu0 0.0
        %2836 = vmatprep.subr.mxu0 0.0
        %2837 = vmatpush1.msra.mxu0 0.0
        %2838 = vmatprep.subr.mxu0 0.0
        %2839 = vmatpush1.msra.mxu0 0.0
        %2840 = vmatprep.subr.mxu0 0.0
        %2841 = vmatpush1.msra.mxu0 0.0
        %2842 = vmatprep.subr.mxu0 0.0
        %2843 = vmatpush1.msra.mxu0 0.0
        %2844 = vmatprep.subr.mxu0 0.0
        %2845 = vmatpush1.msra.mxu0 0.0
        %2846 = vmatprep.subr.mxu0 0.0
        %2847 = vmatpush1.msra.mxu0 0.0
        %2848 = vmatprep.subr.mxu0 0.0
        %2849 = vmatpush1.msra.mxu0 0.0
        %2850 = vmatprep.subr.mxu0 0.0
        %2851 = vmatpush1.msra.mxu0 0.0
        %2852 = vmatprep.subr.mxu0 0.0
        %2853 = vmatpush1.msra.mxu0 0.0
        %2854 = vmatprep.subr.mxu0 0.0
        %2855 = vmatpush1.msra.mxu0 0.0
        %2856 = vmatprep.subr.mxu0 0.0
        %2857 = vmatpush1.msra.mxu0 0.0
        %2858 = vmatprep.subr.mxu0 0.0
        %2859 = vmatpush1.msra.mxu0 0.0
        %2860 = vmatprep.subr.mxu0 0.0
        %2861 = vmatpush1.msra.mxu0 0.0
        %2862 = vmatprep.subr.mxu0 0.0
        %2863 = vmatpush1.msra.mxu0 0.0
        %2864 = vmatprep.subr.mxu0 0.0
        %2865 = vmatpush1.msra.mxu0 0.0
        %2866 = vmatprep.subr.mxu0 0.0
        %2867 = vmatpush1.msra.mxu0 0.0
        %2868 = vmatprep.subr.mxu0 0.0
        %2869 = vmatpush1.msra.mxu0 0.0
        %2870 = vmatprep.subr.mxu0 0.0
        %2871 = vmatpush1.msra.mxu0 0.0
        %2872 = vmatprep.subr.mxu0 0.0
        %2873 = vmatpush1.msra.mxu0 0.0
        %2874 = vmatprep.subr.mxu0 0.0
        %2875 = vmatpush1.msra.mxu0 0.0
        %2876 = vmatprep.subr.mxu0 0.0
        %2877 = vmatpush1.msra.mxu0 0.0
        %2878 = vmatprep.subr.mxu0 0.0
        %2879 = vmatpush1.msra.mxu0 0.0
        %2880 = vmatprep.subr.mxu0 0.0
        %2881 = vmatpush1.msra.mxu0 0.0
        %2882 = vmatprep.subr.mxu0 0.0
        %2883 = vmatpush1.msra.mxu0 0.0
        %2884 = vmatprep.subr.mxu0 0.0
        %2885 = vmatpush1.msra.mxu0 0.0
        %2886 = vmatprep.mubr.f32.mxu0 0.0
        %2887 = vmatmul.mubr.f32.gmra.mrb[0].mxu0 %v2817
        %v2888 = vpop.f32.mrb[0].mxu0
        %v2889 = vadd.f32 %v2814, %v2888
        %v2890 = vpop.f32.mrb[0].mxu0
        %2891 = vdwg.mxu0
        %v2892 = vmul.f32 %v2889, 0.6666667
        %v2893 = vtanh.pop %v2892
        %v2894 = vmul.f32 %v2893, 1.716
        %vm2895 = vcmask 73728
        %2896 = vst.msk [vmem:[%s378] sm:$0x1] %vm2895, %v2894
        %s2897 = sand.u32 %s269, 1
        %s2898 = scalar_lea.sflag [#allocation3], %s2897
        %s2899 = sand.u32 %s269, 1
        %s2900 = scalar_lea.vmem [#allocation2], %s2899
        // Predicated region
        $region65: #{model_forward.1} parent=63 // pred_check
          %p2901 = pneg %p279
        $region66: #{model_forward.1} parent=63 // pred_check_branch
          %2903 = sbr.rel (%p2901) target = $region68
        $region67: #{model_forward.1} parent=63 // pred_region
          %s2905 = ssub.s32 16, 16
          %2906 = vsyncadd %s2898, %s2905
          %s2907 = smul.addr %s25, 16
          %s2908 = scalar_lea.hbm %s11, %s2907
          %s2910 = sshll.u32 %s2900, 4
          %s2911 = int_to_ptr.vmem [resolvable:$true] %s2910
          %2913 = dma.vmem_to_hbm [thread:$0]  %s2911, 16, %s2908, %s2898
        $region68: #{model_forward.1} parent=63 // pred_fallthru
          _
      $region64: #{model_forward.1} parent=5 // pred_fallthru
        _
      %p2914 = scmp.le.s32.totalorder 2, %s20
      // Predicated region
      $region69: #{model_forward.1} parent=5 // pred_check
        %p2915 = pneg %p2914
      $region70: #{model_forward.1} parent=5 // pred_check_branch
        %2917 = sbr.rel (%p2915) target = $region72
      $region71: #{model_forward.1} parent=5 // pred_region
        %s2918 = ssub.s32 %s20, 2
        // Predicated region
        $region73: #{model_forward.1} parent=71 // pred_check
          %p2919 = pneg %p285
        $region74: #{model_forward.1} parent=71 // pred_check_branch
          %2921 = sbr.rel (%p2919) target = $region76
        $region75: #{model_forward.1} parent=71 // pred_region
          %s2922 = sand.u32 %s270, 1
          %s2923 = scalar_lea.sflag [#allocation3], %s2922
          %s2924 = sand.u32 %s270, 1
          %s2925 = scalar_lea.vmem [#allocation2], %s2924
          %2926 = dma.done %s2923, 16
        $region76: #{model_forward.1} parent=71 // pred_fallthru
          _
      $region72: #{model_forward.1} parent=5 // pred_fallthru
        _
    $region6: #{model_forward.1} parent=1 // loop_footer
      %s24 = sadd.s32 1, %s20
    $region7: #{model_forward.1} parent=1 // loop_footer_branch
      %19 = sbr.rel target = $region3
    $region8: #{model_forward.1} parent=1 // loop_exit
      _
    %2927 = vsyncpa [#allocation3], 1
    %s2928 = scalar_lea.sflag [#allocation3], 1
    %2929 = vsyncpa %s2928, 1

</llo_original>
